<compile_context>
chip_gen: v6e
topology: v6e:2x2x1
jax: 0.10.0
libtpu: 0.0.40
codegen_flags: <defaults>
</compile_context>

<pallas_src>
import numpy as np
import jax
import jax.numpy as jnp
from jax.experimental import pallas as pl
from jax.experimental.pallas import tpu as pltpu


def _out_len(L):
    # PyTorch size formula for kernel=3, stride=2, padding=1 (conv and maxpool).
    return (L - 1) // 2 + 1


def _box_ref(src_ref, dst_ref, combine):
    """Separable 3x3 / stride-2 / pad-1 window op, ref -> ref.

    src_ref: (H, W, TS, TL); dst_ref: (Ho, Wo, TS, TL).  Spatial dims are leading
    axes, so every slice selects whole aligned (TS, TL) tiles and every combine is a
    full-tile VPU op.  Out-of-range (padded) taps are simply dropped, which matches
    zero padding for the all-ones sum conv and -inf padding for PyTorch MaxPool2d.
    combine=jnp.add -> depthwise conv with all-ones weights; jnp.maximum -> maxpool.
    """
    H, W = src_ref.shape[0], src_ref.shape[1]
    Ho, Wo = _out_len(H), _out_len(W)
    acc_dtype = dst_ref.dtype
    for oh in range(Ho):
        h_lo, h_hi = max(0, 2 * oh - 1), min(H, 2 * oh + 2)
        row = src_ref[h_lo].astype(acc_dtype)              # (W, TS, TL)
        for h in range(h_lo + 1, h_hi):
            row = combine(row, src_ref[h].astype(acc_dtype))
        for ow in range(Wo):
            w_lo, w_hi = max(0, 2 * ow - 1), min(W, 2 * ow + 2)
            acc = row[w_lo]                                # (TS, TL)
            for w in range(w_lo + 1, w_hi):
                acc = combine(acc, row[w])
            dst_ref[oh, ow] = acc                          # full-tile, unmasked store


def shadow_kernel(x_ref, x0_ref, x2_ref, x3_ref, x4_ref, c0_ref):
    _box_ref(x_ref, c0_ref, jnp.add)        # conv0   (all-ones depthwise, no bias)
    _box_ref(c0_ref, x0_ref, jnp.maximum)   # maxpool0
    _box_ref(x0_ref, x2_ref, jnp.add)       # conv2
    _box_ref(x2_ref, x3_ref, jnp.add)       # conv3
    if x3_ref.shape[0] == 1 and x3_ref.shape[1] == 1:
        # conv4: 3x3/stride-2/pad-1 all-ones window over a 1x1 map is the identity.
        x4_ref[...] = x3_ref[...]
    else:
        _box_ref(x3_ref, x4_ref, jnp.add)


def resnet_shadow_forward(x_nchw):
    """Pallas implementation of ResNetShadow.forward; returns [x4, x3, x2, x0] in NCHW."""
    N, C, H, W = x_nchw.shape
    P = N * C

    # Tile the plane axis P into (sublane TS, lane TL) trailing dims.
    LANE, SUB = 128, 8
    if P <= LANE:
        TL, TS = P, 1                       # tiny case: single partial tile
    elif P <= LANE * SUB:
        TL, TS = LANE, pl.cdiv(P, LANE)     # single lane-dense block
    else:
        TL, TS = LANE, SUB                  # 1024 planes (~1 MiB f32 input) per step
    blk = TS * TL
    Ppad = pl.cdiv(P, blk) * blk
    Sp = Ppad // TL
    grid_p = Sp // TS

    # (N, C, H, W) -> (H, W, Sp, TL): planes on the trailing (sublane, lane) axes.
    xp = jnp.transpose(x_nchw.reshape(P, H, W), (1, 2, 0))
    if Ppad != P:
        xp = jnp.pad(xp, ((0, 0), (0, 0), (0, Ppad - P)))
    xp = xp.reshape(H, W, Sp, TL)

    h1, w1 = _out_len(H), _out_len(W)        # after conv0
    h0, w0 = _out_len(h1), _out_len(w1)      # maxpool0 -> x0
    h2, w2 = _out_len(h0), _out_len(w0)      # conv2    -> x2
    h3, w3 = _out_len(h2), _out_len(w2)      # conv3    -> x3
    h4, w4 = _out_len(h3), _out_len(w3)      # conv4    -> x4

    def spec(h, w):
        return pl.BlockSpec((h, w, TS, TL), lambda i: (0, 0, i, 0))

    out_shapes = (
        jax.ShapeDtypeStruct((h0, w0, Sp, TL), jnp.float32),
        jax.ShapeDtypeStruct((h2, w2, Sp, TL), jnp.float32),
        jax.ShapeDtypeStruct((h3, w3, Sp, TL), jnp.float32),
        jax.ShapeDtypeStruct((h4, w4, Sp, TL), jnp.float32),
    )

    x0, x2, x3, x4 = pl.pallas_call(
        shadow_kernel,
        out_shape=out_shapes,
        grid_spec=pltpu.PrefetchScalarGridSpec(
            num_scalar_prefetch=0,
            grid=(grid_p,),
            in_specs=[spec(H, W)],
            out_specs=(spec(h0, w0), spec(h2, w2), spec(h3, w3), spec(h4, w4)),
            scratch_shapes=[pltpu.VMEM((h1, w1, TS, TL), jnp.float32)],
        ),
        compiler_params=pltpu.CompilerParams(dimension_semantics=("parallel",)),
    )(xp)

    def unpack(o, ho, wo):
        o = o.reshape(ho, wo, Ppad)[:, :, :P]
        return jnp.transpose(o, (2, 0, 1)).reshape(N, C, ho, wo)

    return [unpack(x4, h4, w4), unpack(x3, h3, w3),
            unpack(x2, h2, w2), unpack(x0, h0, w0)]


# ---------------- pure-numpy reference (matches PyTorch semantics) ----------------
def _ref_box_np(v, op):
    N, C, H, W = v.shape
    Ho, Wo = _out_len(H), _out_len(W)
    out = np.empty((N, C, Ho, Wo), np.float32)
    for i in range(Ho):
        for j in range(Wo):
            hs, he = max(0, 2 * i - 1), min(H, 2 * i + 2)
            ws, we = max(0, 2 * j - 1), min(W, 2 * j + 2)
            out[:, :, i, j] = op(v[:, :, hs:he, ws:we], axis=(2, 3))
    return out


def ref_forward_np(x):
    c0 = _ref_box_np(x, np.sum)   # conv0 (all-ones depthwise weights, no bias)
    x0 = _ref_box_np(c0, np.max)  # maxpool0 (-inf padding)
    x2 = _ref_box_np(x0, np.sum)
    x3 = _ref_box_np(x2, np.sum)
    x4 = _ref_box_np(x3, np.sum)
    return [x4, x3, x2, x0]


if __name__ == "__main__":
    key = jax.random.PRNGKey(0)
    x = jax.random.normal(key, (2, 4, 16, 16), dtype=jnp.float32)  # NCHW, as in PyTorch
    outs = resnet_shadow_forward(x)
    outs = [jax.block_until_ready(o) for o in outs]

    refs = ref_forward_np(np.asarray(x))
    for got, ref in zip(outs, refs):
        assert got.shape == ref.shape, (got.shape, ref.shape)
        np.testing.assert_allclose(np.asarray(got), ref, rtol=1e-5, atol=1e-5)
    print("KERNEL_OK")
</pallas_src>

<mosaic_0001>
module attributes {stable_mosaic.version = 11 : i64} {
  func.func @shadow_kernel(%arg0: i32, %arg1: memref<16x16x1x8xf32, #tpu.memory_space<vmem>>, %arg2: memref<4x4x1x8xf32, #tpu.memory_space<vmem>>, %arg3: memref<2x2x1x8xf32, #tpu.memory_space<vmem>>, %arg4: memref<1x1x1x8xf32, #tpu.memory_space<vmem>>, %arg5: memref<1x1x1x8xf32, #tpu.memory_space<vmem>>, %arg6: memref<8x8x1x8xf32, #tpu.memory_space<vmem>>) attributes {dimension_semantics = [#tpu.dimension_semantics<parallel>], iteration_bounds = array<i64: 1>, scalar_prefetch = 0 : i64, scratch_operands = 1 : i64, tpu.core_type = #tpu.core_type<tc>, window_params = [{transform_indices = @transform_0, window_bounds = array<i64: 16, 16, 1, 8>}, {transform_indices = @transform_1, window_bounds = array<i64: 4, 4, 1, 8>}, {transform_indices = @transform_2, window_bounds = array<i64: 2, 2, 1, 8>}, {transform_indices = @transform_3, window_bounds = array<i64: 1, 1, 1, 8>}, {transform_indices = @transform_4, window_bounds = array<i64: 1, 1, 1, 8>}]} {
    %c0 = arith.constant 0 : index
    %c0_0 = arith.constant 0 : index
    %c0_1 = arith.constant 0 : index
    %c0_2 = arith.constant 0 : index
    %0 = vector.load %arg1[%c0, %c0_0, %c0_1, %c0_2] : memref<16x16x1x8xf32, #tpu.memory_space<vmem>>, vector<1x16x1x8xf32>
    %1 = vector.shape_cast %0 : vector<1x16x1x8xf32> to vector<16x1x8xf32>
    %c1 = arith.constant 1 : index
    %c0_3 = arith.constant 0 : index
    %c0_4 = arith.constant 0 : index
    %c0_5 = arith.constant 0 : index
    %2 = vector.load %arg1[%c1, %c0_3, %c0_4, %c0_5] : memref<16x16x1x8xf32, #tpu.memory_space<vmem>>, vector<1x16x1x8xf32>
    %3 = vector.shape_cast %2 : vector<1x16x1x8xf32> to vector<16x1x8xf32>
    %4 = arith.addf %1, %3 : vector<16x1x8xf32>
    %5 = vector.extract_strided_slice %4 {offsets = [0, 0, 0], sizes = [1, 1, 8], strides = [1, 1, 1]} : vector<16x1x8xf32> to vector<1x1x8xf32>
    %6 = vector.shape_cast %5 : vector<1x1x8xf32> to vector<1x8xf32>
    %7 = vector.extract_strided_slice %4 {offsets = [1, 0, 0], sizes = [1, 1, 8], strides = [1, 1, 1]} : vector<16x1x8xf32> to vector<1x1x8xf32>
    %8 = vector.shape_cast %7 : vector<1x1x8xf32> to vector<1x8xf32>
    %9 = arith.addf %6, %8 : vector<1x8xf32>
    %c0_6 = arith.constant 0 : index
    %c0_7 = arith.constant 0 : index
    %c0_8 = arith.constant 0 : index
    %c0_9 = arith.constant 0 : index
    %10 = vector.load %arg6[%c0_6, %c0_7, %c0_8, %c0_9] : memref<8x8x1x8xf32, #tpu.memory_space<vmem>>, vector<1x1x1x8xf32>
    %11 = vector.shape_cast %10 : vector<1x1x1x8xf32> to vector<1x8xf32>
    %12 = vector.shape_cast %9 : vector<1x8xf32> to vector<1x1x1x8xf32>
    tpu.vector_store %arg6[%c0_6, %c0_7, %c0_8, %c0_9], %12 {strides = array<i32>} : memref<8x8x1x8xf32, #tpu.memory_space<vmem>>, vector<1x1x1x8xf32>,
    %13 = vector.extract_strided_slice %4 {offsets = [1, 0, 0], sizes = [1, 1, 8], strides = [1, 1, 1]} : vector<16x1x8xf32> to vector<1x1x8xf32>
    %14 = vector.shape_cast %13 : vector<1x1x8xf32> to vector<1x8xf32>
    %15 = vector.extract_strided_slice %4 {offsets = [2, 0, 0], sizes = [1, 1, 8], strides = [1, 1, 1]} : vector<16x1x8xf32> to vector<1x1x8xf32>
    %16 = vector.shape_cast %15 : vector<1x1x8xf32> to vector<1x8xf32>
    %17 = arith.addf %14, %16 : vector<1x8xf32>
    %18 = vector.extract_strided_slice %4 {offsets = [3, 0, 0], sizes = [1, 1, 8], strides = [1, 1, 1]} : vector<16x1x8xf32> to vector<1x1x8xf32>
    %19 = vector.shape_cast %18 : vector<1x1x8xf32> to vector<1x8xf32>
    %20 = arith.addf %17, %19 : vector<1x8xf32>
    %c0_10 = arith.constant 0 : index
    %c1_11 = arith.constant 1 : index
    %c0_12 = arith.constant 0 : index
    %c0_13 = arith.constant 0 : index
    %21 = vector.load %arg6[%c0_10, %c1_11, %c0_12, %c0_13] : memref<8x8x1x8xf32, #tpu.memory_space<vmem>>, vector<1x1x1x8xf32>
    %22 = vector.shape_cast %21 : vector<1x1x1x8xf32> to vector<1x8xf32>
    %23 = vector.shape_cast %20 : vector<1x8xf32> to vector<1x1x1x8xf32>
    tpu.vector_store %arg6[%c0_10, %c1_11, %c0_12, %c0_13], %23 {strides = array<i32>} : memref<8x8x1x8xf32, #tpu.memory_space<vmem>>, vector<1x1x1x8xf32>,
    %24 = vector.extract_strided_slice %4 {offsets = [3, 0, 0], sizes = [1, 1, 8], strides = [1, 1, 1]} : vector<16x1x8xf32> to vector<1x1x8xf32>
    %25 = vector.shape_cast %24 : vector<1x1x8xf32> to vector<1x8xf32>
    %26 = vector.extract_strided_slice %4 {offsets = [4, 0, 0], sizes = [1, 1, 8], strides = [1, 1, 1]} : vector<16x1x8xf32> to vector<1x1x8xf32>
    %27 = vector.shape_cast %26 : vector<1x1x8xf32> to vector<1x8xf32>
    %28 = arith.addf %25, %27 : vector<1x8xf32>
    %29 = vector.extract_strided_slice %4 {offsets = [5, 0, 0], sizes = [1, 1, 8], strides = [1, 1, 1]} : vector<16x1x8xf32> to vector<1x1x8xf32>
    %30 = vector.shape_cast %29 : vector<1x1x8xf32> to vector<1x8xf32>
    %31 = arith.addf %28, %30 : vector<1x8xf32>
    %c0_14 = arith.constant 0 : index
    %c2 = arith.constant 2 : index
    %c0_15 = arith.constant 0 : index
    %c0_16 = arith.constant 0 : index
    %32 = vector.load %arg6[%c0_14, %c2, %c0_15, %c0_16] : memref<8x8x1x8xf32, #tpu.memory_space<vmem>>, vector<1x1x1x8xf32>
    %33 = vector.shape_cast %32 : vector<1x1x1x8xf32> to vector<1x8xf32>
    %34 = vector.shape_cast %31 : vector<1x8xf32> to vector<1x1x1x8xf32>
    tpu.vector_store %arg6[%c0_14, %c2, %c0_15, %c0_16], %34 {strides = array<i32>} : memref<8x8x1x8xf32, #tpu.memory_space<vmem>>, vector<1x1x1x8xf32>,
    %35 = vector.extract_strided_slice %4 {offsets = [5, 0, 0], sizes = [1, 1, 8], strides = [1, 1, 1]} : vector<16x1x8xf32> to vector<1x1x8xf32>
    %36 = vector.shape_cast %35 : vector<1x1x8xf32> to vector<1x8xf32>
    %37 = vector.extract_strided_slice %4 {offsets = [6, 0, 0], sizes = [1, 1, 8], strides = [1, 1, 1]} : vector<16x1x8xf32> to vector<1x1x8xf32>
    %38 = vector.shape_cast %37 : vector<1x1x8xf32> to vector<1x8xf32>
    %39 = arith.addf %36, %38 : vector<1x8xf32>
    %40 = vector.extract_strided_slice %4 {offsets = [7, 0, 0], sizes = [1, 1, 8], strides = [1, 1, 1]} : vector<16x1x8xf32> to vector<1x1x8xf32>
    %41 = vector.shape_cast %40 : vector<1x1x8xf32> to vector<1x8xf32>
    %42 = arith.addf %39, %41 : vector<1x8xf32>
    %c0_17 = arith.constant 0 : index
    %c3 = arith.constant 3 : index
    %c0_18 = arith.constant 0 : index
    %c0_19 = arith.constant 0 : index
    %43 = vector.load %arg6[%c0_17, %c3, %c0_18, %c0_19] : memref<8x8x1x8xf32, #tpu.memory_space<vmem>>, vector<1x1x1x8xf32>
    %44 = vector.shape_cast %43 : vector<1x1x1x8xf32> to vector<1x8xf32>
    %45 = vector.shape_cast %42 : vector<1x8xf32> to vector<1x1x1x8xf32>
    tpu.vector_store %arg6[%c0_17, %c3, %c0_18, %c0_19], %45 {strides = array<i32>} : memref<8x8x1x8xf32, #tpu.memory_space<vmem>>, vector<1x1x1x8xf32>,
    %46 = vector.extract_strided_slice %4 {offsets = [7, 0, 0], sizes = [1, 1, 8], strides = [1, 1, 1]} : vector<16x1x8xf32> to vector<1x1x8xf32>
    %47 = vector.shape_cast %46 : vector<1x1x8xf32> to vector<1x8xf32>
    %48 = vector.extract_strided_slice %4 {offsets = [8, 0, 0], sizes = [1, 1, 8], strides = [1, 1, 1]} : vector<16x1x8xf32> to vector<1x1x8xf32>
    %49 = vector.shape_cast %48 : vector<1x1x8xf32> to vector<1x8xf32>
    %50 = arith.addf %47, %49 : vector<1x8xf32>
    %51 = vector.extract_strided_slice %4 {offsets = [9, 0, 0], sizes = [1, 1, 8], strides = [1, 1, 1]} : vector<16x1x8xf32> to vector<1x1x8xf32>
    %52 = vector.shape_cast %51 : vector<1x1x8xf32> to vector<1x8xf32>
    %53 = arith.addf %50, %52 : vector<1x8xf32>
    %c0_20 = arith.constant 0 : index
    %c4 = arith.constant 4 : index
    %c0_21 = arith.constant 0 : index
    %c0_22 = arith.constant 0 : index
    %54 = vector.load %arg6[%c0_20, %c4, %c0_21, %c0_22] : memref<8x8x1x8xf32, #tpu.memory_space<vmem>>, vector<1x1x1x8xf32>
    %55 = vector.shape_cast %54 : vector<1x1x1x8xf32> to vector<1x8xf32>
    %56 = vector.shape_cast %53 : vector<1x8xf32> to vector<1x1x1x8xf32>
    tpu.vector_store %arg6[%c0_20, %c4, %c0_21, %c0_22], %56 {strides = array<i32>} : memref<8x8x1x8xf32, #tpu.memory_space<vmem>>, vector<1x1x1x8xf32>,
    %57 = vector.extract_strided_slice %4 {offsets = [9, 0, 0], sizes = [1, 1, 8], strides = [1, 1, 1]} : vector<16x1x8xf32> to vector<1x1x8xf32>
    %58 = vector.shape_cast %57 : vector<1x1x8xf32> to vector<1x8xf32>
    %59 = vector.extract_strided_slice %4 {offsets = [10, 0, 0], sizes = [1, 1, 8], strides = [1, 1, 1]} : vector<16x1x8xf32> to vector<1x1x8xf32>
    %60 = vector.shape_cast %59 : vector<1x1x8xf32> to vector<1x8xf32>
    %61 = arith.addf %58, %60 : vector<1x8xf32>
    %62 = vector.extract_strided_slice %4 {offsets = [11, 0, 0], sizes = [1, 1, 8], strides = [1, 1, 1]} : vector<16x1x8xf32> to vector<1x1x8xf32>
    %63 = vector.shape_cast %62 : vector<1x1x8xf32> to vector<1x8xf32>
    %64 = arith.addf %61, %63 : vector<1x8xf32>
    %c0_23 = arith.constant 0 : index
    %c5 = arith.constant 5 : index
    %c0_24 = arith.constant 0 : index
    %c0_25 = arith.constant 0 : index
    %65 = vector.load %arg6[%c0_23, %c5, %c0_24, %c0_25] : memref<8x8x1x8xf32, #tpu.memory_space<vmem>>, vector<1x1x1x8xf32>
    %66 = vector.shape_cast %65 : vector<1x1x1x8xf32> to vector<1x8xf32>
    %67 = vector.shape_cast %64 : vector<1x8xf32> to vector<1x1x1x8xf32>
    tpu.vector_store %arg6[%c0_23, %c5, %c0_24, %c0_25], %67 {strides = array<i32>} : memref<8x8x1x8xf32, #tpu.memory_space<vmem>>, vector<1x1x1x8xf32>,
    %68 = vector.extract_strided_slice %4 {offsets = [11, 0, 0], sizes = [1, 1, 8], strides = [1, 1, 1]} : vector<16x1x8xf32> to vector<1x1x8xf32>
    %69 = vector.shape_cast %68 : vector<1x1x8xf32> to vector<1x8xf32>
    %70 = vector.extract_strided_slice %4 {offsets = [12, 0, 0], sizes = [1, 1, 8], strides = [1, 1, 1]} : vector<16x1x8xf32> to vector<1x1x8xf32>
    %71 = vector.shape_cast %70 : vector<1x1x8xf32> to vector<1x8xf32>
    %72 = arith.addf %69, %71 : vector<1x8xf32>
    %73 = vector.extract_strided_slice %4 {offsets = [13, 0, 0], sizes = [1, 1, 8], strides = [1, 1, 1]} : vector<16x1x8xf32> to vector<1x1x8xf32>
    %74 = vector.shape_cast %73 : vector<1x1x8xf32> to vector<1x8xf32>
    %75 = arith.addf %72, %74 : vector<1x8xf32>
    %c0_26 = arith.constant 0 : index
    %c6 = arith.constant 6 : index
    %c0_27 = arith.constant 0 : index
    %c0_28 = arith.constant 0 : index
    %76 = vector.load %arg6[%c0_26, %c6, %c0_27, %c0_28] : memref<8x8x1x8xf32, #tpu.memory_space<vmem>>, vector<1x1x1x8xf32>
    %77 = vector.shape_cast %76 : vector<1x1x1x8xf32> to vector<1x8xf32>
    %78 = vector.shape_cast %75 : vector<1x8xf32> to vector<1x1x1x8xf32>
    tpu.vector_store %arg6[%c0_26, %c6, %c0_27, %c0_28], %78 {strides = array<i32>} : memref<8x8x1x8xf32, #tpu.memory_space<vmem>>, vector<1x1x1x8xf32>,
    %79 = vector.extract_strided_slice %4 {offsets = [13, 0, 0], sizes = [1, 1, 8], strides = [1, 1, 1]} : vector<16x1x8xf32> to vector<1x1x8xf32>
    %80 = vector.shape_cast %79 : vector<1x1x8xf32> to vector<1x8xf32>
    %81 = vector.extract_strided_slice %4 {offsets = [14, 0, 0], sizes = [1, 1, 8], strides = [1, 1, 1]} : vector<16x1x8xf32> to vector<1x1x8xf32>
    %82 = vector.shape_cast %81 : vector<1x1x8xf32> to vector<1x8xf32>
    %83 = arith.addf %80, %82 : vector<1x8xf32>
    %84 = vector.extract_strided_slice %4 {offsets = [15, 0, 0], sizes = [1, 1, 8], strides = [1, 1, 1]} : vector<16x1x8xf32> to vector<1x1x8xf32>
    %85 = vector.shape_cast %84 : vector<1x1x8xf32> to vector<1x8xf32>
    %86 = arith.addf %83, %85 : vector<1x8xf32>
    %c0_29 = arith.constant 0 : index
    %c7 = arith.constant 7 : index
    %c0_30 = arith.constant 0 : index
    %c0_31 = arith.constant 0 : index
    %87 = vector.load %arg6[%c0_29, %c7, %c0_30, %c0_31] : memref<8x8x1x8xf32, #tpu.memory_space<vmem>>, vector<1x1x1x8xf32>
    %88 = vector.shape_cast %87 : vector<1x1x1x8xf32> to vector<1x8xf32>
    %89 = vector.shape_cast %86 : vector<1x8xf32> to vector<1x1x1x8xf32>
    tpu.vector_store %arg6[%c0_29, %c7, %c0_30, %c0_31], %89 {strides = array<i32>} : memref<8x8x1x8xf32, #tpu.memory_space<vmem>>, vector<1x1x1x8xf32>,
    %c1_32 = arith.constant 1 : index
    %c0_33 = arith.constant 0 : index
    %c0_34 = arith.constant 0 : index
    %c0_35 = arith.constant 0 : index
    %90 = vector.load %arg1[%c1_32, %c0_33, %c0_34, %c0_35] : memref<16x16x1x8xf32, #tpu.memory_space<vmem>>, vector<1x16x1x8xf32>
    %91 = vector.shape_cast %90 : vector<1x16x1x8xf32> to vector<16x1x8xf32>
    %c2_36 = arith.constant 2 : index
    %c0_37 = arith.constant 0 : index
    %c0_38 = arith.constant 0 : index
    %c0_39 = arith.constant 0 : index
    %92 = vector.load %arg1[%c2_36, %c0_37, %c0_38, %c0_39] : memref<16x16x1x8xf32, #tpu.memory_space<vmem>>, vector<1x16x1x8xf32>
    %93 = vector.shape_cast %92 : vector<1x16x1x8xf32> to vector<16x1x8xf32>
    %94 = arith.addf %91, %93 : vector<16x1x8xf32>
    %c3_40 = arith.constant 3 : index
    %c0_41 = arith.constant 0 : index
    %c0_42 = arith.constant 0 : index
    %c0_43 = arith.constant 0 : index
    %95 = vector.load %arg1[%c3_40, %c0_41, %c0_42, %c0_43] : memref<16x16x1x8xf32, #tpu.memory_space<vmem>>, vector<1x16x1x8xf32>
    %96 = vector.shape_cast %95 : vector<1x16x1x8xf32> to vector<16x1x8xf32>
    %97 = arith.addf %94, %96 : vector<16x1x8xf32>
    %98 = vector.extract_strided_slice %97 {offsets = [0, 0, 0], sizes = [1, 1, 8], strides = [1, 1, 1]} : vector<16x1x8xf32> to vector<1x1x8xf32>
    %99 = vector.shape_cast %98 : vector<1x1x8xf32> to vector<1x8xf32>
    %100 = vector.extract_strided_slice %97 {offsets = [1, 0, 0], sizes = [1, 1, 8], strides = [1, 1, 1]} : vector<16x1x8xf32> to vector<1x1x8xf32>
    %101 = vector.shape_cast %100 : vector<1x1x8xf32> to vector<1x8xf32>
    %102 = arith.addf %99, %101 : vector<1x8xf32>
    %c1_44 = arith.constant 1 : index
    %c0_45 = arith.constant 0 : index
    %c0_46 = arith.constant 0 : index
    %c0_47 = arith.constant 0 : index
    %103 = vector.load %arg6[%c1_44, %c0_45, %c0_46, %c0_47] : memref<8x8x1x8xf32, #tpu.memory_space<vmem>>, vector<1x1x1x8xf32>
    %104 = vector.shape_cast %103 : vector<1x1x1x8xf32> to vector<1x8xf32>
    %105 = vector.shape_cast %102 : vector<1x8xf32> to vector<1x1x1x8xf32>
    tpu.vector_store %arg6[%c1_44, %c0_45, %c0_46, %c0_47], %105 {strides = array<i32>} : memref<8x8x1x8xf32, #tpu.memory_space<vmem>>, vector<1x1x1x8xf32>,
    %106 = vector.extract_strided_slice %97 {offsets = [1, 0, 0], sizes = [1, 1, 8], strides = [1, 1, 1]} : vector<16x1x8xf32> to vector<1x1x8xf32>
    %107 = vector.shape_cast %106 : vector<1x1x8xf32> to vector<1x8xf32>
    %108 = vector.extract_strided_slice %97 {offsets = [2, 0, 0], sizes = [1, 1, 8], strides = [1, 1, 1]} : vector<16x1x8xf32> to vector<1x1x8xf32>
    %109 = vector.shape_cast %108 : vector<1x1x8xf32> to vector<1x8xf32>
    %110 = arith.addf %107, %109 : vector<1x8xf32>
    %111 = vector.extract_strided_slice %97 {offsets = [3, 0, 0], sizes = [1, 1, 8], strides = [1, 1, 1]} : vector<16x1x8xf32> to vector<1x1x8xf32>
    %112 = vector.shape_cast %111 : vector<1x1x8xf32> to vector<1x8xf32>
    %113 = arith.addf %110, %112 : vector<1x8xf32>
    %c1_48 = arith.constant 1 : index
    %c1_49 = arith.constant 1 : index
    %c0_50 = arith.constant 0 : index
    %c0_51 = arith.constant 0 : index
    %114 = vector.load %arg6[%c1_48, %c1_49, %c0_50, %c0_51] : memref<8x8x1x8xf32, #tpu.memory_space<vmem>>, vector<1x1x1x8xf32>
    %115 = vector.shape_cast %114 : vector<1x1x1x8xf32> to vector<1x8xf32>
    %116 = vector.shape_cast %113 : vector<1x8xf32> to vector<1x1x1x8xf32>
    tpu.vector_store %arg6[%c1_48, %c1_49, %c0_50, %c0_51], %116 {strides = array<i32>} : memref<8x8x1x8xf32, #tpu.memory_space<vmem>>, vector<1x1x1x8xf32>,
    %117 = vector.extract_strided_slice %97 {offsets = [3, 0, 0], sizes = [1, 1, 8], strides = [1, 1, 1]} : vector<16x1x8xf32> to vector<1x1x8xf32>
    %118 = vector.shape_cast %117 : vector<1x1x8xf32> to vector<1x8xf32>
    %119 = vector.extract_strided_slice %97 {offsets = [4, 0, 0], sizes = [1, 1, 8], strides = [1, 1, 1]} : vector<16x1x8xf32> to vector<1x1x8xf32>
    %120 = vector.shape_cast %119 : vector<1x1x8xf32> to vector<1x8xf32>
    %121 = arith.addf %118, %120 : vector<1x8xf32>
    %122 = vector.extract_strided_slice %97 {offsets = [5, 0, 0], sizes = [1, 1, 8], strides = [1, 1, 1]} : vector<16x1x8xf32> to vector<1x1x8xf32>
    %123 = vector.shape_cast %122 : vector<1x1x8xf32> to vector<1x8xf32>
    %124 = arith.addf %121, %123 : vector<1x8xf32>
    %c1_52 = arith.constant 1 : index
    %c2_53 = arith.constant 2 : index
    %c0_54 = arith.constant 0 : index
    %c0_55 = arith.constant 0 : index
    %125 = vector.load %arg6[%c1_52, %c2_53, %c0_54, %c0_55] : memref<8x8x1x8xf32, #tpu.memory_space<vmem>>, vector<1x1x1x8xf32>
    %126 = vector.shape_cast %125 : vector<1x1x1x8xf32> to vector<1x8xf32>
    %127 = vector.shape_cast %124 : vector<1x8xf32> to vector<1x1x1x8xf32>
    tpu.vector_store %arg6[%c1_52, %c2_53, %c0_54, %c0_55], %127 {strides = array<i32>} : memref<8x8x1x8xf32, #tpu.memory_space<vmem>>, vector<1x1x1x8xf32>,
    %128 = vector.extract_strided_slice %97 {offsets = [5, 0, 0], sizes = [1, 1, 8], strides = [1, 1, 1]} : vector<16x1x8xf32> to vector<1x1x8xf32>
    %129 = vector.shape_cast %128 : vector<1x1x8xf32> to vector<1x8xf32>
    %130 = vector.extract_strided_slice %97 {offsets = [6, 0, 0], sizes = [1, 1, 8], strides = [1, 1, 1]} : vector<16x1x8xf32> to vector<1x1x8xf32>
    %131 = vector.shape_cast %130 : vector<1x1x8xf32> to vector<1x8xf32>
    %132 = arith.addf %129, %131 : vector<1x8xf32>
    %133 = vector.extract_strided_slice %97 {offsets = [7, 0, 0], sizes = [1, 1, 8], strides = [1, 1, 1]} : vector<16x1x8xf32> to vector<1x1x8xf32>
    %134 = vector.shape_cast %133 : vector<1x1x8xf32> to vector<1x8xf32>
    %135 = arith.addf %132, %134 : vector<1x8xf32>
    %c1_56 = arith.constant 1 : index
    %c3_57 = arith.constant 3 : index
    %c0_58 = arith.constant 0 : index
    %c0_59 = arith.constant 0 : index
    %136 = vector.load %arg6[%c1_56, %c3_57, %c0_58, %c0_59] : memref<8x8x1x8xf32, #tpu.memory_space<vmem>>, vector<1x1x1x8xf32>
    %137 = vector.shape_cast %136 : vector<1x1x1x8xf32> to vector<1x8xf32>
    %138 = vector.shape_cast %135 : vector<1x8xf32> to vector<1x1x1x8xf32>
    tpu.vector_store %arg6[%c1_56, %c3_57, %c0_58, %c0_59], %138 {strides = array<i32>} : memref<8x8x1x8xf32, #tpu.memory_space<vmem>>, vector<1x1x1x8xf32>,
    %139 = vector.extract_strided_slice %97 {offsets = [7, 0, 0], sizes = [1, 1, 8], strides = [1, 1, 1]} : vector<16x1x8xf32> to vector<1x1x8xf32>
    %140 = vector.shape_cast %139 : vector<1x1x8xf32> to vector<1x8xf32>
    %141 = vector.extract_strided_slice %97 {offsets = [8, 0, 0], sizes = [1, 1, 8], strides = [1, 1, 1]} : vector<16x1x8xf32> to vector<1x1x8xf32>
    %142 = vector.shape_cast %141 : vector<1x1x8xf32> to vector<1x8xf32>
    %143 = arith.addf %140, %142 : vector<1x8xf32>
    %144 = vector.extract_strided_slice %97 {offsets = [9, 0, 0], sizes = [1, 1, 8], strides = [1, 1, 1]} : vector<16x1x8xf32> to vector<1x1x8xf32>
    %145 = vector.shape_cast %144 : vector<1x1x8xf32> to vector<1x8xf32>
    %146 = arith.addf %143, %145 : vector<1x8xf32>
    %c1_60 = arith.constant 1 : index
    %c4_61 = arith.constant 4 : index
    %c0_62 = arith.constant 0 : index
    %c0_63 = arith.constant 0 : index
    %147 = vector.load %arg6[%c1_60, %c4_61, %c0_62, %c0_63] : memref<8x8x1x8xf32, #tpu.memory_space<vmem>>, vector<1x1x1x8xf32>
    %148 = vector.shape_cast %147 : vector<1x1x1x8xf32> to vector<1x8xf32>
    %149 = vector.shape_cast %146 : vector<1x8xf32> to vector<1x1x1x8xf32>
    tpu.vector_store %arg6[%c1_60, %c4_61, %c0_62, %c0_63], %149 {strides = array<i32>} : memref<8x8x1x8xf32, #tpu.memory_space<vmem>>, vector<1x1x1x8xf32>,
    %150 = vector.extract_strided_slice %97 {offsets = [9, 0, 0], sizes = [1, 1, 8], strides = [1, 1, 1]} : vector<16x1x8xf32> to vector<1x1x8xf32>
    %151 = vector.shape_cast %150 : vector<1x1x8xf32> to vector<1x8xf32>
    %152 = vector.extract_strided_slice %97 {offsets = [10, 0, 0], sizes = [1, 1, 8], strides = [1, 1, 1]} : vector<16x1x8xf32> to vector<1x1x8xf32>
    %153 = vector.shape_cast %152 : vector<1x1x8xf32> to vector<1x8xf32>
    %154 = arith.addf %151, %153 : vector<1x8xf32>
    %155 = vector.extract_strided_slice %97 {offsets = [11, 0, 0], sizes = [1, 1, 8], strides = [1, 1, 1]} : vector<16x1x8xf32> to vector<1x1x8xf32>
    %156 = vector.shape_cast %155 : vector<1x1x8xf32> to vector<1x8xf32>
    %157 = arith.addf %154, %156 : vector<1x8xf32>
    %c1_64 = arith.constant 1 : index
    %c5_65 = arith.constant 5 : index
    %c0_66 = arith.constant 0 : index
    %c0_67 = arith.constant 0 : index
    %158 = vector.load %arg6[%c1_64, %c5_65, %c0_66, %c0_67] : memref<8x8x1x8xf32, #tpu.memory_space<vmem>>, vector<1x1x1x8xf32>
    %159 = vector.shape_cast %158 : vector<1x1x1x8xf32> to vector<1x8xf32>
    %160 = vector.shape_cast %157 : vector<1x8xf32> to vector<1x1x1x8xf32>
    tpu.vector_store %arg6[%c1_64, %c5_65, %c0_66, %c0_67], %160 {strides = array<i32>} : memref<8x8x1x8xf32, #tpu.memory_space<vmem>>, vector<1x1x1x8xf32>,
    %161 = vector.extract_strided_slice %97 {offsets = [11, 0, 0], sizes = [1, 1, 8], strides = [1, 1, 1]} : vector<16x1x8xf32> to vector<1x1x8xf32>
    %162 = vector.shape_cast %161 : vector<1x1x8xf32> to vector<1x8xf32>
    %163 = vector.extract_strided_slice %97 {offsets = [12, 0, 0], sizes = [1, 1, 8], strides = [1, 1, 1]} : vector<16x1x8xf32> to vector<1x1x8xf32>
    %164 = vector.shape_cast %163 : vector<1x1x8xf32> to vector<1x8xf32>
    %165 = arith.addf %162, %164 : vector<1x8xf32>
    %166 = vector.extract_strided_slice %97 {offsets = [13, 0, 0], sizes = [1, 1, 8], strides = [1, 1, 1]} : vector<16x1x8xf32> to vector<1x1x8xf32>
    %167 = vector.shape_cast %166 : vector<1x1x8xf32> to vector<1x8xf32>
    %168 = arith.addf %165, %167 : vector<1x8xf32>
    %c1_68 = arith.constant 1 : index
    %c6_69 = arith.constant 6 : index
    %c0_70 = arith.constant 0 : index
    %c0_71 = arith.constant 0 : index
    %169 = vector.load %arg6[%c1_68, %c6_69, %c0_70, %c0_71] : memref<8x8x1x8xf32, #tpu.memory_space<vmem>>, vector<1x1x1x8xf32>
    %170 = vector.shape_cast %169 : vector<1x1x1x8xf32> to vector<1x8xf32>
    %171 = vector.shape_cast %168 : vector<1x8xf32> to vector<1x1x1x8xf32>
    tpu.vector_store %arg6[%c1_68, %c6_69, %c0_70, %c0_71], %171 {strides = array<i32>} : memref<8x8x1x8xf32, #tpu.memory_space<vmem>>, vector<1x1x1x8xf32>,
    %172 = vector.extract_strided_slice %97 {offsets = [13, 0, 0], sizes = [1, 1, 8], strides = [1, 1, 1]} : vector<16x1x8xf32> to vector<1x1x8xf32>
    %173 = vector.shape_cast %172 : vector<1x1x8xf32> to vector<1x8xf32>
    %174 = vector.extract_strided_slice %97 {offsets = [14, 0, 0], sizes = [1, 1, 8], strides = [1, 1, 1]} : vector<16x1x8xf32> to vector<1x1x8xf32>
    %175 = vector.shape_cast %174 : vector<1x1x8xf32> to vector<1x8xf32>
    %176 = arith.addf %173, %175 : vector<1x8xf32>
    %177 = vector.extract_strided_slice %97 {offsets = [15, 0, 0], sizes = [1, 1, 8], strides = [1, 1, 1]} : vector<16x1x8xf32> to vector<1x1x8xf32>
    %178 = vector.shape_cast %177 : vector<1x1x8xf32> to vector<1x8xf32>
    %179 = arith.addf %176, %178 : vector<1x8xf32>
    %c1_72 = arith.constant 1 : index
    %c7_73 = arith.constant 7 : index
    %c0_74 = arith.constant 0 : index
    %c0_75 = arith.constant 0 : index
    %180 = vector.load %arg6[%c1_72, %c7_73, %c0_74, %c0_75] : memref<8x8x1x8xf32, #tpu.memory_space<vmem>>, vector<1x1x1x8xf32>
    %181 = vector.shape_cast %180 : vector<1x1x1x8xf32> to vector<1x8xf32>
    %182 = vector.shape_cast %179 : vector<1x8xf32> to vector<1x1x1x8xf32>
    tpu.vector_store %arg6[%c1_72, %c7_73, %c0_74, %c0_75], %182 {strides = array<i32>} : memref<8x8x1x8xf32, #tpu.memory_space<vmem>>, vector<1x1x1x8xf32>,
    %c3_76 = arith.constant 3 : index
    %c0_77 = arith.constant 0 : index
    %c0_78 = arith.constant 0 : index
    %c0_79 = arith.constant 0 : index
    %183 = vector.load %arg1[%c3_76, %c0_77, %c0_78, %c0_79] : memref<16x16x1x8xf32, #tpu.memory_space<vmem>>, vector<1x16x1x8xf32>
    %184 = vector.shape_cast %183 : vector<1x16x1x8xf32> to vector<16x1x8xf32>
    %c4_80 = arith.constant 4 : index
    %c0_81 = arith.constant 0 : index
    %c0_82 = arith.constant 0 : index
    %c0_83 = arith.constant 0 : index
    %185 = vector.load %arg1[%c4_80, %c0_81, %c0_82, %c0_83] : memref<16x16x1x8xf32, #tpu.memory_space<vmem>>, vector<1x16x1x8xf32>
    %186 = vector.shape_cast %185 : vector<1x16x1x8xf32> to vector<16x1x8xf32>
    %187 = arith.addf %184, %186 : vector<16x1x8xf32>
    %c5_84 = arith.constant 5 : index
    %c0_85 = arith.constant 0 : index
    %c0_86 = arith.constant 0 : index
    %c0_87 = arith.constant 0 : index
    %188 = vector.load %arg1[%c5_84, %c0_85, %c0_86, %c0_87] : memref<16x16x1x8xf32, #tpu.memory_space<vmem>>, vector<1x16x1x8xf32>
    %189 = vector.shape_cast %188 : vector<1x16x1x8xf32> to vector<16x1x8xf32>
    %190 = arith.addf %187, %189 : vector<16x1x8xf32>
    %191 = vector.extract_strided_slice %190 {offsets = [0, 0, 0], sizes = [1, 1, 8], strides = [1, 1, 1]} : vector<16x1x8xf32> to vector<1x1x8xf32>
    %192 = vector.shape_cast %191 : vector<1x1x8xf32> to vector<1x8xf32>
    %193 = vector.extract_strided_slice %190 {offsets = [1, 0, 0], sizes = [1, 1, 8], strides = [1, 1, 1]} : vector<16x1x8xf32> to vector<1x1x8xf32>
    %194 = vector.shape_cast %193 : vector<1x1x8xf32> to vector<1x8xf32>
    %195 = arith.addf %192, %194 : vector<1x8xf32>
    %c2_88 = arith.constant 2 : index
    %c0_89 = arith.constant 0 : index
    %c0_90 = arith.constant 0 : index
    %c0_91 = arith.constant 0 : index
    %196 = vector.load %arg6[%c2_88, %c0_89, %c0_90, %c0_91] : memref<8x8x1x8xf32, #tpu.memory_space<vmem>>, vector<1x1x1x8xf32>
    %197 = vector.shape_cast %196 : vector<1x1x1x8xf32> to vector<1x8xf32>
    %198 = vector.shape_cast %195 : vector<1x8xf32> to vector<1x1x1x8xf32>
    tpu.vector_store %arg6[%c2_88, %c0_89, %c0_90, %c0_91], %198 {strides = array<i32>} : memref<8x8x1x8xf32, #tpu.memory_space<vmem>>, vector<1x1x1x8xf32>,
    %199 = vector.extract_strided_slice %190 {offsets = [1, 0, 0], sizes = [1, 1, 8], strides = [1, 1, 1]} : vector<16x1x8xf32> to vector<1x1x8xf32>
    %200 = vector.shape_cast %199 : vector<1x1x8xf32> to vector<1x8xf32>
    %201 = vector.extract_strided_slice %190 {offsets = [2, 0, 0], sizes = [1, 1, 8], strides = [1, 1, 1]} : vector<16x1x8xf32> to vector<1x1x8xf32>
    %202 = vector.shape_cast %201 : vector<1x1x8xf32> to vector<1x8xf32>
    %203 = arith.addf %200, %202 : vector<1x8xf32>
    %204 = vector.extract_strided_slice %190 {offsets = [3, 0, 0], sizes = [1, 1, 8], strides = [1, 1, 1]} : vector<16x1x8xf32> to vector<1x1x8xf32>
    %205 = vector.shape_cast %204 : vector<1x1x8xf32> to vector<1x8xf32>
    %206 = arith.addf %203, %205 : vector<1x8xf32>
    %c2_92 = arith.constant 2 : index
    %c1_93 = arith.constant 1 : index
    %c0_94 = arith.constant 0 : index
    %c0_95 = arith.constant 0 : index
    %207 = vector.load %arg6[%c2_92, %c1_93, %c0_94, %c0_95] : memref<8x8x1x8xf32, #tpu.memory_space<vmem>>, vector<1x1x1x8xf32>
    %208 = vector.shape_cast %207 : vector<1x1x1x8xf32> to vector<1x8xf32>
    %209 = vector.shape_cast %206 : vector<1x8xf32> to vector<1x1x1x8xf32>
    tpu.vector_store %arg6[%c2_92, %c1_93, %c0_94, %c0_95], %209 {strides = array<i32>} : memref<8x8x1x8xf32, #tpu.memory_space<vmem>>, vector<1x1x1x8xf32>,
    %210 = vector.extract_strided_slice %190 {offsets = [3, 0, 0], sizes = [1, 1, 8], strides = [1, 1, 1]} : vector<16x1x8xf32> to vector<1x1x8xf32>
    %211 = vector.shape_cast %210 : vector<1x1x8xf32> to vector<1x8xf32>
    %212 = vector.extract_strided_slice %190 {offsets = [4, 0, 0], sizes = [1, 1, 8], strides = [1, 1, 1]} : vector<16x1x8xf32> to vector<1x1x8xf32>
    %213 = vector.shape_cast %212 : vector<1x1x8xf32> to vector<1x8xf32>
    %214 = arith.addf %211, %213 : vector<1x8xf32>
    %215 = vector.extract_strided_slice %190 {offsets = [5, 0, 0], sizes = [1, 1, 8], strides = [1, 1, 1]} : vector<16x1x8xf32> to vector<1x1x8xf32>
    %216 = vector.shape_cast %215 : vector<1x1x8xf32> to vector<1x8xf32>
    %217 = arith.addf %214, %216 : vector<1x8xf32>
    %c2_96 = arith.constant 2 : index
    %c2_97 = arith.constant 2 : index
    %c0_98 = arith.constant 0 : index
    %c0_99 = arith.constant 0 : index
    %218 = vector.load %arg6[%c2_96, %c2_97, %c0_98, %c0_99] : memref<8x8x1x8xf32, #tpu.memory_space<vmem>>, vector<1x1x1x8xf32>
    %219 = vector.shape_cast %218 : vector<1x1x1x8xf32> to vector<1x8xf32>
    %220 = vector.shape_cast %217 : vector<1x8xf32> to vector<1x1x1x8xf32>
    tpu.vector_store %arg6[%c2_96, %c2_97, %c0_98, %c0_99], %220 {strides = array<i32>} : memref<8x8x1x8xf32, #tpu.memory_space<vmem>>, vector<1x1x1x8xf32>,
    %221 = vector.extract_strided_slice %190 {offsets = [5, 0, 0], sizes = [1, 1, 8], strides = [1, 1, 1]} : vector<16x1x8xf32> to vector<1x1x8xf32>
    %222 = vector.shape_cast %221 : vector<1x1x8xf32> to vector<1x8xf32>
    %223 = vector.extract_strided_slice %190 {offsets = [6, 0, 0], sizes = [1, 1, 8], strides = [1, 1, 1]} : vector<16x1x8xf32> to vector<1x1x8xf32>
    %224 = vector.shape_cast %223 : vector<1x1x8xf32> to vector<1x8xf32>
    %225 = arith.addf %222, %224 : vector<1x8xf32>
    %226 = vector.extract_strided_slice %190 {offsets = [7, 0, 0], sizes = [1, 1, 8], strides = [1, 1, 1]} : vector<16x1x8xf32> to vector<1x1x8xf32>
    %227 = vector.shape_cast %226 : vector<1x1x8xf32> to vector<1x8xf32>
    %228 = arith.addf %225, %227 : vector<1x8xf32>
    %c2_100 = arith.constant 2 : index
    %c3_101 = arith.constant 3 : index
    %c0_102 = arith.constant 0 : index
    %c0_103 = arith.constant 0 : index
    %229 = vector.load %arg6[%c2_100, %c3_101, %c0_102, %c0_103] : memref<8x8x1x8xf32, #tpu.memory_space<vmem>>, vector<1x1x1x8xf32>
    %230 = vector.shape_cast %229 : vector<1x1x1x8xf32> to vector<1x8xf32>
    %231 = vector.shape_cast %228 : vector<1x8xf32> to vector<1x1x1x8xf32>
    tpu.vector_store %arg6[%c2_100, %c3_101, %c0_102, %c0_103], %231 {strides = array<i32>} : memref<8x8x1x8xf32, #tpu.memory_space<vmem>>, vector<1x1x1x8xf32>,
    %232 = vector.extract_strided_slice %190 {offsets = [7, 0, 0], sizes = [1, 1, 8], strides = [1, 1, 1]} : vector<16x1x8xf32> to vector<1x1x8xf32>
    %233 = vector.shape_cast %232 : vector<1x1x8xf32> to vector<1x8xf32>
    %234 = vector.extract_strided_slice %190 {offsets = [8, 0, 0], sizes = [1, 1, 8], strides = [1, 1, 1]} : vector<16x1x8xf32> to vector<1x1x8xf32>
    %235 = vector.shape_cast %234 : vector<1x1x8xf32> to vector<1x8xf32>
    %236 = arith.addf %233, %235 : vector<1x8xf32>
    %237 = vector.extract_strided_slice %190 {offsets = [9, 0, 0], sizes = [1, 1, 8], strides = [1, 1, 1]} : vector<16x1x8xf32> to vector<1x1x8xf32>
    %238 = vector.shape_cast %237 : vector<1x1x8xf32> to vector<1x8xf32>
    %239 = arith.addf %236, %238 : vector<1x8xf32>
    %c2_104 = arith.constant 2 : index
    %c4_105 = arith.constant 4 : index
    %c0_106 = arith.constant 0 : index
    %c0_107 = arith.constant 0 : index
    %240 = vector.load %arg6[%c2_104, %c4_105, %c0_106, %c0_107] : memref<8x8x1x8xf32, #tpu.memory_space<vmem>>, vector<1x1x1x8xf32>
    %241 = vector.shape_cast %240 : vector<1x1x1x8xf32> to vector<1x8xf32>
    %242 = vector.shape_cast %239 : vector<1x8xf32> to vector<1x1x1x8xf32>
    tpu.vector_store %arg6[%c2_104, %c4_105, %c0_106, %c0_107], %242 {strides = array<i32>} : memref<8x8x1x8xf32, #tpu.memory_space<vmem>>, vector<1x1x1x8xf32>,
    %243 = vector.extract_strided_slice %190 {offsets = [9, 0, 0], sizes = [1, 1, 8], strides = [1, 1, 1]} : vector<16x1x8xf32> to vector<1x1x8xf32>
    %244 = vector.shape_cast %243 : vector<1x1x8xf32> to vector<1x8xf32>
    %245 = vector.extract_strided_slice %190 {offsets = [10, 0, 0], sizes = [1, 1, 8], strides = [1, 1, 1]} : vector<16x1x8xf32> to vector<1x1x8xf32>
    %246 = vector.shape_cast %245 : vector<1x1x8xf32> to vector<1x8xf32>
    %247 = arith.addf %244, %246 : vector<1x8xf32>
    %248 = vector.extract_strided_slice %190 {offsets = [11, 0, 0], sizes = [1, 1, 8], strides = [1, 1, 1]} : vector<16x1x8xf32> to vector<1x1x8xf32>
    %249 = vector.shape_cast %248 : vector<1x1x8xf32> to vector<1x8xf32>
    %250 = arith.addf %247, %249 : vector<1x8xf32>
    %c2_108 = arith.constant 2 : index
    %c5_109 = arith.constant 5 : index
    %c0_110 = arith.constant 0 : index
    %c0_111 = arith.constant 0 : index
    %251 = vector.load %arg6[%c2_108, %c5_109, %c0_110, %c0_111] : memref<8x8x1x8xf32, #tpu.memory_space<vmem>>, vector<1x1x1x8xf32>
    %252 = vector.shape_cast %251 : vector<1x1x1x8xf32> to vector<1x8xf32>
    %253 = vector.shape_cast %250 : vector<1x8xf32> to vector<1x1x1x8xf32>
    tpu.vector_store %arg6[%c2_108, %c5_109, %c0_110, %c0_111], %253 {strides = array<i32>} : memref<8x8x1x8xf32, #tpu.memory_space<vmem>>, vector<1x1x1x8xf32>,
    %254 = vector.extract_strided_slice %190 {offsets = [11, 0, 0], sizes = [1, 1, 8], strides = [1, 1, 1]} : vector<16x1x8xf32> to vector<1x1x8xf32>
    %255 = vector.shape_cast %254 : vector<1x1x8xf32> to vector<1x8xf32>
    %256 = vector.extract_strided_slice %190 {offsets = [12, 0, 0], sizes = [1, 1, 8], strides = [1, 1, 1]} : vector<16x1x8xf32> to vector<1x1x8xf32>
    %257 = vector.shape_cast %256 : vector<1x1x8xf32> to vector<1x8xf32>
    %258 = arith.addf %255, %257 : vector<1x8xf32>
    %259 = vector.extract_strided_slice %190 {offsets = [13, 0, 0], sizes = [1, 1, 8], strides = [1, 1, 1]} : vector<16x1x8xf32> to vector<1x1x8xf32>
    %260 = vector.shape_cast %259 : vector<1x1x8xf32> to vector<1x8xf32>
    %261 = arith.addf %258, %260 : vector<1x8xf32>
    %c2_112 = arith.constant 2 : index
    %c6_113 = arith.constant 6 : index
    %c0_114 = arith.constant 0 : index
    %c0_115 = arith.constant 0 : index
    %262 = vector.load %arg6[%c2_112, %c6_113, %c0_114, %c0_115] : memref<8x8x1x8xf32, #tpu.memory_space<vmem>>, vector<1x1x1x8xf32>
    %263 = vector.shape_cast %262 : vector<1x1x1x8xf32> to vector<1x8xf32>
    %264 = vector.shape_cast %261 : vector<1x8xf32> to vector<1x1x1x8xf32>
    tpu.vector_store %arg6[%c2_112, %c6_113, %c0_114, %c0_115], %264 {strides = array<i32>} : memref<8x8x1x8xf32, #tpu.memory_space<vmem>>, vector<1x1x1x8xf32>,
    %265 = vector.extract_strided_slice %190 {offsets = [13, 0, 0], sizes = [1, 1, 8], strides = [1, 1, 1]} : vector<16x1x8xf32> to vector<1x1x8xf32>
    %266 = vector.shape_cast %265 : vector<1x1x8xf32> to vector<1x8xf32>
    %267 = vector.extract_strided_slice %190 {offsets = [14, 0, 0], sizes = [1, 1, 8], strides = [1, 1, 1]} : vector<16x1x8xf32> to vector<1x1x8xf32>
    %268 = vector.shape_cast %267 : vector<1x1x8xf32> to vector<1x8xf32>
    %269 = arith.addf %266, %268 : vector<1x8xf32>
    %270 = vector.extract_strided_slice %190 {offsets = [15, 0, 0], sizes = [1, 1, 8], strides = [1, 1, 1]} : vector<16x1x8xf32> to vector<1x1x8xf32>
    %271 = vector.shape_cast %270 : vector<1x1x8xf32> to vector<1x8xf32>
    %272 = arith.addf %269, %271 : vector<1x8xf32>
    %c2_116 = arith.constant 2 : index
    %c7_117 = arith.constant 7 : index
    %c0_118 = arith.constant 0 : index
    %c0_119 = arith.constant 0 : index
    %273 = vector.load %arg6[%c2_116, %c7_117, %c0_118, %c0_119] : memref<8x8x1x8xf32, #tpu.memory_space<vmem>>, vector<1x1x1x8xf32>
    %274 = vector.shape_cast %273 : vector<1x1x1x8xf32> to vector<1x8xf32>
    %275 = vector.shape_cast %272 : vector<1x8xf32> to vector<1x1x1x8xf32>
    tpu.vector_store %arg6[%c2_116, %c7_117, %c0_118, %c0_119], %275 {strides = array<i32>} : memref<8x8x1x8xf32, #tpu.memory_space<vmem>>, vector<1x1x1x8xf32>,
    %c5_120 = arith.constant 5 : index
    %c0_121 = arith.constant 0 : index
    %c0_122 = arith.constant 0 : index
    %c0_123 = arith.constant 0 : index
    %276 = vector.load %arg1[%c5_120, %c0_121, %c0_122, %c0_123] : memref<16x16x1x8xf32, #tpu.memory_space<vmem>>, vector<1x16x1x8xf32>
    %277 = vector.shape_cast %276 : vector<1x16x1x8xf32> to vector<16x1x8xf32>
    %c6_124 = arith.constant 6 : index
    %c0_125 = arith.constant 0 : index
    %c0_126 = arith.constant 0 : index
    %c0_127 = arith.constant 0 : index
    %278 = vector.load %arg1[%c6_124, %c0_125, %c0_126, %c0_127] : memref<16x16x1x8xf32, #tpu.memory_space<vmem>>, vector<1x16x1x8xf32>
    %279 = vector.shape_cast %278 : vector<1x16x1x8xf32> to vector<16x1x8xf32>
    %280 = arith.addf %277, %279 : vector<16x1x8xf32>
    %c7_128 = arith.constant 7 : index
    %c0_129 = arith.constant 0 : index
    %c0_130 = arith.constant 0 : index
    %c0_131 = arith.constant 0 : index
    %281 = vector.load %arg1[%c7_128, %c0_129, %c0_130, %c0_131] : memref<16x16x1x8xf32, #tpu.memory_space<vmem>>, vector<1x16x1x8xf32>
    %282 = vector.shape_cast %281 : vector<1x16x1x8xf32> to vector<16x1x8xf32>
    %283 = arith.addf %280, %282 : vector<16x1x8xf32>
    %284 = vector.extract_strided_slice %283 {offsets = [0, 0, 0], sizes = [1, 1, 8], strides = [1, 1, 1]} : vector<16x1x8xf32> to vector<1x1x8xf32>
    %285 = vector.shape_cast %284 : vector<1x1x8xf32> to vector<1x8xf32>
    %286 = vector.extract_strided_slice %283 {offsets = [1, 0, 0], sizes = [1, 1, 8], strides = [1, 1, 1]} : vector<16x1x8xf32> to vector<1x1x8xf32>
    %287 = vector.shape_cast %286 : vector<1x1x8xf32> to vector<1x8xf32>
    %288 = arith.addf %285, %287 : vector<1x8xf32>
    %c3_132 = arith.constant 3 : index
    %c0_133 = arith.constant 0 : index
    %c0_134 = arith.constant 0 : index
    %c0_135 = arith.constant 0 : index
    %289 = vector.load %arg6[%c3_132, %c0_133, %c0_134, %c0_135] : memref<8x8x1x8xf32, #tpu.memory_space<vmem>>, vector<1x1x1x8xf32>
    %290 = vector.shape_cast %289 : vector<1x1x1x8xf32> to vector<1x8xf32>
    %291 = vector.shape_cast %288 : vector<1x8xf32> to vector<1x1x1x8xf32>
    tpu.vector_store %arg6[%c3_132, %c0_133, %c0_134, %c0_135], %291 {strides = array<i32>} : memref<8x8x1x8xf32, #tpu.memory_space<vmem>>, vector<1x1x1x8xf32>,
    %292 = vector.extract_strided_slice %283 {offsets = [1, 0, 0], sizes = [1, 1, 8], strides = [1, 1, 1]} : vector<16x1x8xf32> to vector<1x1x8xf32>
    %293 = vector.shape_cast %292 : vector<1x1x8xf32> to vector<1x8xf32>
    %294 = vector.extract_strided_slice %283 {offsets = [2, 0, 0], sizes = [1, 1, 8], strides = [1, 1, 1]} : vector<16x1x8xf32> to vector<1x1x8xf32>
    %295 = vector.shape_cast %294 : vector<1x1x8xf32> to vector<1x8xf32>
    %296 = arith.addf %293, %295 : vector<1x8xf32>
    %297 = vector.extract_strided_slice %283 {offsets = [3, 0, 0], sizes = [1, 1, 8], strides = [1, 1, 1]} : vector<16x1x8xf32> to vector<1x1x8xf32>
    %298 = vector.shape_cast %297 : vector<1x1x8xf32> to vector<1x8xf32>
    %299 = arith.addf %296, %298 : vector<1x8xf32>
    %c3_136 = arith.constant 3 : index
    %c1_137 = arith.constant 1 : index
    %c0_138 = arith.constant 0 : index
    %c0_139 = arith.constant 0 : index
    %300 = vector.load %arg6[%c3_136, %c1_137, %c0_138, %c0_139] : memref<8x8x1x8xf32, #tpu.memory_space<vmem>>, vector<1x1x1x8xf32>
    %301 = vector.shape_cast %300 : vector<1x1x1x8xf32> to vector<1x8xf32>
    %302 = vector.shape_cast %299 : vector<1x8xf32> to vector<1x1x1x8xf32>
    tpu.vector_store %arg6[%c3_136, %c1_137, %c0_138, %c0_139], %302 {strides = array<i32>} : memref<8x8x1x8xf32, #tpu.memory_space<vmem>>, vector<1x1x1x8xf32>,
    %303 = vector.extract_strided_slice %283 {offsets = [3, 0, 0], sizes = [1, 1, 8], strides = [1, 1, 1]} : vector<16x1x8xf32> to vector<1x1x8xf32>
    %304 = vector.shape_cast %303 : vector<1x1x8xf32> to vector<1x8xf32>
    %305 = vector.extract_strided_slice %283 {offsets = [4, 0, 0], sizes = [1, 1, 8], strides = [1, 1, 1]} : vector<16x1x8xf32> to vector<1x1x8xf32>
    %306 = vector.shape_cast %305 : vector<1x1x8xf32> to vector<1x8xf32>
    %307 = arith.addf %304, %306 : vector<1x8xf32>
    %308 = vector.extract_strided_slice %283 {offsets = [5, 0, 0], sizes = [1, 1, 8], strides = [1, 1, 1]} : vector<16x1x8xf32> to vector<1x1x8xf32>
    %309 = vector.shape_cast %308 : vector<1x1x8xf32> to vector<1x8xf32>
    %310 = arith.addf %307, %309 : vector<1x8xf32>
    %c3_140 = arith.constant 3 : index
    %c2_141 = arith.constant 2 : index
    %c0_142 = arith.constant 0 : index
    %c0_143 = arith.constant 0 : index
    %311 = vector.load %arg6[%c3_140, %c2_141, %c0_142, %c0_143] : memref<8x8x1x8xf32, #tpu.memory_space<vmem>>, vector<1x1x1x8xf32>
    %312 = vector.shape_cast %311 : vector<1x1x1x8xf32> to vector<1x8xf32>
    %313 = vector.shape_cast %310 : vector<1x8xf32> to vector<1x1x1x8xf32>
    tpu.vector_store %arg6[%c3_140, %c2_141, %c0_142, %c0_143], %313 {strides = array<i32>} : memref<8x8x1x8xf32, #tpu.memory_space<vmem>>, vector<1x1x1x8xf32>,
    %314 = vector.extract_strided_slice %283 {offsets = [5, 0, 0], sizes = [1, 1, 8], strides = [1, 1, 1]} : vector<16x1x8xf32> to vector<1x1x8xf32>
    %315 = vector.shape_cast %314 : vector<1x1x8xf32> to vector<1x8xf32>
    %316 = vector.extract_strided_slice %283 {offsets = [6, 0, 0], sizes = [1, 1, 8], strides = [1, 1, 1]} : vector<16x1x8xf32> to vector<1x1x8xf32>
    %317 = vector.shape_cast %316 : vector<1x1x8xf32> to vector<1x8xf32>
    %318 = arith.addf %315, %317 : vector<1x8xf32>
    %319 = vector.extract_strided_slice %283 {offsets = [7, 0, 0], sizes = [1, 1, 8], strides = [1, 1, 1]} : vector<16x1x8xf32> to vector<1x1x8xf32>
    %320 = vector.shape_cast %319 : vector<1x1x8xf32> to vector<1x8xf32>
    %321 = arith.addf %318, %320 : vector<1x8xf32>
    %c3_144 = arith.constant 3 : index
    %c3_145 = arith.constant 3 : index
    %c0_146 = arith.constant 0 : index
    %c0_147 = arith.constant 0 : index
    %322 = vector.load %arg6[%c3_144, %c3_145, %c0_146, %c0_147] : memref<8x8x1x8xf32, #tpu.memory_space<vmem>>, vector<1x1x1x8xf32>
    %323 = vector.shape_cast %322 : vector<1x1x1x8xf32> to vector<1x8xf32>
    %324 = vector.shape_cast %321 : vector<1x8xf32> to vector<1x1x1x8xf32>
    tpu.vector_store %arg6[%c3_144, %c3_145, %c0_146, %c0_147], %324 {strides = array<i32>} : memref<8x8x1x8xf32, #tpu.memory_space<vmem>>, vector<1x1x1x8xf32>,
    %325 = vector.extract_strided_slice %283 {offsets = [7, 0, 0], sizes = [1, 1, 8], strides = [1, 1, 1]} : vector<16x1x8xf32> to vector<1x1x8xf32>
    %326 = vector.shape_cast %325 : vector<1x1x8xf32> to vector<1x8xf32>
    %327 = vector.extract_strided_slice %283 {offsets = [8, 0, 0], sizes = [1, 1, 8], strides = [1, 1, 1]} : vector<16x1x8xf32> to vector<1x1x8xf32>
    %328 = vector.shape_cast %327 : vector<1x1x8xf32> to vector<1x8xf32>
    %329 = arith.addf %326, %328 : vector<1x8xf32>
    %330 = vector.extract_strided_slice %283 {offsets = [9, 0, 0], sizes = [1, 1, 8], strides = [1, 1, 1]} : vector<16x1x8xf32> to vector<1x1x8xf32>
    %331 = vector.shape_cast %330 : vector<1x1x8xf32> to vector<1x8xf32>
    %332 = arith.addf %329, %331 : vector<1x8xf32>
    %c3_148 = arith.constant 3 : index
    %c4_149 = arith.constant 4 : index
    %c0_150 = arith.constant 0 : index
    %c0_151 = arith.constant 0 : index
    %333 = vector.load %arg6[%c3_148, %c4_149, %c0_150, %c0_151] : memref<8x8x1x8xf32, #tpu.memory_space<vmem>>, vector<1x1x1x8xf32>
    %334 = vector.shape_cast %333 : vector<1x1x1x8xf32> to vector<1x8xf32>
    %335 = vector.shape_cast %332 : vector<1x8xf32> to vector<1x1x1x8xf32>
    tpu.vector_store %arg6[%c3_148, %c4_149, %c0_150, %c0_151], %335 {strides = array<i32>} : memref<8x8x1x8xf32, #tpu.memory_space<vmem>>, vector<1x1x1x8xf32>,
    %336 = vector.extract_strided_slice %283 {offsets = [9, 0, 0], sizes = [1, 1, 8], strides = [1, 1, 1]} : vector<16x1x8xf32> to vector<1x1x8xf32>
    %337 = vector.shape_cast %336 : vector<1x1x8xf32> to vector<1x8xf32>
    %338 = vector.extract_strided_slice %283 {offsets = [10, 0, 0], sizes = [1, 1, 8], strides = [1, 1, 1]} : vector<16x1x8xf32> to vector<1x1x8xf32>
    %339 = vector.shape_cast %338 : vector<1x1x8xf32> to vector<1x8xf32>
    %340 = arith.addf %337, %339 : vector<1x8xf32>
    %341 = vector.extract_strided_slice %283 {offsets = [11, 0, 0], sizes = [1, 1, 8], strides = [1, 1, 1]} : vector<16x1x8xf32> to vector<1x1x8xf32>
    %342 = vector.shape_cast %341 : vector<1x1x8xf32> to vector<1x8xf32>
    %343 = arith.addf %340, %342 : vector<1x8xf32>
    %c3_152 = arith.constant 3 : index
    %c5_153 = arith.constant 5 : index
    %c0_154 = arith.constant 0 : index
    %c0_155 = arith.constant 0 : index
    %344 = vector.load %arg6[%c3_152, %c5_153, %c0_154, %c0_155] : memref<8x8x1x8xf32, #tpu.memory_space<vmem>>, vector<1x1x1x8xf32>
    %345 = vector.shape_cast %344 : vector<1x1x1x8xf32> to vector<1x8xf32>
    %346 = vector.shape_cast %343 : vector<1x8xf32> to vector<1x1x1x8xf32>
    tpu.vector_store %arg6[%c3_152, %c5_153, %c0_154, %c0_155], %346 {strides = array<i32>} : memref<8x8x1x8xf32, #tpu.memory_space<vmem>>, vector<1x1x1x8xf32>,
    %347 = vector.extract_strided_slice %283 {offsets = [11, 0, 0], sizes = [1, 1, 8], strides = [1, 1, 1]} : vector<16x1x8xf32> to vector<1x1x8xf32>
    %348 = vector.shape_cast %347 : vector<1x1x8xf32> to vector<1x8xf32>
    %349 = vector.extract_strided_slice %283 {offsets = [12, 0, 0], sizes = [1, 1, 8], strides = [1, 1, 1]} : vector<16x1x8xf32> to vector<1x1x8xf32>
    %350 = vector.shape_cast %349 : vector<1x1x8xf32> to vector<1x8xf32>
    %351 = arith.addf %348, %350 : vector<1x8xf32>
    %352 = vector.extract_strided_slice %283 {offsets = [13, 0, 0], sizes = [1, 1, 8], strides = [1, 1, 1]} : vector<16x1x8xf32> to vector<1x1x8xf32>
    %353 = vector.shape_cast %352 : vector<1x1x8xf32> to vector<1x8xf32>
    %354 = arith.addf %351, %353 : vector<1x8xf32>
    %c3_156 = arith.constant 3 : index
    %c6_157 = arith.constant 6 : index
    %c0_158 = arith.constant 0 : index
    %c0_159 = arith.constant 0 : index
    %355 = vector.load %arg6[%c3_156, %c6_157, %c0_158, %c0_159] : memref<8x8x1x8xf32, #tpu.memory_space<vmem>>, vector<1x1x1x8xf32>
    %356 = vector.shape_cast %355 : vector<1x1x1x8xf32> to vector<1x8xf32>
    %357 = vector.shape_cast %354 : vector<1x8xf32> to vector<1x1x1x8xf32>
    tpu.vector_store %arg6[%c3_156, %c6_157, %c0_158, %c0_159], %357 {strides = array<i32>} : memref<8x8x1x8xf32, #tpu.memory_space<vmem>>, vector<1x1x1x8xf32>,
    %358 = vector.extract_strided_slice %283 {offsets = [13, 0, 0], sizes = [1, 1, 8], strides = [1, 1, 1]} : vector<16x1x8xf32> to vector<1x1x8xf32>
    %359 = vector.shape_cast %358 : vector<1x1x8xf32> to vector<1x8xf32>
    %360 = vector.extract_strided_slice %283 {offsets = [14, 0, 0], sizes = [1, 1, 8], strides = [1, 1, 1]} : vector<16x1x8xf32> to vector<1x1x8xf32>
    %361 = vector.shape_cast %360 : vector<1x1x8xf32> to vector<1x8xf32>
    %362 = arith.addf %359, %361 : vector<1x8xf32>
    %363 = vector.extract_strided_slice %283 {offsets = [15, 0, 0], sizes = [1, 1, 8], strides = [1, 1, 1]} : vector<16x1x8xf32> to vector<1x1x8xf32>
    %364 = vector.shape_cast %363 : vector<1x1x8xf32> to vector<1x8xf32>
    %365 = arith.addf %362, %364 : vector<1x8xf32>
    %c3_160 = arith.constant 3 : index
    %c7_161 = arith.constant 7 : index
    %c0_162 = arith.constant 0 : index
    %c0_163 = arith.constant 0 : index
    %366 = vector.load %arg6[%c3_160, %c7_161, %c0_162, %c0_163] : memref<8x8x1x8xf32, #tpu.memory_space<vmem>>, vector<1x1x1x8xf32>
    %367 = vector.shape_cast %366 : vector<1x1x1x8xf32> to vector<1x8xf32>
    %368 = vector.shape_cast %365 : vector<1x8xf32> to vector<1x1x1x8xf32>
    tpu.vector_store %arg6[%c3_160, %c7_161, %c0_162, %c0_163], %368 {strides = array<i32>} : memref<8x8x1x8xf32, #tpu.memory_space<vmem>>, vector<1x1x1x8xf32>,
    %c7_164 = arith.constant 7 : index
    %c0_165 = arith.constant 0 : index
    %c0_166 = arith.constant 0 : index
    %c0_167 = arith.constant 0 : index
    %369 = vector.load %arg1[%c7_164, %c0_165, %c0_166, %c0_167] : memref<16x16x1x8xf32, #tpu.memory_space<vmem>>, vector<1x16x1x8xf32>
    %370 = vector.shape_cast %369 : vector<1x16x1x8xf32> to vector<16x1x8xf32>
    %c8 = arith.constant 8 : index
    %c0_168 = arith.constant 0 : index
    %c0_169 = arith.constant 0 : index
    %c0_170 = arith.constant 0 : index
    %371 = vector.load %arg1[%c8, %c0_168, %c0_169, %c0_170] : memref<16x16x1x8xf32, #tpu.memory_space<vmem>>, vector<1x16x1x8xf32>
    %372 = vector.shape_cast %371 : vector<1x16x1x8xf32> to vector<16x1x8xf32>
    %373 = arith.addf %370, %372 : vector<16x1x8xf32>
    %c9 = arith.constant 9 : index
    %c0_171 = arith.constant 0 : index
    %c0_172 = arith.constant 0 : index
    %c0_173 = arith.constant 0 : index
    %374 = vector.load %arg1[%c9, %c0_171, %c0_172, %c0_173] : memref<16x16x1x8xf32, #tpu.memory_space<vmem>>, vector<1x16x1x8xf32>
    %375 = vector.shape_cast %374 : vector<1x16x1x8xf32> to vector<16x1x8xf32>
    %376 = arith.addf %373, %375 : vector<16x1x8xf32>
    %377 = vector.extract_strided_slice %376 {offsets = [0, 0, 0], sizes = [1, 1, 8], strides = [1, 1, 1]} : vector<16x1x8xf32> to vector<1x1x8xf32>
    %378 = vector.shape_cast %377 : vector<1x1x8xf32> to vector<1x8xf32>
    %379 = vector.extract_strided_slice %376 {offsets = [1, 0, 0], sizes = [1, 1, 8], strides = [1, 1, 1]} : vector<16x1x8xf32> to vector<1x1x8xf32>
    %380 = vector.shape_cast %379 : vector<1x1x8xf32> to vector<1x8xf32>
    %381 = arith.addf %378, %380 : vector<1x8xf32>
    %c4_174 = arith.constant 4 : index
    %c0_175 = arith.constant 0 : index
    %c0_176 = arith.constant 0 : index
    %c0_177 = arith.constant 0 : index
    %382 = vector.load %arg6[%c4_174, %c0_175, %c0_176, %c0_177] : memref<8x8x1x8xf32, #tpu.memory_space<vmem>>, vector<1x1x1x8xf32>
    %383 = vector.shape_cast %382 : vector<1x1x1x8xf32> to vector<1x8xf32>
    %384 = vector.shape_cast %381 : vector<1x8xf32> to vector<1x1x1x8xf32>
    tpu.vector_store %arg6[%c4_174, %c0_175, %c0_176, %c0_177], %384 {strides = array<i32>} : memref<8x8x1x8xf32, #tpu.memory_space<vmem>>, vector<1x1x1x8xf32>,
    %385 = vector.extract_strided_slice %376 {offsets = [1, 0, 0], sizes = [1, 1, 8], strides = [1, 1, 1]} : vector<16x1x8xf32> to vector<1x1x8xf32>
    %386 = vector.shape_cast %385 : vector<1x1x8xf32> to vector<1x8xf32>
    %387 = vector.extract_strided_slice %376 {offsets = [2, 0, 0], sizes = [1, 1, 8], strides = [1, 1, 1]} : vector<16x1x8xf32> to vector<1x1x8xf32>
    %388 = vector.shape_cast %387 : vector<1x1x8xf32> to vector<1x8xf32>
    %389 = arith.addf %386, %388 : vector<1x8xf32>
    %390 = vector.extract_strided_slice %376 {offsets = [3, 0, 0], sizes = [1, 1, 8], strides = [1, 1, 1]} : vector<16x1x8xf32> to vector<1x1x8xf32>
    %391 = vector.shape_cast %390 : vector<1x1x8xf32> to vector<1x8xf32>
    %392 = arith.addf %389, %391 : vector<1x8xf32>
    %c4_178 = arith.constant 4 : index
    %c1_179 = arith.constant 1 : index
    %c0_180 = arith.constant 0 : index
    %c0_181 = arith.constant 0 : index
    %393 = vector.load %arg6[%c4_178, %c1_179, %c0_180, %c0_181] : memref<8x8x1x8xf32, #tpu.memory_space<vmem>>, vector<1x1x1x8xf32>
    %394 = vector.shape_cast %393 : vector<1x1x1x8xf32> to vector<1x8xf32>
    %395 = vector.shape_cast %392 : vector<1x8xf32> to vector<1x1x1x8xf32>
    tpu.vector_store %arg6[%c4_178, %c1_179, %c0_180, %c0_181], %395 {strides = array<i32>} : memref<8x8x1x8xf32, #tpu.memory_space<vmem>>, vector<1x1x1x8xf32>,
    %396 = vector.extract_strided_slice %376 {offsets = [3, 0, 0], sizes = [1, 1, 8], strides = [1, 1, 1]} : vector<16x1x8xf32> to vector<1x1x8xf32>
    %397 = vector.shape_cast %396 : vector<1x1x8xf32> to vector<1x8xf32>
    %398 = vector.extract_strided_slice %376 {offsets = [4, 0, 0], sizes = [1, 1, 8], strides = [1, 1, 1]} : vector<16x1x8xf32> to vector<1x1x8xf32>
    %399 = vector.shape_cast %398 : vector<1x1x8xf32> to vector<1x8xf32>
    %400 = arith.addf %397, %399 : vector<1x8xf32>
    %401 = vector.extract_strided_slice %376 {offsets = [5, 0, 0], sizes = [1, 1, 8], strides = [1, 1, 1]} : vector<16x1x8xf32> to vector<1x1x8xf32>
    %402 = vector.shape_cast %401 : vector<1x1x8xf32> to vector<1x8xf32>
    %403 = arith.addf %400, %402 : vector<1x8xf32>
    %c4_182 = arith.constant 4 : index
    %c2_183 = arith.constant 2 : index
    %c0_184 = arith.constant 0 : index
    %c0_185 = arith.constant 0 : index
    %404 = vector.load %arg6[%c4_182, %c2_183, %c0_184, %c0_185] : memref<8x8x1x8xf32, #tpu.memory_space<vmem>>, vector<1x1x1x8xf32>
    %405 = vector.shape_cast %404 : vector<1x1x1x8xf32> to vector<1x8xf32>
    %406 = vector.shape_cast %403 : vector<1x8xf32> to vector<1x1x1x8xf32>
    tpu.vector_store %arg6[%c4_182, %c2_183, %c0_184, %c0_185], %406 {strides = array<i32>} : memref<8x8x1x8xf32, #tpu.memory_space<vmem>>, vector<1x1x1x8xf32>,
    %407 = vector.extract_strided_slice %376 {offsets = [5, 0, 0], sizes = [1, 1, 8], strides = [1, 1, 1]} : vector<16x1x8xf32> to vector<1x1x8xf32>
    %408 = vector.shape_cast %407 : vector<1x1x8xf32> to vector<1x8xf32>
    %409 = vector.extract_strided_slice %376 {offsets = [6, 0, 0], sizes = [1, 1, 8], strides = [1, 1, 1]} : vector<16x1x8xf32> to vector<1x1x8xf32>
    %410 = vector.shape_cast %409 : vector<1x1x8xf32> to vector<1x8xf32>
    %411 = arith.addf %408, %410 : vector<1x8xf32>
    %412 = vector.extract_strided_slice %376 {offsets = [7, 0, 0], sizes = [1, 1, 8], strides = [1, 1, 1]} : vector<16x1x8xf32> to vector<1x1x8xf32>
    %413 = vector.shape_cast %412 : vector<1x1x8xf32> to vector<1x8xf32>
    %414 = arith.addf %411, %413 : vector<1x8xf32>
    %c4_186 = arith.constant 4 : index
    %c3_187 = arith.constant 3 : index
    %c0_188 = arith.constant 0 : index
    %c0_189 = arith.constant 0 : index
    %415 = vector.load %arg6[%c4_186, %c3_187, %c0_188, %c0_189] : memref<8x8x1x8xf32, #tpu.memory_space<vmem>>, vector<1x1x1x8xf32>
    %416 = vector.shape_cast %415 : vector<1x1x1x8xf32> to vector<1x8xf32>
    %417 = vector.shape_cast %414 : vector<1x8xf32> to vector<1x1x1x8xf32>
    tpu.vector_store %arg6[%c4_186, %c3_187, %c0_188, %c0_189], %417 {strides = array<i32>} : memref<8x8x1x8xf32, #tpu.memory_space<vmem>>, vector<1x1x1x8xf32>,
    %418 = vector.extract_strided_slice %376 {offsets = [7, 0, 0], sizes = [1, 1, 8], strides = [1, 1, 1]} : vector<16x1x8xf32> to vector<1x1x8xf32>
    %419 = vector.shape_cast %418 : vector<1x1x8xf32> to vector<1x8xf32>
    %420 = vector.extract_strided_slice %376 {offsets = [8, 0, 0], sizes = [1, 1, 8], strides = [1, 1, 1]} : vector<16x1x8xf32> to vector<1x1x8xf32>
    %421 = vector.shape_cast %420 : vector<1x1x8xf32> to vector<1x8xf32>
    %422 = arith.addf %419, %421 : vector<1x8xf32>
    %423 = vector.extract_strided_slice %376 {offsets = [9, 0, 0], sizes = [1, 1, 8], strides = [1, 1, 1]} : vector<16x1x8xf32> to vector<1x1x8xf32>
    %424 = vector.shape_cast %423 : vector<1x1x8xf32> to vector<1x8xf32>
    %425 = arith.addf %422, %424 : vector<1x8xf32>
    %c4_190 = arith.constant 4 : index
    %c4_191 = arith.constant 4 : index
    %c0_192 = arith.constant 0 : index
    %c0_193 = arith.constant 0 : index
    %426 = vector.load %arg6[%c4_190, %c4_191, %c0_192, %c0_193] : memref<8x8x1x8xf32, #tpu.memory_space<vmem>>, vector<1x1x1x8xf32>
    %427 = vector.shape_cast %426 : vector<1x1x1x8xf32> to vector<1x8xf32>
    %428 = vector.shape_cast %425 : vector<1x8xf32> to vector<1x1x1x8xf32>
    tpu.vector_store %arg6[%c4_190, %c4_191, %c0_192, %c0_193], %428 {strides = array<i32>} : memref<8x8x1x8xf32, #tpu.memory_space<vmem>>, vector<1x1x1x8xf32>,
    %429 = vector.extract_strided_slice %376 {offsets = [9, 0, 0], sizes = [1, 1, 8], strides = [1, 1, 1]} : vector<16x1x8xf32> to vector<1x1x8xf32>
    %430 = vector.shape_cast %429 : vector<1x1x8xf32> to vector<1x8xf32>
    %431 = vector.extract_strided_slice %376 {offsets = [10, 0, 0], sizes = [1, 1, 8], strides = [1, 1, 1]} : vector<16x1x8xf32> to vector<1x1x8xf32>
    %432 = vector.shape_cast %431 : vector<1x1x8xf32> to vector<1x8xf32>
    %433 = arith.addf %430, %432 : vector<1x8xf32>
    %434 = vector.extract_strided_slice %376 {offsets = [11, 0, 0], sizes = [1, 1, 8], strides = [1, 1, 1]} : vector<16x1x8xf32> to vector<1x1x8xf32>
    %435 = vector.shape_cast %434 : vector<1x1x8xf32> to vector<1x8xf32>
    %436 = arith.addf %433, %435 : vector<1x8xf32>
    %c4_194 = arith.constant 4 : index
    %c5_195 = arith.constant 5 : index
    %c0_196 = arith.constant 0 : index
    %c0_197 = arith.constant 0 : index
    %437 = vector.load %arg6[%c4_194, %c5_195, %c0_196, %c0_197] : memref<8x8x1x8xf32, #tpu.memory_space<vmem>>, vector<1x1x1x8xf32>
    %438 = vector.shape_cast %437 : vector<1x1x1x8xf32> to vector<1x8xf32>
    %439 = vector.shape_cast %436 : vector<1x8xf32> to vector<1x1x1x8xf32>
    tpu.vector_store %arg6[%c4_194, %c5_195, %c0_196, %c0_197], %439 {strides = array<i32>} : memref<8x8x1x8xf32, #tpu.memory_space<vmem>>, vector<1x1x1x8xf32>,
    %440 = vector.extract_strided_slice %376 {offsets = [11, 0, 0], sizes = [1, 1, 8], strides = [1, 1, 1]} : vector<16x1x8xf32> to vector<1x1x8xf32>
    %441 = vector.shape_cast %440 : vector<1x1x8xf32> to vector<1x8xf32>
    %442 = vector.extract_strided_slice %376 {offsets = [12, 0, 0], sizes = [1, 1, 8], strides = [1, 1, 1]} : vector<16x1x8xf32> to vector<1x1x8xf32>
    %443 = vector.shape_cast %442 : vector<1x1x8xf32> to vector<1x8xf32>
    %444 = arith.addf %441, %443 : vector<1x8xf32>
    %445 = vector.extract_strided_slice %376 {offsets = [13, 0, 0], sizes = [1, 1, 8], strides = [1, 1, 1]} : vector<16x1x8xf32> to vector<1x1x8xf32>
    %446 = vector.shape_cast %445 : vector<1x1x8xf32> to vector<1x8xf32>
    %447 = arith.addf %444, %446 : vector<1x8xf32>
    %c4_198 = arith.constant 4 : index
    %c6_199 = arith.constant 6 : index
    %c0_200 = arith.constant 0 : index
    %c0_201 = arith.constant 0 : index
    %448 = vector.load %arg6[%c4_198, %c6_199, %c0_200, %c0_201] : memref<8x8x1x8xf32, #tpu.memory_space<vmem>>, vector<1x1x1x8xf32>
    %449 = vector.shape_cast %448 : vector<1x1x1x8xf32> to vector<1x8xf32>
    %450 = vector.shape_cast %447 : vector<1x8xf32> to vector<1x1x1x8xf32>
    tpu.vector_store %arg6[%c4_198, %c6_199, %c0_200, %c0_201], %450 {strides = array<i32>} : memref<8x8x1x8xf32, #tpu.memory_space<vmem>>, vector<1x1x1x8xf32>,
    %451 = vector.extract_strided_slice %376 {offsets = [13, 0, 0], sizes = [1, 1, 8], strides = [1, 1, 1]} : vector<16x1x8xf32> to vector<1x1x8xf32>
    %452 = vector.shape_cast %451 : vector<1x1x8xf32> to vector<1x8xf32>
    %453 = vector.extract_strided_slice %376 {offsets = [14, 0, 0], sizes = [1, 1, 8], strides = [1, 1, 1]} : vector<16x1x8xf32> to vector<1x1x8xf32>
    %454 = vector.shape_cast %453 : vector<1x1x8xf32> to vector<1x8xf32>
    %455 = arith.addf %452, %454 : vector<1x8xf32>
    %456 = vector.extract_strided_slice %376 {offsets = [15, 0, 0], sizes = [1, 1, 8], strides = [1, 1, 1]} : vector<16x1x8xf32> to vector<1x1x8xf32>
    %457 = vector.shape_cast %456 : vector<1x1x8xf32> to vector<1x8xf32>
    %458 = arith.addf %455, %457 : vector<1x8xf32>
    %c4_202 = arith.constant 4 : index
    %c7_203 = arith.constant 7 : index
    %c0_204 = arith.constant 0 : index
    %c0_205 = arith.constant 0 : index
    %459 = vector.load %arg6[%c4_202, %c7_203, %c0_204, %c0_205] : memref<8x8x1x8xf32, #tpu.memory_space<vmem>>, vector<1x1x1x8xf32>
    %460 = vector.shape_cast %459 : vector<1x1x1x8xf32> to vector<1x8xf32>
    %461 = vector.shape_cast %458 : vector<1x8xf32> to vector<1x1x1x8xf32>
    tpu.vector_store %arg6[%c4_202, %c7_203, %c0_204, %c0_205], %461 {strides = array<i32>} : memref<8x8x1x8xf32, #tpu.memory_space<vmem>>, vector<1x1x1x8xf32>,
    %c9_206 = arith.constant 9 : index
    %c0_207 = arith.constant 0 : index
    %c0_208 = arith.constant 0 : index
    %c0_209 = arith.constant 0 : index
    %462 = vector.load %arg1[%c9_206, %c0_207, %c0_208, %c0_209] : memref<16x16x1x8xf32, #tpu.memory_space<vmem>>, vector<1x16x1x8xf32>
    %463 = vector.shape_cast %462 : vector<1x16x1x8xf32> to vector<16x1x8xf32>
    %c10 = arith.constant 10 : index
    %c0_210 = arith.constant 0 : index
    %c0_211 = arith.constant 0 : index
    %c0_212 = arith.constant 0 : index
    %464 = vector.load %arg1[%c10, %c0_210, %c0_211, %c0_212] : memref<16x16x1x8xf32, #tpu.memory_space<vmem>>, vector<1x16x1x8xf32>
    %465 = vector.shape_cast %464 : vector<1x16x1x8xf32> to vector<16x1x8xf32>
    %466 = arith.addf %463, %465 : vector<16x1x8xf32>
    %c11 = arith.constant 11 : index
    %c0_213 = arith.constant 0 : index
    %c0_214 = arith.constant 0 : index
    %c0_215 = arith.constant 0 : index
    %467 = vector.load %arg1[%c11, %c0_213, %c0_214, %c0_215] : memref<16x16x1x8xf32, #tpu.memory_space<vmem>>, vector<1x16x1x8xf32>
    %468 = vector.shape_cast %467 : vector<1x16x1x8xf32> to vector<16x1x8xf32>
    %469 = arith.addf %466, %468 : vector<16x1x8xf32>
    %470 = vector.extract_strided_slice %469 {offsets = [0, 0, 0], sizes = [1, 1, 8], strides = [1, 1, 1]} : vector<16x1x8xf32> to vector<1x1x8xf32>
    %471 = vector.shape_cast %470 : vector<1x1x8xf32> to vector<1x8xf32>
    %472 = vector.extract_strided_slice %469 {offsets = [1, 0, 0], sizes = [1, 1, 8], strides = [1, 1, 1]} : vector<16x1x8xf32> to vector<1x1x8xf32>
    %473 = vector.shape_cast %472 : vector<1x1x8xf32> to vector<1x8xf32>
    %474 = arith.addf %471, %473 : vector<1x8xf32>
    %c5_216 = arith.constant 5 : index
    %c0_217 = arith.constant 0 : index
    %c0_218 = arith.constant 0 : index
    %c0_219 = arith.constant 0 : index
    %475 = vector.load %arg6[%c5_216, %c0_217, %c0_218, %c0_219] : memref<8x8x1x8xf32, #tpu.memory_space<vmem>>, vector<1x1x1x8xf32>
    %476 = vector.shape_cast %475 : vector<1x1x1x8xf32> to vector<1x8xf32>
    %477 = vector.shape_cast %474 : vector<1x8xf32> to vector<1x1x1x8xf32>
    tpu.vector_store %arg6[%c5_216, %c0_217, %c0_218, %c0_219], %477 {strides = array<i32>} : memref<8x8x1x8xf32, #tpu.memory_space<vmem>>, vector<1x1x1x8xf32>,
    %478 = vector.extract_strided_slice %469 {offsets = [1, 0, 0], sizes = [1, 1, 8], strides = [1, 1, 1]} : vector<16x1x8xf32> to vector<1x1x8xf32>
    %479 = vector.shape_cast %478 : vector<1x1x8xf32> to vector<1x8xf32>
    %480 = vector.extract_strided_slice %469 {offsets = [2, 0, 0], sizes = [1, 1, 8], strides = [1, 1, 1]} : vector<16x1x8xf32> to vector<1x1x8xf32>
    %481 = vector.shape_cast %480 : vector<1x1x8xf32> to vector<1x8xf32>
    %482 = arith.addf %479, %481 : vector<1x8xf32>
    %483 = vector.extract_strided_slice %469 {offsets = [3, 0, 0], sizes = [1, 1, 8], strides = [1, 1, 1]} : vector<16x1x8xf32> to vector<1x1x8xf32>
    %484 = vector.shape_cast %483 : vector<1x1x8xf32> to vector<1x8xf32>
    %485 = arith.addf %482, %484 : vector<1x8xf32>
    %c5_220 = arith.constant 5 : index
    %c1_221 = arith.constant 1 : index
    %c0_222 = arith.constant 0 : index
    %c0_223 = arith.constant 0 : index
    %486 = vector.load %arg6[%c5_220, %c1_221, %c0_222, %c0_223] : memref<8x8x1x8xf32, #tpu.memory_space<vmem>>, vector<1x1x1x8xf32>
    %487 = vector.shape_cast %486 : vector<1x1x1x8xf32> to vector<1x8xf32>
    %488 = vector.shape_cast %485 : vector<1x8xf32> to vector<1x1x1x8xf32>
    tpu.vector_store %arg6[%c5_220, %c1_221, %c0_222, %c0_223], %488 {strides = array<i32>} : memref<8x8x1x8xf32, #tpu.memory_space<vmem>>, vector<1x1x1x8xf32>,
    %489 = vector.extract_strided_slice %469 {offsets = [3, 0, 0], sizes = [1, 1, 8], strides = [1, 1, 1]} : vector<16x1x8xf32> to vector<1x1x8xf32>
    %490 = vector.shape_cast %489 : vector<1x1x8xf32> to vector<1x8xf32>
    %491 = vector.extract_strided_slice %469 {offsets = [4, 0, 0], sizes = [1, 1, 8], strides = [1, 1, 1]} : vector<16x1x8xf32> to vector<1x1x8xf32>
    %492 = vector.shape_cast %491 : vector<1x1x8xf32> to vector<1x8xf32>
    %493 = arith.addf %490, %492 : vector<1x8xf32>
    %494 = vector.extract_strided_slice %469 {offsets = [5, 0, 0], sizes = [1, 1, 8], strides = [1, 1, 1]} : vector<16x1x8xf32> to vector<1x1x8xf32>
    %495 = vector.shape_cast %494 : vector<1x1x8xf32> to vector<1x8xf32>
    %496 = arith.addf %493, %495 : vector<1x8xf32>
    %c5_224 = arith.constant 5 : index
    %c2_225 = arith.constant 2 : index
    %c0_226 = arith.constant 0 : index
    %c0_227 = arith.constant 0 : index
    %497 = vector.load %arg6[%c5_224, %c2_225, %c0_226, %c0_227] : memref<8x8x1x8xf32, #tpu.memory_space<vmem>>, vector<1x1x1x8xf32>
    %498 = vector.shape_cast %497 : vector<1x1x1x8xf32> to vector<1x8xf32>
    %499 = vector.shape_cast %496 : vector<1x8xf32> to vector<1x1x1x8xf32>
    tpu.vector_store %arg6[%c5_224, %c2_225, %c0_226, %c0_227], %499 {strides = array<i32>} : memref<8x8x1x8xf32, #tpu.memory_space<vmem>>, vector<1x1x1x8xf32>,
    %500 = vector.extract_strided_slice %469 {offsets = [5, 0, 0], sizes = [1, 1, 8], strides = [1, 1, 1]} : vector<16x1x8xf32> to vector<1x1x8xf32>
    %501 = vector.shape_cast %500 : vector<1x1x8xf32> to vector<1x8xf32>
    %502 = vector.extract_strided_slice %469 {offsets = [6, 0, 0], sizes = [1, 1, 8], strides = [1, 1, 1]} : vector<16x1x8xf32> to vector<1x1x8xf32>
    %503 = vector.shape_cast %502 : vector<1x1x8xf32> to vector<1x8xf32>
    %504 = arith.addf %501, %503 : vector<1x8xf32>
    %505 = vector.extract_strided_slice %469 {offsets = [7, 0, 0], sizes = [1, 1, 8], strides = [1, 1, 1]} : vector<16x1x8xf32> to vector<1x1x8xf32>
    %506 = vector.shape_cast %505 : vector<1x1x8xf32> to vector<1x8xf32>
    %507 = arith.addf %504, %506 : vector<1x8xf32>
    %c5_228 = arith.constant 5 : index
    %c3_229 = arith.constant 3 : index
    %c0_230 = arith.constant 0 : index
    %c0_231 = arith.constant 0 : index
    %508 = vector.load %arg6[%c5_228, %c3_229, %c0_230, %c0_231] : memref<8x8x1x8xf32, #tpu.memory_space<vmem>>, vector<1x1x1x8xf32>
    %509 = vector.shape_cast %508 : vector<1x1x1x8xf32> to vector<1x8xf32>
    %510 = vector.shape_cast %507 : vector<1x8xf32> to vector<1x1x1x8xf32>
    tpu.vector_store %arg6[%c5_228, %c3_229, %c0_230, %c0_231], %510 {strides = array<i32>} : memref<8x8x1x8xf32, #tpu.memory_space<vmem>>, vector<1x1x1x8xf32>,
    %511 = vector.extract_strided_slice %469 {offsets = [7, 0, 0], sizes = [1, 1, 8], strides = [1, 1, 1]} : vector<16x1x8xf32> to vector<1x1x8xf32>
    %512 = vector.shape_cast %511 : vector<1x1x8xf32> to vector<1x8xf32>
    %513 = vector.extract_strided_slice %469 {offsets = [8, 0, 0], sizes = [1, 1, 8], strides = [1, 1, 1]} : vector<16x1x8xf32> to vector<1x1x8xf32>
    %514 = vector.shape_cast %513 : vector<1x1x8xf32> to vector<1x8xf32>
    %515 = arith.addf %512, %514 : vector<1x8xf32>
    %516 = vector.extract_strided_slice %469 {offsets = [9, 0, 0], sizes = [1, 1, 8], strides = [1, 1, 1]} : vector<16x1x8xf32> to vector<1x1x8xf32>
    %517 = vector.shape_cast %516 : vector<1x1x8xf32> to vector<1x8xf32>
    %518 = arith.addf %515, %517 : vector<1x8xf32>
    %c5_232 = arith.constant 5 : index
    %c4_233 = arith.constant 4 : index
    %c0_234 = arith.constant 0 : index
    %c0_235 = arith.constant 0 : index
    %519 = vector.load %arg6[%c5_232, %c4_233, %c0_234, %c0_235] : memref<8x8x1x8xf32, #tpu.memory_space<vmem>>, vector<1x1x1x8xf32>
    %520 = vector.shape_cast %519 : vector<1x1x1x8xf32> to vector<1x8xf32>
    %521 = vector.shape_cast %518 : vector<1x8xf32> to vector<1x1x1x8xf32>
    tpu.vector_store %arg6[%c5_232, %c4_233, %c0_234, %c0_235], %521 {strides = array<i32>} : memref<8x8x1x8xf32, #tpu.memory_space<vmem>>, vector<1x1x1x8xf32>,
    %522 = vector.extract_strided_slice %469 {offsets = [9, 0, 0], sizes = [1, 1, 8], strides = [1, 1, 1]} : vector<16x1x8xf32> to vector<1x1x8xf32>
    %523 = vector.shape_cast %522 : vector<1x1x8xf32> to vector<1x8xf32>
    %524 = vector.extract_strided_slice %469 {offsets = [10, 0, 0], sizes = [1, 1, 8], strides = [1, 1, 1]} : vector<16x1x8xf32> to vector<1x1x8xf32>
    %525 = vector.shape_cast %524 : vector<1x1x8xf32> to vector<1x8xf32>
    %526 = arith.addf %523, %525 : vector<1x8xf32>
    %527 = vector.extract_strided_slice %469 {offsets = [11, 0, 0], sizes = [1, 1, 8], strides = [1, 1, 1]} : vector<16x1x8xf32> to vector<1x1x8xf32>
    %528 = vector.shape_cast %527 : vector<1x1x8xf32> to vector<1x8xf32>
    %529 = arith.addf %526, %528 : vector<1x8xf32>
    %c5_236 = arith.constant 5 : index
    %c5_237 = arith.constant 5 : index
    %c0_238 = arith.constant 0 : index
    %c0_239 = arith.constant 0 : index
    %530 = vector.load %arg6[%c5_236, %c5_237, %c0_238, %c0_239] : memref<8x8x1x8xf32, #tpu.memory_space<vmem>>, vector<1x1x1x8xf32>
    %531 = vector.shape_cast %530 : vector<1x1x1x8xf32> to vector<1x8xf32>
    %532 = vector.shape_cast %529 : vector<1x8xf32> to vector<1x1x1x8xf32>
    tpu.vector_store %arg6[%c5_236, %c5_237, %c0_238, %c0_239], %532 {strides = array<i32>} : memref<8x8x1x8xf32, #tpu.memory_space<vmem>>, vector<1x1x1x8xf32>,
    %533 = vector.extract_strided_slice %469 {offsets = [11, 0, 0], sizes = [1, 1, 8], strides = [1, 1, 1]} : vector<16x1x8xf32> to vector<1x1x8xf32>
    %534 = vector.shape_cast %533 : vector<1x1x8xf32> to vector<1x8xf32>
    %535 = vector.extract_strided_slice %469 {offsets = [12, 0, 0], sizes = [1, 1, 8], strides = [1, 1, 1]} : vector<16x1x8xf32> to vector<1x1x8xf32>
    %536 = vector.shape_cast %535 : vector<1x1x8xf32> to vector<1x8xf32>
    %537 = arith.addf %534, %536 : vector<1x8xf32>
    %538 = vector.extract_strided_slice %469 {offsets = [13, 0, 0], sizes = [1, 1, 8], strides = [1, 1, 1]} : vector<16x1x8xf32> to vector<1x1x8xf32>
    %539 = vector.shape_cast %538 : vector<1x1x8xf32> to vector<1x8xf32>
    %540 = arith.addf %537, %539 : vector<1x8xf32>
    %c5_240 = arith.constant 5 : index
    %c6_241 = arith.constant 6 : index
    %c0_242 = arith.constant 0 : index
    %c0_243 = arith.constant 0 : index
    %541 = vector.load %arg6[%c5_240, %c6_241, %c0_242, %c0_243] : memref<8x8x1x8xf32, #tpu.memory_space<vmem>>, vector<1x1x1x8xf32>
    %542 = vector.shape_cast %541 : vector<1x1x1x8xf32> to vector<1x8xf32>
    %543 = vector.shape_cast %540 : vector<1x8xf32> to vector<1x1x1x8xf32>
    tpu.vector_store %arg6[%c5_240, %c6_241, %c0_242, %c0_243], %543 {strides = array<i32>} : memref<8x8x1x8xf32, #tpu.memory_space<vmem>>, vector<1x1x1x8xf32>,
    %544 = vector.extract_strided_slice %469 {offsets = [13, 0, 0], sizes = [1, 1, 8], strides = [1, 1, 1]} : vector<16x1x8xf32> to vector<1x1x8xf32>
    %545 = vector.shape_cast %544 : vector<1x1x8xf32> to vector<1x8xf32>
    %546 = vector.extract_strided_slice %469 {offsets = [14, 0, 0], sizes = [1, 1, 8], strides = [1, 1, 1]} : vector<16x1x8xf32> to vector<1x1x8xf32>
    %547 = vector.shape_cast %546 : vector<1x1x8xf32> to vector<1x8xf32>
    %548 = arith.addf %545, %547 : vector<1x8xf32>
    %549 = vector.extract_strided_slice %469 {offsets = [15, 0, 0], sizes = [1, 1, 8], strides = [1, 1, 1]} : vector<16x1x8xf32> to vector<1x1x8xf32>
    %550 = vector.shape_cast %549 : vector<1x1x8xf32> to vector<1x8xf32>
    %551 = arith.addf %548, %550 : vector<1x8xf32>
    %c5_244 = arith.constant 5 : index
    %c7_245 = arith.constant 7 : index
    %c0_246 = arith.constant 0 : index
    %c0_247 = arith.constant 0 : index
    %552 = vector.load %arg6[%c5_244, %c7_245, %c0_246, %c0_247] : memref<8x8x1x8xf32, #tpu.memory_space<vmem>>, vector<1x1x1x8xf32>
    %553 = vector.shape_cast %552 : vector<1x1x1x8xf32> to vector<1x8xf32>
    %554 = vector.shape_cast %551 : vector<1x8xf32> to vector<1x1x1x8xf32>
    tpu.vector_store %arg6[%c5_244, %c7_245, %c0_246, %c0_247], %554 {strides = array<i32>} : memref<8x8x1x8xf32, #tpu.memory_space<vmem>>, vector<1x1x1x8xf32>,
    %c11_248 = arith.constant 11 : index
    %c0_249 = arith.constant 0 : index
    %c0_250 = arith.constant 0 : index
    %c0_251 = arith.constant 0 : index
    %555 = vector.load %arg1[%c11_248, %c0_249, %c0_250, %c0_251] : memref<16x16x1x8xf32, #tpu.memory_space<vmem>>, vector<1x16x1x8xf32>
    %556 = vector.shape_cast %555 : vector<1x16x1x8xf32> to vector<16x1x8xf32>
    %c12 = arith.constant 12 : index
    %c0_252 = arith.constant 0 : index
    %c0_253 = arith.constant 0 : index
    %c0_254 = arith.constant 0 : index
    %557 = vector.load %arg1[%c12, %c0_252, %c0_253, %c0_254] : memref<16x16x1x8xf32, #tpu.memory_space<vmem>>, vector<1x16x1x8xf32>
    %558 = vector.shape_cast %557 : vector<1x16x1x8xf32> to vector<16x1x8xf32>
    %559 = arith.addf %556, %558 : vector<16x1x8xf32>
    %c13 = arith.constant 13 : index
    %c0_255 = arith.constant 0 : index
    %c0_256 = arith.constant 0 : index
    %c0_257 = arith.constant 0 : index
    %560 = vector.load %arg1[%c13, %c0_255, %c0_256, %c0_257] : memref<16x16x1x8xf32, #tpu.memory_space<vmem>>, vector<1x16x1x8xf32>
    %561 = vector.shape_cast %560 : vector<1x16x1x8xf32> to vector<16x1x8xf32>
    %562 = arith.addf %559, %561 : vector<16x1x8xf32>
    %563 = vector.extract_strided_slice %562 {offsets = [0, 0, 0], sizes = [1, 1, 8], strides = [1, 1, 1]} : vector<16x1x8xf32> to vector<1x1x8xf32>
    %564 = vector.shape_cast %563 : vector<1x1x8xf32> to vector<1x8xf32>
    %565 = vector.extract_strided_slice %562 {offsets = [1, 0, 0], sizes = [1, 1, 8], strides = [1, 1, 1]} : vector<16x1x8xf32> to vector<1x1x8xf32>
    %566 = vector.shape_cast %565 : vector<1x1x8xf32> to vector<1x8xf32>
    %567 = arith.addf %564, %566 : vector<1x8xf32>
    %c6_258 = arith.constant 6 : index
    %c0_259 = arith.constant 0 : index
    %c0_260 = arith.constant 0 : index
    %c0_261 = arith.constant 0 : index
    %568 = vector.load %arg6[%c6_258, %c0_259, %c0_260, %c0_261] : memref<8x8x1x8xf32, #tpu.memory_space<vmem>>, vector<1x1x1x8xf32>
    %569 = vector.shape_cast %568 : vector<1x1x1x8xf32> to vector<1x8xf32>
    %570 = vector.shape_cast %567 : vector<1x8xf32> to vector<1x1x1x8xf32>
    tpu.vector_store %arg6[%c6_258, %c0_259, %c0_260, %c0_261], %570 {strides = array<i32>} : memref<8x8x1x8xf32, #tpu.memory_space<vmem>>, vector<1x1x1x8xf32>,
    %571 = vector.extract_strided_slice %562 {offsets = [1, 0, 0], sizes = [1, 1, 8], strides = [1, 1, 1]} : vector<16x1x8xf32> to vector<1x1x8xf32>
    %572 = vector.shape_cast %571 : vector<1x1x8xf32> to vector<1x8xf32>
    %573 = vector.extract_strided_slice %562 {offsets = [2, 0, 0], sizes = [1, 1, 8], strides = [1, 1, 1]} : vector<16x1x8xf32> to vector<1x1x8xf32>
    %574 = vector.shape_cast %573 : vector<1x1x8xf32> to vector<1x8xf32>
    %575 = arith.addf %572, %574 : vector<1x8xf32>
    %576 = vector.extract_strided_slice %562 {offsets = [3, 0, 0], sizes = [1, 1, 8], strides = [1, 1, 1]} : vector<16x1x8xf32> to vector<1x1x8xf32>
    %577 = vector.shape_cast %576 : vector<1x1x8xf32> to vector<1x8xf32>
    %578 = arith.addf %575, %577 : vector<1x8xf32>
    %c6_262 = arith.constant 6 : index
    %c1_263 = arith.constant 1 : index
    %c0_264 = arith.constant 0 : index
    %c0_265 = arith.constant 0 : index
    %579 = vector.load %arg6[%c6_262, %c1_263, %c0_264, %c0_265] : memref<8x8x1x8xf32, #tpu.memory_space<vmem>>, vector<1x1x1x8xf32>
    %580 = vector.shape_cast %579 : vector<1x1x1x8xf32> to vector<1x8xf32>
    %581 = vector.shape_cast %578 : vector<1x8xf32> to vector<1x1x1x8xf32>
    tpu.vector_store %arg6[%c6_262, %c1_263, %c0_264, %c0_265], %581 {strides = array<i32>} : memref<8x8x1x8xf32, #tpu.memory_space<vmem>>, vector<1x1x1x8xf32>,
    %582 = vector.extract_strided_slice %562 {offsets = [3, 0, 0], sizes = [1, 1, 8], strides = [1, 1, 1]} : vector<16x1x8xf32> to vector<1x1x8xf32>
    %583 = vector.shape_cast %582 : vector<1x1x8xf32> to vector<1x8xf32>
    %584 = vector.extract_strided_slice %562 {offsets = [4, 0, 0], sizes = [1, 1, 8], strides = [1, 1, 1]} : vector<16x1x8xf32> to vector<1x1x8xf32>
    %585 = vector.shape_cast %584 : vector<1x1x8xf32> to vector<1x8xf32>
    %586 = arith.addf %583, %585 : vector<1x8xf32>
    %587 = vector.extract_strided_slice %562 {offsets = [5, 0, 0], sizes = [1, 1, 8], strides = [1, 1, 1]} : vector<16x1x8xf32> to vector<1x1x8xf32>
    %588 = vector.shape_cast %587 : vector<1x1x8xf32> to vector<1x8xf32>
    %589 = arith.addf %586, %588 : vector<1x8xf32>
    %c6_266 = arith.constant 6 : index
    %c2_267 = arith.constant 2 : index
    %c0_268 = arith.constant 0 : index
    %c0_269 = arith.constant 0 : index
    %590 = vector.load %arg6[%c6_266, %c2_267, %c0_268, %c0_269] : memref<8x8x1x8xf32, #tpu.memory_space<vmem>>, vector<1x1x1x8xf32>
    %591 = vector.shape_cast %590 : vector<1x1x1x8xf32> to vector<1x8xf32>
    %592 = vector.shape_cast %589 : vector<1x8xf32> to vector<1x1x1x8xf32>
    tpu.vector_store %arg6[%c6_266, %c2_267, %c0_268, %c0_269], %592 {strides = array<i32>} : memref<8x8x1x8xf32, #tpu.memory_space<vmem>>, vector<1x1x1x8xf32>,
    %593 = vector.extract_strided_slice %562 {offsets = [5, 0, 0], sizes = [1, 1, 8], strides = [1, 1, 1]} : vector<16x1x8xf32> to vector<1x1x8xf32>
    %594 = vector.shape_cast %593 : vector<1x1x8xf32> to vector<1x8xf32>
    %595 = vector.extract_strided_slice %562 {offsets = [6, 0, 0], sizes = [1, 1, 8], strides = [1, 1, 1]} : vector<16x1x8xf32> to vector<1x1x8xf32>
    %596 = vector.shape_cast %595 : vector<1x1x8xf32> to vector<1x8xf32>
    %597 = arith.addf %594, %596 : vector<1x8xf32>
    %598 = vector.extract_strided_slice %562 {offsets = [7, 0, 0], sizes = [1, 1, 8], strides = [1, 1, 1]} : vector<16x1x8xf32> to vector<1x1x8xf32>
    %599 = vector.shape_cast %598 : vector<1x1x8xf32> to vector<1x8xf32>
    %600 = arith.addf %597, %599 : vector<1x8xf32>
    %c6_270 = arith.constant 6 : index
    %c3_271 = arith.constant 3 : index
    %c0_272 = arith.constant 0 : index
    %c0_273 = arith.constant 0 : index
    %601 = vector.load %arg6[%c6_270, %c3_271, %c0_272, %c0_273] : memref<8x8x1x8xf32, #tpu.memory_space<vmem>>, vector<1x1x1x8xf32>
    %602 = vector.shape_cast %601 : vector<1x1x1x8xf32> to vector<1x8xf32>
    %603 = vector.shape_cast %600 : vector<1x8xf32> to vector<1x1x1x8xf32>
    tpu.vector_store %arg6[%c6_270, %c3_271, %c0_272, %c0_273], %603 {strides = array<i32>} : memref<8x8x1x8xf32, #tpu.memory_space<vmem>>, vector<1x1x1x8xf32>,
    %604 = vector.extract_strided_slice %562 {offsets = [7, 0, 0], sizes = [1, 1, 8], strides = [1, 1, 1]} : vector<16x1x8xf32> to vector<1x1x8xf32>
    %605 = vector.shape_cast %604 : vector<1x1x8xf32> to vector<1x8xf32>
    %606 = vector.extract_strided_slice %562 {offsets = [8, 0, 0], sizes = [1, 1, 8], strides = [1, 1, 1]} : vector<16x1x8xf32> to vector<1x1x8xf32>
    %607 = vector.shape_cast %606 : vector<1x1x8xf32> to vector<1x8xf32>
    %608 = arith.addf %605, %607 : vector<1x8xf32>
    %609 = vector.extract_strided_slice %562 {offsets = [9, 0, 0], sizes = [1, 1, 8], strides = [1, 1, 1]} : vector<16x1x8xf32> to vector<1x1x8xf32>
    %610 = vector.shape_cast %609 : vector<1x1x8xf32> to vector<1x8xf32>
    %611 = arith.addf %608, %610 : vector<1x8xf32>
    %c6_274 = arith.constant 6 : index
    %c4_275 = arith.constant 4 : index
    %c0_276 = arith.constant 0 : index
    %c0_277 = arith.constant 0 : index
    %612 = vector.load %arg6[%c6_274, %c4_275, %c0_276, %c0_277] : memref<8x8x1x8xf32, #tpu.memory_space<vmem>>, vector<1x1x1x8xf32>
    %613 = vector.shape_cast %612 : vector<1x1x1x8xf32> to vector<1x8xf32>
    %614 = vector.shape_cast %611 : vector<1x8xf32> to vector<1x1x1x8xf32>
    tpu.vector_store %arg6[%c6_274, %c4_275, %c0_276, %c0_277], %614 {strides = array<i32>} : memref<8x8x1x8xf32, #tpu.memory_space<vmem>>, vector<1x1x1x8xf32>,
    %615 = vector.extract_strided_slice %562 {offsets = [9, 0, 0], sizes = [1, 1, 8], strides = [1, 1, 1]} : vector<16x1x8xf32> to vector<1x1x8xf32>
    %616 = vector.shape_cast %615 : vector<1x1x8xf32> to vector<1x8xf32>
    %617 = vector.extract_strided_slice %562 {offsets = [10, 0, 0], sizes = [1, 1, 8], strides = [1, 1, 1]} : vector<16x1x8xf32> to vector<1x1x8xf32>
    %618 = vector.shape_cast %617 : vector<1x1x8xf32> to vector<1x8xf32>
    %619 = arith.addf %616, %618 : vector<1x8xf32>
    %620 = vector.extract_strided_slice %562 {offsets = [11, 0, 0], sizes = [1, 1, 8], strides = [1, 1, 1]} : vector<16x1x8xf32> to vector<1x1x8xf32>
    %621 = vector.shape_cast %620 : vector<1x1x8xf32> to vector<1x8xf32>
    %622 = arith.addf %619, %621 : vector<1x8xf32>
    %c6_278 = arith.constant 6 : index
    %c5_279 = arith.constant 5 : index
    %c0_280 = arith.constant 0 : index
    %c0_281 = arith.constant 0 : index
    %623 = vector.load %arg6[%c6_278, %c5_279, %c0_280, %c0_281] : memref<8x8x1x8xf32, #tpu.memory_space<vmem>>, vector<1x1x1x8xf32>
    %624 = vector.shape_cast %623 : vector<1x1x1x8xf32> to vector<1x8xf32>
    %625 = vector.shape_cast %622 : vector<1x8xf32> to vector<1x1x1x8xf32>
    tpu.vector_store %arg6[%c6_278, %c5_279, %c0_280, %c0_281], %625 {strides = array<i32>} : memref<8x8x1x8xf32, #tpu.memory_space<vmem>>, vector<1x1x1x8xf32>,
    %626 = vector.extract_strided_slice %562 {offsets = [11, 0, 0], sizes = [1, 1, 8], strides = [1, 1, 1]} : vector<16x1x8xf32> to vector<1x1x8xf32>
    %627 = vector.shape_cast %626 : vector<1x1x8xf32> to vector<1x8xf32>
    %628 = vector.extract_strided_slice %562 {offsets = [12, 0, 0], sizes = [1, 1, 8], strides = [1, 1, 1]} : vector<16x1x8xf32> to vector<1x1x8xf32>
    %629 = vector.shape_cast %628 : vector<1x1x8xf32> to vector<1x8xf32>
    %630 = arith.addf %627, %629 : vector<1x8xf32>
    %631 = vector.extract_strided_slice %562 {offsets = [13, 0, 0], sizes = [1, 1, 8], strides = [1, 1, 1]} : vector<16x1x8xf32> to vector<1x1x8xf32>
    %632 = vector.shape_cast %631 : vector<1x1x8xf32> to vector<1x8xf32>
    %633 = arith.addf %630, %632 : vector<1x8xf32>
    %c6_282 = arith.constant 6 : index
    %c6_283 = arith.constant 6 : index
    %c0_284 = arith.constant 0 : index
    %c0_285 = arith.constant 0 : index
    %634 = vector.load %arg6[%c6_282, %c6_283, %c0_284, %c0_285] : memref<8x8x1x8xf32, #tpu.memory_space<vmem>>, vector<1x1x1x8xf32>
    %635 = vector.shape_cast %634 : vector<1x1x1x8xf32> to vector<1x8xf32>
    %636 = vector.shape_cast %633 : vector<1x8xf32> to vector<1x1x1x8xf32>
    tpu.vector_store %arg6[%c6_282, %c6_283, %c0_284, %c0_285], %636 {strides = array<i32>} : memref<8x8x1x8xf32, #tpu.memory_space<vmem>>, vector<1x1x1x8xf32>,
    %637 = vector.extract_strided_slice %562 {offsets = [13, 0, 0], sizes = [1, 1, 8], strides = [1, 1, 1]} : vector<16x1x8xf32> to vector<1x1x8xf32>
    %638 = vector.shape_cast %637 : vector<1x1x8xf32> to vector<1x8xf32>
    %639 = vector.extract_strided_slice %562 {offsets = [14, 0, 0], sizes = [1, 1, 8], strides = [1, 1, 1]} : vector<16x1x8xf32> to vector<1x1x8xf32>
    %640 = vector.shape_cast %639 : vector<1x1x8xf32> to vector<1x8xf32>
    %641 = arith.addf %638, %640 : vector<1x8xf32>
    %642 = vector.extract_strided_slice %562 {offsets = [15, 0, 0], sizes = [1, 1, 8], strides = [1, 1, 1]} : vector<16x1x8xf32> to vector<1x1x8xf32>
    %643 = vector.shape_cast %642 : vector<1x1x8xf32> to vector<1x8xf32>
    %644 = arith.addf %641, %643 : vector<1x8xf32>
    %c6_286 = arith.constant 6 : index
    %c7_287 = arith.constant 7 : index
    %c0_288 = arith.constant 0 : index
    %c0_289 = arith.constant 0 : index
    %645 = vector.load %arg6[%c6_286, %c7_287, %c0_288, %c0_289] : memref<8x8x1x8xf32, #tpu.memory_space<vmem>>, vector<1x1x1x8xf32>
    %646 = vector.shape_cast %645 : vector<1x1x1x8xf32> to vector<1x8xf32>
    %647 = vector.shape_cast %644 : vector<1x8xf32> to vector<1x1x1x8xf32>
    tpu.vector_store %arg6[%c6_286, %c7_287, %c0_288, %c0_289], %647 {strides = array<i32>} : memref<8x8x1x8xf32, #tpu.memory_space<vmem>>, vector<1x1x1x8xf32>,
    %c13_290 = arith.constant 13 : index
    %c0_291 = arith.constant 0 : index
    %c0_292 = arith.constant 0 : index
    %c0_293 = arith.constant 0 : index
    %648 = vector.load %arg1[%c13_290, %c0_291, %c0_292, %c0_293] : memref<16x16x1x8xf32, #tpu.memory_space<vmem>>, vector<1x16x1x8xf32>
    %649 = vector.shape_cast %648 : vector<1x16x1x8xf32> to vector<16x1x8xf32>
    %c14 = arith.constant 14 : index
    %c0_294 = arith.constant 0 : index
    %c0_295 = arith.constant 0 : index
    %c0_296 = arith.constant 0 : index
    %650 = vector.load %arg1[%c14, %c0_294, %c0_295, %c0_296] : memref<16x16x1x8xf32, #tpu.memory_space<vmem>>, vector<1x16x1x8xf32>
    %651 = vector.shape_cast %650 : vector<1x16x1x8xf32> to vector<16x1x8xf32>
    %652 = arith.addf %649, %651 : vector<16x1x8xf32>
    %c15 = arith.constant 15 : index
    %c0_297 = arith.constant 0 : index
    %c0_298 = arith.constant 0 : index
    %c0_299 = arith.constant 0 : index
    %653 = vector.load %arg1[%c15, %c0_297, %c0_298, %c0_299] : memref<16x16x1x8xf32, #tpu.memory_space<vmem>>, vector<1x16x1x8xf32>
    %654 = vector.shape_cast %653 : vector<1x16x1x8xf32> to vector<16x1x8xf32>
    %655 = arith.addf %652, %654 : vector<16x1x8xf32>
    %656 = vector.extract_strided_slice %655 {offsets = [0, 0, 0], sizes = [1, 1, 8], strides = [1, 1, 1]} : vector<16x1x8xf32> to vector<1x1x8xf32>
    %657 = vector.shape_cast %656 : vector<1x1x8xf32> to vector<1x8xf32>
    %658 = vector.extract_strided_slice %655 {offsets = [1, 0, 0], sizes = [1, 1, 8], strides = [1, 1, 1]} : vector<16x1x8xf32> to vector<1x1x8xf32>
    %659 = vector.shape_cast %658 : vector<1x1x8xf32> to vector<1x8xf32>
    %660 = arith.addf %657, %659 : vector<1x8xf32>
    %c7_300 = arith.constant 7 : index
    %c0_301 = arith.constant 0 : index
    %c0_302 = arith.constant 0 : index
    %c0_303 = arith.constant 0 : index
    %661 = vector.load %arg6[%c7_300, %c0_301, %c0_302, %c0_303] : memref<8x8x1x8xf32, #tpu.memory_space<vmem>>, vector<1x1x1x8xf32>
    %662 = vector.shape_cast %661 : vector<1x1x1x8xf32> to vector<1x8xf32>
    %663 = vector.shape_cast %660 : vector<1x8xf32> to vector<1x1x1x8xf32>
    tpu.vector_store %arg6[%c7_300, %c0_301, %c0_302, %c0_303], %663 {strides = array<i32>} : memref<8x8x1x8xf32, #tpu.memory_space<vmem>>, vector<1x1x1x8xf32>,
    %664 = vector.extract_strided_slice %655 {offsets = [1, 0, 0], sizes = [1, 1, 8], strides = [1, 1, 1]} : vector<16x1x8xf32> to vector<1x1x8xf32>
    %665 = vector.shape_cast %664 : vector<1x1x8xf32> to vector<1x8xf32>
    %666 = vector.extract_strided_slice %655 {offsets = [2, 0, 0], sizes = [1, 1, 8], strides = [1, 1, 1]} : vector<16x1x8xf32> to vector<1x1x8xf32>
    %667 = vector.shape_cast %666 : vector<1x1x8xf32> to vector<1x8xf32>
    %668 = arith.addf %665, %667 : vector<1x8xf32>
    %669 = vector.extract_strided_slice %655 {offsets = [3, 0, 0], sizes = [1, 1, 8], strides = [1, 1, 1]} : vector<16x1x8xf32> to vector<1x1x8xf32>
    %670 = vector.shape_cast %669 : vector<1x1x8xf32> to vector<1x8xf32>
    %671 = arith.addf %668, %670 : vector<1x8xf32>
    %c7_304 = arith.constant 7 : index
    %c1_305 = arith.constant 1 : index
    %c0_306 = arith.constant 0 : index
    %c0_307 = arith.constant 0 : index
    %672 = vector.load %arg6[%c7_304, %c1_305, %c0_306, %c0_307] : memref<8x8x1x8xf32, #tpu.memory_space<vmem>>, vector<1x1x1x8xf32>
    %673 = vector.shape_cast %672 : vector<1x1x1x8xf32> to vector<1x8xf32>
    %674 = vector.shape_cast %671 : vector<1x8xf32> to vector<1x1x1x8xf32>
    tpu.vector_store %arg6[%c7_304, %c1_305, %c0_306, %c0_307], %674 {strides = array<i32>} : memref<8x8x1x8xf32, #tpu.memory_space<vmem>>, vector<1x1x1x8xf32>,
    %675 = vector.extract_strided_slice %655 {offsets = [3, 0, 0], sizes = [1, 1, 8], strides = [1, 1, 1]} : vector<16x1x8xf32> to vector<1x1x8xf32>
    %676 = vector.shape_cast %675 : vector<1x1x8xf32> to vector<1x8xf32>
    %677 = vector.extract_strided_slice %655 {offsets = [4, 0, 0], sizes = [1, 1, 8], strides = [1, 1, 1]} : vector<16x1x8xf32> to vector<1x1x8xf32>
    %678 = vector.shape_cast %677 : vector<1x1x8xf32> to vector<1x8xf32>
    %679 = arith.addf %676, %678 : vector<1x8xf32>
    %680 = vector.extract_strided_slice %655 {offsets = [5, 0, 0], sizes = [1, 1, 8], strides = [1, 1, 1]} : vector<16x1x8xf32> to vector<1x1x8xf32>
    %681 = vector.shape_cast %680 : vector<1x1x8xf32> to vector<1x8xf32>
    %682 = arith.addf %679, %681 : vector<1x8xf32>
    %c7_308 = arith.constant 7 : index
    %c2_309 = arith.constant 2 : index
    %c0_310 = arith.constant 0 : index
    %c0_311 = arith.constant 0 : index
    %683 = vector.load %arg6[%c7_308, %c2_309, %c0_310, %c0_311] : memref<8x8x1x8xf32, #tpu.memory_space<vmem>>, vector<1x1x1x8xf32>
    %684 = vector.shape_cast %683 : vector<1x1x1x8xf32> to vector<1x8xf32>
    %685 = vector.shape_cast %682 : vector<1x8xf32> to vector<1x1x1x8xf32>
    tpu.vector_store %arg6[%c7_308, %c2_309, %c0_310, %c0_311], %685 {strides = array<i32>} : memref<8x8x1x8xf32, #tpu.memory_space<vmem>>, vector<1x1x1x8xf32>,
    %686 = vector.extract_strided_slice %655 {offsets = [5, 0, 0], sizes = [1, 1, 8], strides = [1, 1, 1]} : vector<16x1x8xf32> to vector<1x1x8xf32>
    %687 = vector.shape_cast %686 : vector<1x1x8xf32> to vector<1x8xf32>
    %688 = vector.extract_strided_slice %655 {offsets = [6, 0, 0], sizes = [1, 1, 8], strides = [1, 1, 1]} : vector<16x1x8xf32> to vector<1x1x8xf32>
    %689 = vector.shape_cast %688 : vector<1x1x8xf32> to vector<1x8xf32>
    %690 = arith.addf %687, %689 : vector<1x8xf32>
    %691 = vector.extract_strided_slice %655 {offsets = [7, 0, 0], sizes = [1, 1, 8], strides = [1, 1, 1]} : vector<16x1x8xf32> to vector<1x1x8xf32>
    %692 = vector.shape_cast %691 : vector<1x1x8xf32> to vector<1x8xf32>
    %693 = arith.addf %690, %692 : vector<1x8xf32>
    %c7_312 = arith.constant 7 : index
    %c3_313 = arith.constant 3 : index
    %c0_314 = arith.constant 0 : index
    %c0_315 = arith.constant 0 : index
    %694 = vector.load %arg6[%c7_312, %c3_313, %c0_314, %c0_315] : memref<8x8x1x8xf32, #tpu.memory_space<vmem>>, vector<1x1x1x8xf32>
    %695 = vector.shape_cast %694 : vector<1x1x1x8xf32> to vector<1x8xf32>
    %696 = vector.shape_cast %693 : vector<1x8xf32> to vector<1x1x1x8xf32>
    tpu.vector_store %arg6[%c7_312, %c3_313, %c0_314, %c0_315], %696 {strides = array<i32>} : memref<8x8x1x8xf32, #tpu.memory_space<vmem>>, vector<1x1x1x8xf32>,
    %697 = vector.extract_strided_slice %655 {offsets = [7, 0, 0], sizes = [1, 1, 8], strides = [1, 1, 1]} : vector<16x1x8xf32> to vector<1x1x8xf32>
    %698 = vector.shape_cast %697 : vector<1x1x8xf32> to vector<1x8xf32>
    %699 = vector.extract_strided_slice %655 {offsets = [8, 0, 0], sizes = [1, 1, 8], strides = [1, 1, 1]} : vector<16x1x8xf32> to vector<1x1x8xf32>
    %700 = vector.shape_cast %699 : vector<1x1x8xf32> to vector<1x8xf32>
    %701 = arith.addf %698, %700 : vector<1x8xf32>
    %702 = vector.extract_strided_slice %655 {offsets = [9, 0, 0], sizes = [1, 1, 8], strides = [1, 1, 1]} : vector<16x1x8xf32> to vector<1x1x8xf32>
    %703 = vector.shape_cast %702 : vector<1x1x8xf32> to vector<1x8xf32>
    %704 = arith.addf %701, %703 : vector<1x8xf32>
    %c7_316 = arith.constant 7 : index
    %c4_317 = arith.constant 4 : index
    %c0_318 = arith.constant 0 : index
    %c0_319 = arith.constant 0 : index
    %705 = vector.load %arg6[%c7_316, %c4_317, %c0_318, %c0_319] : memref<8x8x1x8xf32, #tpu.memory_space<vmem>>, vector<1x1x1x8xf32>
    %706 = vector.shape_cast %705 : vector<1x1x1x8xf32> to vector<1x8xf32>
    %707 = vector.shape_cast %704 : vector<1x8xf32> to vector<1x1x1x8xf32>
    tpu.vector_store %arg6[%c7_316, %c4_317, %c0_318, %c0_319], %707 {strides = array<i32>} : memref<8x8x1x8xf32, #tpu.memory_space<vmem>>, vector<1x1x1x8xf32>,
    %708 = vector.extract_strided_slice %655 {offsets = [9, 0, 0], sizes = [1, 1, 8], strides = [1, 1, 1]} : vector<16x1x8xf32> to vector<1x1x8xf32>
    %709 = vector.shape_cast %708 : vector<1x1x8xf32> to vector<1x8xf32>
    %710 = vector.extract_strided_slice %655 {offsets = [10, 0, 0], sizes = [1, 1, 8], strides = [1, 1, 1]} : vector<16x1x8xf32> to vector<1x1x8xf32>
    %711 = vector.shape_cast %710 : vector<1x1x8xf32> to vector<1x8xf32>
    %712 = arith.addf %709, %711 : vector<1x8xf32>
    %713 = vector.extract_strided_slice %655 {offsets = [11, 0, 0], sizes = [1, 1, 8], strides = [1, 1, 1]} : vector<16x1x8xf32> to vector<1x1x8xf32>
    %714 = vector.shape_cast %713 : vector<1x1x8xf32> to vector<1x8xf32>
    %715 = arith.addf %712, %714 : vector<1x8xf32>
    %c7_320 = arith.constant 7 : index
    %c5_321 = arith.constant 5 : index
    %c0_322 = arith.constant 0 : index
    %c0_323 = arith.constant 0 : index
    %716 = vector.load %arg6[%c7_320, %c5_321, %c0_322, %c0_323] : memref<8x8x1x8xf32, #tpu.memory_space<vmem>>, vector<1x1x1x8xf32>
    %717 = vector.shape_cast %716 : vector<1x1x1x8xf32> to vector<1x8xf32>
    %718 = vector.shape_cast %715 : vector<1x8xf32> to vector<1x1x1x8xf32>
    tpu.vector_store %arg6[%c7_320, %c5_321, %c0_322, %c0_323], %718 {strides = array<i32>} : memref<8x8x1x8xf32, #tpu.memory_space<vmem>>, vector<1x1x1x8xf32>,
    %719 = vector.extract_strided_slice %655 {offsets = [11, 0, 0], sizes = [1, 1, 8], strides = [1, 1, 1]} : vector<16x1x8xf32> to vector<1x1x8xf32>
    %720 = vector.shape_cast %719 : vector<1x1x8xf32> to vector<1x8xf32>
    %721 = vector.extract_strided_slice %655 {offsets = [12, 0, 0], sizes = [1, 1, 8], strides = [1, 1, 1]} : vector<16x1x8xf32> to vector<1x1x8xf32>
    %722 = vector.shape_cast %721 : vector<1x1x8xf32> to vector<1x8xf32>
    %723 = arith.addf %720, %722 : vector<1x8xf32>
    %724 = vector.extract_strided_slice %655 {offsets = [13, 0, 0], sizes = [1, 1, 8], strides = [1, 1, 1]} : vector<16x1x8xf32> to vector<1x1x8xf32>
    %725 = vector.shape_cast %724 : vector<1x1x8xf32> to vector<1x8xf32>
    %726 = arith.addf %723, %725 : vector<1x8xf32>
    %c7_324 = arith.constant 7 : index
    %c6_325 = arith.constant 6 : index
    %c0_326 = arith.constant 0 : index
    %c0_327 = arith.constant 0 : index
    %727 = vector.load %arg6[%c7_324, %c6_325, %c0_326, %c0_327] : memref<8x8x1x8xf32, #tpu.memory_space<vmem>>, vector<1x1x1x8xf32>
    %728 = vector.shape_cast %727 : vector<1x1x1x8xf32> to vector<1x8xf32>
    %729 = vector.shape_cast %726 : vector<1x8xf32> to vector<1x1x1x8xf32>
    tpu.vector_store %arg6[%c7_324, %c6_325, %c0_326, %c0_327], %729 {strides = array<i32>} : memref<8x8x1x8xf32, #tpu.memory_space<vmem>>, vector<1x1x1x8xf32>,
    %730 = vector.extract_strided_slice %655 {offsets = [13, 0, 0], sizes = [1, 1, 8], strides = [1, 1, 1]} : vector<16x1x8xf32> to vector<1x1x8xf32>
    %731 = vector.shape_cast %730 : vector<1x1x8xf32> to vector<1x8xf32>
    %732 = vector.extract_strided_slice %655 {offsets = [14, 0, 0], sizes = [1, 1, 8], strides = [1, 1, 1]} : vector<16x1x8xf32> to vector<1x1x8xf32>
    %733 = vector.shape_cast %732 : vector<1x1x8xf32> to vector<1x8xf32>
    %734 = arith.addf %731, %733 : vector<1x8xf32>
    %735 = vector.extract_strided_slice %655 {offsets = [15, 0, 0], sizes = [1, 1, 8], strides = [1, 1, 1]} : vector<16x1x8xf32> to vector<1x1x8xf32>
    %736 = vector.shape_cast %735 : vector<1x1x8xf32> to vector<1x8xf32>
    %737 = arith.addf %734, %736 : vector<1x8xf32>
    %c7_328 = arith.constant 7 : index
    %c7_329 = arith.constant 7 : index
    %c0_330 = arith.constant 0 : index
    %c0_331 = arith.constant 0 : index
    %738 = vector.load %arg6[%c7_328, %c7_329, %c0_330, %c0_331] : memref<8x8x1x8xf32, #tpu.memory_space<vmem>>, vector<1x1x1x8xf32>
    %739 = vector.shape_cast %738 : vector<1x1x1x8xf32> to vector<1x8xf32>
    %740 = vector.shape_cast %737 : vector<1x8xf32> to vector<1x1x1x8xf32>
    tpu.vector_store %arg6[%c7_328, %c7_329, %c0_330, %c0_331], %740 {strides = array<i32>} : memref<8x8x1x8xf32, #tpu.memory_space<vmem>>, vector<1x1x1x8xf32>,
    %c0_332 = arith.constant 0 : index
    %c0_333 = arith.constant 0 : index
    %c0_334 = arith.constant 0 : index
    %c0_335 = arith.constant 0 : index
    %741 = vector.load %arg6[%c0_332, %c0_333, %c0_334, %c0_335] : memref<8x8x1x8xf32, #tpu.memory_space<vmem>>, vector<1x8x1x8xf32>
    %742 = vector.shape_cast %741 : vector<1x8x1x8xf32> to vector<8x1x8xf32>
    %c1_336 = arith.constant 1 : index
    %c0_337 = arith.constant 0 : index
    %c0_338 = arith.constant 0 : index
    %c0_339 = arith.constant 0 : index
    %743 = vector.load %arg6[%c1_336, %c0_337, %c0_338, %c0_339] : memref<8x8x1x8xf32, #tpu.memory_space<vmem>>, vector<1x8x1x8xf32>
    %744 = vector.shape_cast %743 : vector<1x8x1x8xf32> to vector<8x1x8xf32>
    %745 = arith.maximumf %742, %744 : vector<8x1x8xf32>
    %746 = vector.extract_strided_slice %745 {offsets = [0, 0, 0], sizes = [1, 1, 8], strides = [1, 1, 1]} : vector<8x1x8xf32> to vector<1x1x8xf32>
    %747 = vector.shape_cast %746 : vector<1x1x8xf32> to vector<1x8xf32>
    %748 = vector.extract_strided_slice %745 {offsets = [1, 0, 0], sizes = [1, 1, 8], strides = [1, 1, 1]} : vector<8x1x8xf32> to vector<1x1x8xf32>
    %749 = vector.shape_cast %748 : vector<1x1x8xf32> to vector<1x8xf32>
    %750 = arith.maximumf %747, %749 : vector<1x8xf32>
    %c0_340 = arith.constant 0 : index
    %c0_341 = arith.constant 0 : index
    %c0_342 = arith.constant 0 : index
    %c0_343 = arith.constant 0 : index
    %751 = vector.load %arg2[%c0_340, %c0_341, %c0_342, %c0_343] : memref<4x4x1x8xf32, #tpu.memory_space<vmem>>, vector<1x1x1x8xf32>
    %752 = vector.shape_cast %751 : vector<1x1x1x8xf32> to vector<1x8xf32>
    %753 = vector.shape_cast %750 : vector<1x8xf32> to vector<1x1x1x8xf32>
    tpu.vector_store %arg2[%c0_340, %c0_341, %c0_342, %c0_343], %753 {strides = array<i32>} : memref<4x4x1x8xf32, #tpu.memory_space<vmem>>, vector<1x1x1x8xf32>,
    %754 = vector.extract_strided_slice %745 {offsets = [1, 0, 0], sizes = [1, 1, 8], strides = [1, 1, 1]} : vector<8x1x8xf32> to vector<1x1x8xf32>
    %755 = vector.shape_cast %754 : vector<1x1x8xf32> to vector<1x8xf32>
    %756 = vector.extract_strided_slice %745 {offsets = [2, 0, 0], sizes = [1, 1, 8], strides = [1, 1, 1]} : vector<8x1x8xf32> to vector<1x1x8xf32>
    %757 = vector.shape_cast %756 : vector<1x1x8xf32> to vector<1x8xf32>
    %758 = arith.maximumf %755, %757 : vector<1x8xf32>
    %759 = vector.extract_strided_slice %745 {offsets = [3, 0, 0], sizes = [1, 1, 8], strides = [1, 1, 1]} : vector<8x1x8xf32> to vector<1x1x8xf32>
    %760 = vector.shape_cast %759 : vector<1x1x8xf32> to vector<1x8xf32>
    %761 = arith.maximumf %758, %760 : vector<1x8xf32>
    %c0_344 = arith.constant 0 : index
    %c1_345 = arith.constant 1 : index
    %c0_346 = arith.constant 0 : index
    %c0_347 = arith.constant 0 : index
    %762 = vector.load %arg2[%c0_344, %c1_345, %c0_346, %c0_347] : memref<4x4x1x8xf32, #tpu.memory_space<vmem>>, vector<1x1x1x8xf32>
    %763 = vector.shape_cast %762 : vector<1x1x1x8xf32> to vector<1x8xf32>
    %764 = vector.shape_cast %761 : vector<1x8xf32> to vector<1x1x1x8xf32>
    tpu.vector_store %arg2[%c0_344, %c1_345, %c0_346, %c0_347], %764 {strides = array<i32>} : memref<4x4x1x8xf32, #tpu.memory_space<vmem>>, vector<1x1x1x8xf32>,
    %765 = vector.extract_strided_slice %745 {offsets = [3, 0, 0], sizes = [1, 1, 8], strides = [1, 1, 1]} : vector<8x1x8xf32> to vector<1x1x8xf32>
    %766 = vector.shape_cast %765 : vector<1x1x8xf32> to vector<1x8xf32>
    %767 = vector.extract_strided_slice %745 {offsets = [4, 0, 0], sizes = [1, 1, 8], strides = [1, 1, 1]} : vector<8x1x8xf32> to vector<1x1x8xf32>
    %768 = vector.shape_cast %767 : vector<1x1x8xf32> to vector<1x8xf32>
    %769 = arith.maximumf %766, %768 : vector<1x8xf32>
    %770 = vector.extract_strided_slice %745 {offsets = [5, 0, 0], sizes = [1, 1, 8], strides = [1, 1, 1]} : vector<8x1x8xf32> to vector<1x1x8xf32>
    %771 = vector.shape_cast %770 : vector<1x1x8xf32> to vector<1x8xf32>
    %772 = arith.maximumf %769, %771 : vector<1x8xf32>
    %c0_348 = arith.constant 0 : index
    %c2_349 = arith.constant 2 : index
    %c0_350 = arith.constant 0 : index
    %c0_351 = arith.constant 0 : index
    %773 = vector.load %arg2[%c0_348, %c2_349, %c0_350, %c0_351] : memref<4x4x1x8xf32, #tpu.memory_space<vmem>>, vector<1x1x1x8xf32>
    %774 = vector.shape_cast %773 : vector<1x1x1x8xf32> to vector<1x8xf32>
    %775 = vector.shape_cast %772 : vector<1x8xf32> to vector<1x1x1x8xf32>
    tpu.vector_store %arg2[%c0_348, %c2_349, %c0_350, %c0_351], %775 {strides = array<i32>} : memref<4x4x1x8xf32, #tpu.memory_space<vmem>>, vector<1x1x1x8xf32>,
    %776 = vector.extract_strided_slice %745 {offsets = [5, 0, 0], sizes = [1, 1, 8], strides = [1, 1, 1]} : vector<8x1x8xf32> to vector<1x1x8xf32>
    %777 = vector.shape_cast %776 : vector<1x1x8xf32> to vector<1x8xf32>
    %778 = vector.extract_strided_slice %745 {offsets = [6, 0, 0], sizes = [1, 1, 8], strides = [1, 1, 1]} : vector<8x1x8xf32> to vector<1x1x8xf32>
    %779 = vector.shape_cast %778 : vector<1x1x8xf32> to vector<1x8xf32>
    %780 = arith.maximumf %777, %779 : vector<1x8xf32>
    %781 = vector.extract_strided_slice %745 {offsets = [7, 0, 0], sizes = [1, 1, 8], strides = [1, 1, 1]} : vector<8x1x8xf32> to vector<1x1x8xf32>
    %782 = vector.shape_cast %781 : vector<1x1x8xf32> to vector<1x8xf32>
    %783 = arith.maximumf %780, %782 : vector<1x8xf32>
    %c0_352 = arith.constant 0 : index
    %c3_353 = arith.constant 3 : index
    %c0_354 = arith.constant 0 : index
    %c0_355 = arith.constant 0 : index
    %784 = vector.load %arg2[%c0_352, %c3_353, %c0_354, %c0_355] : memref<4x4x1x8xf32, #tpu.memory_space<vmem>>, vector<1x1x1x8xf32>
    %785 = vector.shape_cast %784 : vector<1x1x1x8xf32> to vector<1x8xf32>
    %786 = vector.shape_cast %783 : vector<1x8xf32> to vector<1x1x1x8xf32>
    tpu.vector_store %arg2[%c0_352, %c3_353, %c0_354, %c0_355], %786 {strides = array<i32>} : memref<4x4x1x8xf32, #tpu.memory_space<vmem>>, vector<1x1x1x8xf32>,
    %c1_356 = arith.constant 1 : index
    %c0_357 = arith.constant 0 : index
    %c0_358 = arith.constant 0 : index
    %c0_359 = arith.constant 0 : index
    %787 = vector.load %arg6[%c1_356, %c0_357, %c0_358, %c0_359] : memref<8x8x1x8xf32, #tpu.memory_space<vmem>>, vector<1x8x1x8xf32>
    %788 = vector.shape_cast %787 : vector<1x8x1x8xf32> to vector<8x1x8xf32>
    %c2_360 = arith.constant 2 : index
    %c0_361 = arith.constant 0 : index
    %c0_362 = arith.constant 0 : index
    %c0_363 = arith.constant 0 : index
    %789 = vector.load %arg6[%c2_360, %c0_361, %c0_362, %c0_363] : memref<8x8x1x8xf32, #tpu.memory_space<vmem>>, vector<1x8x1x8xf32>
    %790 = vector.shape_cast %789 : vector<1x8x1x8xf32> to vector<8x1x8xf32>
    %791 = arith.maximumf %788, %790 : vector<8x1x8xf32>
    %c3_364 = arith.constant 3 : index
    %c0_365 = arith.constant 0 : index
    %c0_366 = arith.constant 0 : index
    %c0_367 = arith.constant 0 : index
    %792 = vector.load %arg6[%c3_364, %c0_365, %c0_366, %c0_367] : memref<8x8x1x8xf32, #tpu.memory_space<vmem>>, vector<1x8x1x8xf32>
    %793 = vector.shape_cast %792 : vector<1x8x1x8xf32> to vector<8x1x8xf32>
    %794 = arith.maximumf %791, %793 : vector<8x1x8xf32>
    %795 = vector.extract_strided_slice %794 {offsets = [0, 0, 0], sizes = [1, 1, 8], strides = [1, 1, 1]} : vector<8x1x8xf32> to vector<1x1x8xf32>
    %796 = vector.shape_cast %795 : vector<1x1x8xf32> to vector<1x8xf32>
    %797 = vector.extract_strided_slice %794 {offsets = [1, 0, 0], sizes = [1, 1, 8], strides = [1, 1, 1]} : vector<8x1x8xf32> to vector<1x1x8xf32>
    %798 = vector.shape_cast %797 : vector<1x1x8xf32> to vector<1x8xf32>
    %799 = arith.maximumf %796, %798 : vector<1x8xf32>
    %c1_368 = arith.constant 1 : index
    %c0_369 = arith.constant 0 : index
    %c0_370 = arith.constant 0 : index
    %c0_371 = arith.constant 0 : index
    %800 = vector.load %arg2[%c1_368, %c0_369, %c0_370, %c0_371] : memref<4x4x1x8xf32, #tpu.memory_space<vmem>>, vector<1x1x1x8xf32>
    %801 = vector.shape_cast %800 : vector<1x1x1x8xf32> to vector<1x8xf32>
    %802 = vector.shape_cast %799 : vector<1x8xf32> to vector<1x1x1x8xf32>
    tpu.vector_store %arg2[%c1_368, %c0_369, %c0_370, %c0_371], %802 {strides = array<i32>} : memref<4x4x1x8xf32, #tpu.memory_space<vmem>>, vector<1x1x1x8xf32>,
    %803 = vector.extract_strided_slice %794 {offsets = [1, 0, 0], sizes = [1, 1, 8], strides = [1, 1, 1]} : vector<8x1x8xf32> to vector<1x1x8xf32>
    %804 = vector.shape_cast %803 : vector<1x1x8xf32> to vector<1x8xf32>
    %805 = vector.extract_strided_slice %794 {offsets = [2, 0, 0], sizes = [1, 1, 8], strides = [1, 1, 1]} : vector<8x1x8xf32> to vector<1x1x8xf32>
    %806 = vector.shape_cast %805 : vector<1x1x8xf32> to vector<1x8xf32>
    %807 = arith.maximumf %804, %806 : vector<1x8xf32>
    %808 = vector.extract_strided_slice %794 {offsets = [3, 0, 0], sizes = [1, 1, 8], strides = [1, 1, 1]} : vector<8x1x8xf32> to vector<1x1x8xf32>
    %809 = vector.shape_cast %808 : vector<1x1x8xf32> to vector<1x8xf32>
    %810 = arith.maximumf %807, %809 : vector<1x8xf32>
    %c1_372 = arith.constant 1 : index
    %c1_373 = arith.constant 1 : index
    %c0_374 = arith.constant 0 : index
    %c0_375 = arith.constant 0 : index
    %811 = vector.load %arg2[%c1_372, %c1_373, %c0_374, %c0_375] : memref<4x4x1x8xf32, #tpu.memory_space<vmem>>, vector<1x1x1x8xf32>
    %812 = vector.shape_cast %811 : vector<1x1x1x8xf32> to vector<1x8xf32>
    %813 = vector.shape_cast %810 : vector<1x8xf32> to vector<1x1x1x8xf32>
    tpu.vector_store %arg2[%c1_372, %c1_373, %c0_374, %c0_375], %813 {strides = array<i32>} : memref<4x4x1x8xf32, #tpu.memory_space<vmem>>, vector<1x1x1x8xf32>,
    %814 = vector.extract_strided_slice %794 {offsets = [3, 0, 0], sizes = [1, 1, 8], strides = [1, 1, 1]} : vector<8x1x8xf32> to vector<1x1x8xf32>
    %815 = vector.shape_cast %814 : vector<1x1x8xf32> to vector<1x8xf32>
    %816 = vector.extract_strided_slice %794 {offsets = [4, 0, 0], sizes = [1, 1, 8], strides = [1, 1, 1]} : vector<8x1x8xf32> to vector<1x1x8xf32>
    %817 = vector.shape_cast %816 : vector<1x1x8xf32> to vector<1x8xf32>
    %818 = arith.maximumf %815, %817 : vector<1x8xf32>
    %819 = vector.extract_strided_slice %794 {offsets = [5, 0, 0], sizes = [1, 1, 8], strides = [1, 1, 1]} : vector<8x1x8xf32> to vector<1x1x8xf32>
    %820 = vector.shape_cast %819 : vector<1x1x8xf32> to vector<1x8xf32>
    %821 = arith.maximumf %818, %820 : vector<1x8xf32>
    %c1_376 = arith.constant 1 : index
    %c2_377 = arith.constant 2 : index
    %c0_378 = arith.constant 0 : index
    %c0_379 = arith.constant 0 : index
    %822 = vector.load %arg2[%c1_376, %c2_377, %c0_378, %c0_379] : memref<4x4x1x8xf32, #tpu.memory_space<vmem>>, vector<1x1x1x8xf32>
    %823 = vector.shape_cast %822 : vector<1x1x1x8xf32> to vector<1x8xf32>
    %824 = vector.shape_cast %821 : vector<1x8xf32> to vector<1x1x1x8xf32>
    tpu.vector_store %arg2[%c1_376, %c2_377, %c0_378, %c0_379], %824 {strides = array<i32>} : memref<4x4x1x8xf32, #tpu.memory_space<vmem>>, vector<1x1x1x8xf32>,
    %825 = vector.extract_strided_slice %794 {offsets = [5, 0, 0], sizes = [1, 1, 8], strides = [1, 1, 1]} : vector<8x1x8xf32> to vector<1x1x8xf32>
    %826 = vector.shape_cast %825 : vector<1x1x8xf32> to vector<1x8xf32>
    %827 = vector.extract_strided_slice %794 {offsets = [6, 0, 0], sizes = [1, 1, 8], strides = [1, 1, 1]} : vector<8x1x8xf32> to vector<1x1x8xf32>
    %828 = vector.shape_cast %827 : vector<1x1x8xf32> to vector<1x8xf32>
    %829 = arith.maximumf %826, %828 : vector<1x8xf32>
    %830 = vector.extract_strided_slice %794 {offsets = [7, 0, 0], sizes = [1, 1, 8], strides = [1, 1, 1]} : vector<8x1x8xf32> to vector<1x1x8xf32>
    %831 = vector.shape_cast %830 : vector<1x1x8xf32> to vector<1x8xf32>
    %832 = arith.maximumf %829, %831 : vector<1x8xf32>
    %c1_380 = arith.constant 1 : index
    %c3_381 = arith.constant 3 : index
    %c0_382 = arith.constant 0 : index
    %c0_383 = arith.constant 0 : index
    %833 = vector.load %arg2[%c1_380, %c3_381, %c0_382, %c0_383] : memref<4x4x1x8xf32, #tpu.memory_space<vmem>>, vector<1x1x1x8xf32>
    %834 = vector.shape_cast %833 : vector<1x1x1x8xf32> to vector<1x8xf32>
    %835 = vector.shape_cast %832 : vector<1x8xf32> to vector<1x1x1x8xf32>
    tpu.vector_store %arg2[%c1_380, %c3_381, %c0_382, %c0_383], %835 {strides = array<i32>} : memref<4x4x1x8xf32, #tpu.memory_space<vmem>>, vector<1x1x1x8xf32>,
    %c3_384 = arith.constant 3 : index
    %c0_385 = arith.constant 0 : index
    %c0_386 = arith.constant 0 : index
    %c0_387 = arith.constant 0 : index
    %836 = vector.load %arg6[%c3_384, %c0_385, %c0_386, %c0_387] : memref<8x8x1x8xf32, #tpu.memory_space<vmem>>, vector<1x8x1x8xf32>
    %837 = vector.shape_cast %836 : vector<1x8x1x8xf32> to vector<8x1x8xf32>
    %c4_388 = arith.constant 4 : index
    %c0_389 = arith.constant 0 : index
    %c0_390 = arith.constant 0 : index
    %c0_391 = arith.constant 0 : index
    %838 = vector.load %arg6[%c4_388, %c0_389, %c0_390, %c0_391] : memref<8x8x1x8xf32, #tpu.memory_space<vmem>>, vector<1x8x1x8xf32>
    %839 = vector.shape_cast %838 : vector<1x8x1x8xf32> to vector<8x1x8xf32>
    %840 = arith.maximumf %837, %839 : vector<8x1x8xf32>
    %c5_392 = arith.constant 5 : index
    %c0_393 = arith.constant 0 : index
    %c0_394 = arith.constant 0 : index
    %c0_395 = arith.constant 0 : index
    %841 = vector.load %arg6[%c5_392, %c0_393, %c0_394, %c0_395] : memref<8x8x1x8xf32, #tpu.memory_space<vmem>>, vector<1x8x1x8xf32>
    %842 = vector.shape_cast %841 : vector<1x8x1x8xf32> to vector<8x1x8xf32>
    %843 = arith.maximumf %840, %842 : vector<8x1x8xf32>
    %844 = vector.extract_strided_slice %843 {offsets = [0, 0, 0], sizes = [1, 1, 8], strides = [1, 1, 1]} : vector<8x1x8xf32> to vector<1x1x8xf32>
    %845 = vector.shape_cast %844 : vector<1x1x8xf32> to vector<1x8xf32>
    %846 = vector.extract_strided_slice %843 {offsets = [1, 0, 0], sizes = [1, 1, 8], strides = [1, 1, 1]} : vector<8x1x8xf32> to vector<1x1x8xf32>
    %847 = vector.shape_cast %846 : vector<1x1x8xf32> to vector<1x8xf32>
    %848 = arith.maximumf %845, %847 : vector<1x8xf32>
    %c2_396 = arith.constant 2 : index
    %c0_397 = arith.constant 0 : index
    %c0_398 = arith.constant 0 : index
    %c0_399 = arith.constant 0 : index
    %849 = vector.load %arg2[%c2_396, %c0_397, %c0_398, %c0_399] : memref<4x4x1x8xf32, #tpu.memory_space<vmem>>, vector<1x1x1x8xf32>
    %850 = vector.shape_cast %849 : vector<1x1x1x8xf32> to vector<1x8xf32>
    %851 = vector.shape_cast %848 : vector<1x8xf32> to vector<1x1x1x8xf32>
    tpu.vector_store %arg2[%c2_396, %c0_397, %c0_398, %c0_399], %851 {strides = array<i32>} : memref<4x4x1x8xf32, #tpu.memory_space<vmem>>, vector<1x1x1x8xf32>,
    %852 = vector.extract_strided_slice %843 {offsets = [1, 0, 0], sizes = [1, 1, 8], strides = [1, 1, 1]} : vector<8x1x8xf32> to vector<1x1x8xf32>
    %853 = vector.shape_cast %852 : vector<1x1x8xf32> to vector<1x8xf32>
    %854 = vector.extract_strided_slice %843 {offsets = [2, 0, 0], sizes = [1, 1, 8], strides = [1, 1, 1]} : vector<8x1x8xf32> to vector<1x1x8xf32>
    %855 = vector.shape_cast %854 : vector<1x1x8xf32> to vector<1x8xf32>
    %856 = arith.maximumf %853, %855 : vector<1x8xf32>
    %857 = vector.extract_strided_slice %843 {offsets = [3, 0, 0], sizes = [1, 1, 8], strides = [1, 1, 1]} : vector<8x1x8xf32> to vector<1x1x8xf32>
    %858 = vector.shape_cast %857 : vector<1x1x8xf32> to vector<1x8xf32>
    %859 = arith.maximumf %856, %858 : vector<1x8xf32>
    %c2_400 = arith.constant 2 : index
    %c1_401 = arith.constant 1 : index
    %c0_402 = arith.constant 0 : index
    %c0_403 = arith.constant 0 : index
    %860 = vector.load %arg2[%c2_400, %c1_401, %c0_402, %c0_403] : memref<4x4x1x8xf32, #tpu.memory_space<vmem>>, vector<1x1x1x8xf32>
    %861 = vector.shape_cast %860 : vector<1x1x1x8xf32> to vector<1x8xf32>
    %862 = vector.shape_cast %859 : vector<1x8xf32> to vector<1x1x1x8xf32>
    tpu.vector_store %arg2[%c2_400, %c1_401, %c0_402, %c0_403], %862 {strides = array<i32>} : memref<4x4x1x8xf32, #tpu.memory_space<vmem>>, vector<1x1x1x8xf32>,
    %863 = vector.extract_strided_slice %843 {offsets = [3, 0, 0], sizes = [1, 1, 8], strides = [1, 1, 1]} : vector<8x1x8xf32> to vector<1x1x8xf32>
    %864 = vector.shape_cast %863 : vector<1x1x8xf32> to vector<1x8xf32>
    %865 = vector.extract_strided_slice %843 {offsets = [4, 0, 0], sizes = [1, 1, 8], strides = [1, 1, 1]} : vector<8x1x8xf32> to vector<1x1x8xf32>
    %866 = vector.shape_cast %865 : vector<1x1x8xf32> to vector<1x8xf32>
    %867 = arith.maximumf %864, %866 : vector<1x8xf32>
    %868 = vector.extract_strided_slice %843 {offsets = [5, 0, 0], sizes = [1, 1, 8], strides = [1, 1, 1]} : vector<8x1x8xf32> to vector<1x1x8xf32>
    %869 = vector.shape_cast %868 : vector<1x1x8xf32> to vector<1x8xf32>
    %870 = arith.maximumf %867, %869 : vector<1x8xf32>
    %c2_404 = arith.constant 2 : index
    %c2_405 = arith.constant 2 : index
    %c0_406 = arith.constant 0 : index
    %c0_407 = arith.constant 0 : index
    %871 = vector.load %arg2[%c2_404, %c2_405, %c0_406, %c0_407] : memref<4x4x1x8xf32, #tpu.memory_space<vmem>>, vector<1x1x1x8xf32>
    %872 = vector.shape_cast %871 : vector<1x1x1x8xf32> to vector<1x8xf32>
    %873 = vector.shape_cast %870 : vector<1x8xf32> to vector<1x1x1x8xf32>
    tpu.vector_store %arg2[%c2_404, %c2_405, %c0_406, %c0_407], %873 {strides = array<i32>} : memref<4x4x1x8xf32, #tpu.memory_space<vmem>>, vector<1x1x1x8xf32>,
    %874 = vector.extract_strided_slice %843 {offsets = [5, 0, 0], sizes = [1, 1, 8], strides = [1, 1, 1]} : vector<8x1x8xf32> to vector<1x1x8xf32>
    %875 = vector.shape_cast %874 : vector<1x1x8xf32> to vector<1x8xf32>
    %876 = vector.extract_strided_slice %843 {offsets = [6, 0, 0], sizes = [1, 1, 8], strides = [1, 1, 1]} : vector<8x1x8xf32> to vector<1x1x8xf32>
    %877 = vector.shape_cast %876 : vector<1x1x8xf32> to vector<1x8xf32>
    %878 = arith.maximumf %875, %877 : vector<1x8xf32>
    %879 = vector.extract_strided_slice %843 {offsets = [7, 0, 0], sizes = [1, 1, 8], strides = [1, 1, 1]} : vector<8x1x8xf32> to vector<1x1x8xf32>
    %880 = vector.shape_cast %879 : vector<1x1x8xf32> to vector<1x8xf32>
    %881 = arith.maximumf %878, %880 : vector<1x8xf32>
    %c2_408 = arith.constant 2 : index
    %c3_409 = arith.constant 3 : index
    %c0_410 = arith.constant 0 : index
    %c0_411 = arith.constant 0 : index
    %882 = vector.load %arg2[%c2_408, %c3_409, %c0_410, %c0_411] : memref<4x4x1x8xf32, #tpu.memory_space<vmem>>, vector<1x1x1x8xf32>
    %883 = vector.shape_cast %882 : vector<1x1x1x8xf32> to vector<1x8xf32>
    %884 = vector.shape_cast %881 : vector<1x8xf32> to vector<1x1x1x8xf32>
    tpu.vector_store %arg2[%c2_408, %c3_409, %c0_410, %c0_411], %884 {strides = array<i32>} : memref<4x4x1x8xf32, #tpu.memory_space<vmem>>, vector<1x1x1x8xf32>,
    %c5_412 = arith.constant 5 : index
    %c0_413 = arith.constant 0 : index
    %c0_414 = arith.constant 0 : index
    %c0_415 = arith.constant 0 : index
    %885 = vector.load %arg6[%c5_412, %c0_413, %c0_414, %c0_415] : memref<8x8x1x8xf32, #tpu.memory_space<vmem>>, vector<1x8x1x8xf32>
    %886 = vector.shape_cast %885 : vector<1x8x1x8xf32> to vector<8x1x8xf32>
    %c6_416 = arith.constant 6 : index
    %c0_417 = arith.constant 0 : index
    %c0_418 = arith.constant 0 : index
    %c0_419 = arith.constant 0 : index
    %887 = vector.load %arg6[%c6_416, %c0_417, %c0_418, %c0_419] : memref<8x8x1x8xf32, #tpu.memory_space<vmem>>, vector<1x8x1x8xf32>
    %888 = vector.shape_cast %887 : vector<1x8x1x8xf32> to vector<8x1x8xf32>
    %889 = arith.maximumf %886, %888 : vector<8x1x8xf32>
    %c7_420 = arith.constant 7 : index
    %c0_421 = arith.constant 0 : index
    %c0_422 = arith.constant 0 : index
    %c0_423 = arith.constant 0 : index
    %890 = vector.load %arg6[%c7_420, %c0_421, %c0_422, %c0_423] : memref<8x8x1x8xf32, #tpu.memory_space<vmem>>, vector<1x8x1x8xf32>
    %891 = vector.shape_cast %890 : vector<1x8x1x8xf32> to vector<8x1x8xf32>
    %892 = arith.maximumf %889, %891 : vector<8x1x8xf32>
    %893 = vector.extract_strided_slice %892 {offsets = [0, 0, 0], sizes = [1, 1, 8], strides = [1, 1, 1]} : vector<8x1x8xf32> to vector<1x1x8xf32>
    %894 = vector.shape_cast %893 : vector<1x1x8xf32> to vector<1x8xf32>
    %895 = vector.extract_strided_slice %892 {offsets = [1, 0, 0], sizes = [1, 1, 8], strides = [1, 1, 1]} : vector<8x1x8xf32> to vector<1x1x8xf32>
    %896 = vector.shape_cast %895 : vector<1x1x8xf32> to vector<1x8xf32>
    %897 = arith.maximumf %894, %896 : vector<1x8xf32>
    %c3_424 = arith.constant 3 : index
    %c0_425 = arith.constant 0 : index
    %c0_426 = arith.constant 0 : index
    %c0_427 = arith.constant 0 : index
    %898 = vector.load %arg2[%c3_424, %c0_425, %c0_426, %c0_427] : memref<4x4x1x8xf32, #tpu.memory_space<vmem>>, vector<1x1x1x8xf32>
    %899 = vector.shape_cast %898 : vector<1x1x1x8xf32> to vector<1x8xf32>
    %900 = vector.shape_cast %897 : vector<1x8xf32> to vector<1x1x1x8xf32>
    tpu.vector_store %arg2[%c3_424, %c0_425, %c0_426, %c0_427], %900 {strides = array<i32>} : memref<4x4x1x8xf32, #tpu.memory_space<vmem>>, vector<1x1x1x8xf32>,
    %901 = vector.extract_strided_slice %892 {offsets = [1, 0, 0], sizes = [1, 1, 8], strides = [1, 1, 1]} : vector<8x1x8xf32> to vector<1x1x8xf32>
    %902 = vector.shape_cast %901 : vector<1x1x8xf32> to vector<1x8xf32>
    %903 = vector.extract_strided_slice %892 {offsets = [2, 0, 0], sizes = [1, 1, 8], strides = [1, 1, 1]} : vector<8x1x8xf32> to vector<1x1x8xf32>
    %904 = vector.shape_cast %903 : vector<1x1x8xf32> to vector<1x8xf32>
    %905 = arith.maximumf %902, %904 : vector<1x8xf32>
    %906 = vector.extract_strided_slice %892 {offsets = [3, 0, 0], sizes = [1, 1, 8], strides = [1, 1, 1]} : vector<8x1x8xf32> to vector<1x1x8xf32>
    %907 = vector.shape_cast %906 : vector<1x1x8xf32> to vector<1x8xf32>
    %908 = arith.maximumf %905, %907 : vector<1x8xf32>
    %c3_428 = arith.constant 3 : index
    %c1_429 = arith.constant 1 : index
    %c0_430 = arith.constant 0 : index
    %c0_431 = arith.constant 0 : index
    %909 = vector.load %arg2[%c3_428, %c1_429, %c0_430, %c0_431] : memref<4x4x1x8xf32, #tpu.memory_space<vmem>>, vector<1x1x1x8xf32>
    %910 = vector.shape_cast %909 : vector<1x1x1x8xf32> to vector<1x8xf32>
    %911 = vector.shape_cast %908 : vector<1x8xf32> to vector<1x1x1x8xf32>
    tpu.vector_store %arg2[%c3_428, %c1_429, %c0_430, %c0_431], %911 {strides = array<i32>} : memref<4x4x1x8xf32, #tpu.memory_space<vmem>>, vector<1x1x1x8xf32>,
    %912 = vector.extract_strided_slice %892 {offsets = [3, 0, 0], sizes = [1, 1, 8], strides = [1, 1, 1]} : vector<8x1x8xf32> to vector<1x1x8xf32>
    %913 = vector.shape_cast %912 : vector<1x1x8xf32> to vector<1x8xf32>
    %914 = vector.extract_strided_slice %892 {offsets = [4, 0, 0], sizes = [1, 1, 8], strides = [1, 1, 1]} : vector<8x1x8xf32> to vector<1x1x8xf32>
    %915 = vector.shape_cast %914 : vector<1x1x8xf32> to vector<1x8xf32>
    %916 = arith.maximumf %913, %915 : vector<1x8xf32>
    %917 = vector.extract_strided_slice %892 {offsets = [5, 0, 0], sizes = [1, 1, 8], strides = [1, 1, 1]} : vector<8x1x8xf32> to vector<1x1x8xf32>
    %918 = vector.shape_cast %917 : vector<1x1x8xf32> to vector<1x8xf32>
    %919 = arith.maximumf %916, %918 : vector<1x8xf32>
    %c3_432 = arith.constant 3 : index
    %c2_433 = arith.constant 2 : index
    %c0_434 = arith.constant 0 : index
    %c0_435 = arith.constant 0 : index
    %920 = vector.load %arg2[%c3_432, %c2_433, %c0_434, %c0_435] : memref<4x4x1x8xf32, #tpu.memory_space<vmem>>, vector<1x1x1x8xf32>
    %921 = vector.shape_cast %920 : vector<1x1x1x8xf32> to vector<1x8xf32>
    %922 = vector.shape_cast %919 : vector<1x8xf32> to vector<1x1x1x8xf32>
    tpu.vector_store %arg2[%c3_432, %c2_433, %c0_434, %c0_435], %922 {strides = array<i32>} : memref<4x4x1x8xf32, #tpu.memory_space<vmem>>, vector<1x1x1x8xf32>,
    %923 = vector.extract_strided_slice %892 {offsets = [5, 0, 0], sizes = [1, 1, 8], strides = [1, 1, 1]} : vector<8x1x8xf32> to vector<1x1x8xf32>
    %924 = vector.shape_cast %923 : vector<1x1x8xf32> to vector<1x8xf32>
    %925 = vector.extract_strided_slice %892 {offsets = [6, 0, 0], sizes = [1, 1, 8], strides = [1, 1, 1]} : vector<8x1x8xf32> to vector<1x1x8xf32>
    %926 = vector.shape_cast %925 : vector<1x1x8xf32> to vector<1x8xf32>
    %927 = arith.maximumf %924, %926 : vector<1x8xf32>
    %928 = vector.extract_strided_slice %892 {offsets = [7, 0, 0], sizes = [1, 1, 8], strides = [1, 1, 1]} : vector<8x1x8xf32> to vector<1x1x8xf32>
    %929 = vector.shape_cast %928 : vector<1x1x8xf32> to vector<1x8xf32>
    %930 = arith.maximumf %927, %929 : vector<1x8xf32>
    %c3_436 = arith.constant 3 : index
    %c3_437 = arith.constant 3 : index
    %c0_438 = arith.constant 0 : index
    %c0_439 = arith.constant 0 : index
    %931 = vector.load %arg2[%c3_436, %c3_437, %c0_438, %c0_439] : memref<4x4x1x8xf32, #tpu.memory_space<vmem>>, vector<1x1x1x8xf32>
    %932 = vector.shape_cast %931 : vector<1x1x1x8xf32> to vector<1x8xf32>
    %933 = vector.shape_cast %930 : vector<1x8xf32> to vector<1x1x1x8xf32>
    tpu.vector_store %arg2[%c3_436, %c3_437, %c0_438, %c0_439], %933 {strides = array<i32>} : memref<4x4x1x8xf32, #tpu.memory_space<vmem>>, vector<1x1x1x8xf32>,
    %c0_440 = arith.constant 0 : index
    %c0_441 = arith.constant 0 : index
    %c0_442 = arith.constant 0 : index
    %c0_443 = arith.constant 0 : index
    %934 = vector.load %arg2[%c0_440, %c0_441, %c0_442, %c0_443] : memref<4x4x1x8xf32, #tpu.memory_space<vmem>>, vector<1x4x1x8xf32>
    %935 = vector.shape_cast %934 : vector<1x4x1x8xf32> to vector<4x1x8xf32>
    %c1_444 = arith.constant 1 : index
    %c0_445 = arith.constant 0 : index
    %c0_446 = arith.constant 0 : index
    %c0_447 = arith.constant 0 : index
    %936 = vector.load %arg2[%c1_444, %c0_445, %c0_446, %c0_447] : memref<4x4x1x8xf32, #tpu.memory_space<vmem>>, vector<1x4x1x8xf32>
    %937 = vector.shape_cast %936 : vector<1x4x1x8xf32> to vector<4x1x8xf32>
    %938 = arith.addf %935, %937 : vector<4x1x8xf32>
    %939 = vector.extract_strided_slice %938 {offsets = [0, 0, 0], sizes = [1, 1, 8], strides = [1, 1, 1]} : vector<4x1x8xf32> to vector<1x1x8xf32>
    %940 = vector.shape_cast %939 : vector<1x1x8xf32> to vector<1x8xf32>
    %941 = vector.extract_strided_slice %938 {offsets = [1, 0, 0], sizes = [1, 1, 8], strides = [1, 1, 1]} : vector<4x1x8xf32> to vector<1x1x8xf32>
    %942 = vector.shape_cast %941 : vector<1x1x8xf32> to vector<1x8xf32>
    %943 = arith.addf %940, %942 : vector<1x8xf32>
    %c0_448 = arith.constant 0 : index
    %c0_449 = arith.constant 0 : index
    %c0_450 = arith.constant 0 : index
    %c0_451 = arith.constant 0 : index
    %944 = vector.load %arg3[%c0_448, %c0_449, %c0_450, %c0_451] : memref<2x2x1x8xf32, #tpu.memory_space<vmem>>, vector<1x1x1x8xf32>
    %945 = vector.shape_cast %944 : vector<1x1x1x8xf32> to vector<1x8xf32>
    %946 = vector.shape_cast %943 : vector<1x8xf32> to vector<1x1x1x8xf32>
    tpu.vector_store %arg3[%c0_448, %c0_449, %c0_450, %c0_451], %946 {strides = array<i32>} : memref<2x2x1x8xf32, #tpu.memory_space<vmem>>, vector<1x1x1x8xf32>,
    %947 = vector.extract_strided_slice %938 {offsets = [1, 0, 0], sizes = [1, 1, 8], strides = [1, 1, 1]} : vector<4x1x8xf32> to vector<1x1x8xf32>
    %948 = vector.shape_cast %947 : vector<1x1x8xf32> to vector<1x8xf32>
    %949 = vector.extract_strided_slice %938 {offsets = [2, 0, 0], sizes = [1, 1, 8], strides = [1, 1, 1]} : vector<4x1x8xf32> to vector<1x1x8xf32>
    %950 = vector.shape_cast %949 : vector<1x1x8xf32> to vector<1x8xf32>
    %951 = arith.addf %948, %950 : vector<1x8xf32>
    %952 = vector.extract_strided_slice %938 {offsets = [3, 0, 0], sizes = [1, 1, 8], strides = [1, 1, 1]} : vector<4x1x8xf32> to vector<1x1x8xf32>
    %953 = vector.shape_cast %952 : vector<1x1x8xf32> to vector<1x8xf32>
    %954 = arith.addf %951, %953 : vector<1x8xf32>
    %c0_452 = arith.constant 0 : index
    %c1_453 = arith.constant 1 : index
    %c0_454 = arith.constant 0 : index
    %c0_455 = arith.constant 0 : index
    %955 = vector.load %arg3[%c0_452, %c1_453, %c0_454, %c0_455] : memref<2x2x1x8xf32, #tpu.memory_space<vmem>>, vector<1x1x1x8xf32>
    %956 = vector.shape_cast %955 : vector<1x1x1x8xf32> to vector<1x8xf32>
    %957 = vector.shape_cast %954 : vector<1x8xf32> to vector<1x1x1x8xf32>
    tpu.vector_store %arg3[%c0_452, %c1_453, %c0_454, %c0_455], %957 {strides = array<i32>} : memref<2x2x1x8xf32, #tpu.memory_space<vmem>>, vector<1x1x1x8xf32>,
    %c1_456 = arith.constant 1 : index
    %c0_457 = arith.constant 0 : index
    %c0_458 = arith.constant 0 : index
    %c0_459 = arith.constant 0 : index
    %958 = vector.load %arg2[%c1_456, %c0_457, %c0_458, %c0_459] : memref<4x4x1x8xf32, #tpu.memory_space<vmem>>, vector<1x4x1x8xf32>
    %959 = vector.shape_cast %958 : vector<1x4x1x8xf32> to vector<4x1x8xf32>
    %c2_460 = arith.constant 2 : index
    %c0_461 = arith.constant 0 : index
    %c0_462 = arith.constant 0 : index
    %c0_463 = arith.constant 0 : index
    %960 = vector.load %arg2[%c2_460, %c0_461, %c0_462, %c0_463] : memref<4x4x1x8xf32, #tpu.memory_space<vmem>>, vector<1x4x1x8xf32>
    %961 = vector.shape_cast %960 : vector<1x4x1x8xf32> to vector<4x1x8xf32>
    %962 = arith.addf %959, %961 : vector<4x1x8xf32>
    %c3_464 = arith.constant 3 : index
    %c0_465 = arith.constant 0 : index
    %c0_466 = arith.constant 0 : index
    %c0_467 = arith.constant 0 : index
    %963 = vector.load %arg2[%c3_464, %c0_465, %c0_466, %c0_467] : memref<4x4x1x8xf32, #tpu.memory_space<vmem>>, vector<1x4x1x8xf32>
    %964 = vector.shape_cast %963 : vector<1x4x1x8xf32> to vector<4x1x8xf32>
    %965 = arith.addf %962, %964 : vector<4x1x8xf32>
    %966 = vector.extract_strided_slice %965 {offsets = [0, 0, 0], sizes = [1, 1, 8], strides = [1, 1, 1]} : vector<4x1x8xf32> to vector<1x1x8xf32>
    %967 = vector.shape_cast %966 : vector<1x1x8xf32> to vector<1x8xf32>
    %968 = vector.extract_strided_slice %965 {offsets = [1, 0, 0], sizes = [1, 1, 8], strides = [1, 1, 1]} : vector<4x1x8xf32> to vector<1x1x8xf32>
    %969 = vector.shape_cast %968 : vector<1x1x8xf32> to vector<1x8xf32>
    %970 = arith.addf %967, %969 : vector<1x8xf32>
    %c1_468 = arith.constant 1 : index
    %c0_469 = arith.constant 0 : index
    %c0_470 = arith.constant 0 : index
    %c0_471 = arith.constant 0 : index
    %971 = vector.load %arg3[%c1_468, %c0_469, %c0_470, %c0_471] : memref<2x2x1x8xf32, #tpu.memory_space<vmem>>, vector<1x1x1x8xf32>
    %972 = vector.shape_cast %971 : vector<1x1x1x8xf32> to vector<1x8xf32>
    %973 = vector.shape_cast %970 : vector<1x8xf32> to vector<1x1x1x8xf32>
    tpu.vector_store %arg3[%c1_468, %c0_469, %c0_470, %c0_471], %973 {strides = array<i32>} : memref<2x2x1x8xf32, #tpu.memory_space<vmem>>, vector<1x1x1x8xf32>,
    %974 = vector.extract_strided_slice %965 {offsets = [1, 0, 0], sizes = [1, 1, 8], strides = [1, 1, 1]} : vector<4x1x8xf32> to vector<1x1x8xf32>
    %975 = vector.shape_cast %974 : vector<1x1x8xf32> to vector<1x8xf32>
    %976 = vector.extract_strided_slice %965 {offsets = [2, 0, 0], sizes = [1, 1, 8], strides = [1, 1, 1]} : vector<4x1x8xf32> to vector<1x1x8xf32>
    %977 = vector.shape_cast %976 : vector<1x1x8xf32> to vector<1x8xf32>
    %978 = arith.addf %975, %977 : vector<1x8xf32>
    %979 = vector.extract_strided_slice %965 {offsets = [3, 0, 0], sizes = [1, 1, 8], strides = [1, 1, 1]} : vector<4x1x8xf32> to vector<1x1x8xf32>
    %980 = vector.shape_cast %979 : vector<1x1x8xf32> to vector<1x8xf32>
    %981 = arith.addf %978, %980 : vector<1x8xf32>
    %c1_472 = arith.constant 1 : index
    %c1_473 = arith.constant 1 : index
    %c0_474 = arith.constant 0 : index
    %c0_475 = arith.constant 0 : index
    %982 = vector.load %arg3[%c1_472, %c1_473, %c0_474, %c0_475] : memref<2x2x1x8xf32, #tpu.memory_space<vmem>>, vector<1x1x1x8xf32>
    %983 = vector.shape_cast %982 : vector<1x1x1x8xf32> to vector<1x8xf32>
    %984 = vector.shape_cast %981 : vector<1x8xf32> to vector<1x1x1x8xf32>
    tpu.vector_store %arg3[%c1_472, %c1_473, %c0_474, %c0_475], %984 {strides = array<i32>} : memref<2x2x1x8xf32, #tpu.memory_space<vmem>>, vector<1x1x1x8xf32>,
    %c0_476 = arith.constant 0 : index
    %c0_477 = arith.constant 0 : index
    %c0_478 = arith.constant 0 : index
    %c0_479 = arith.constant 0 : index
    %985 = vector.load %arg3[%c0_476, %c0_477, %c0_478, %c0_479] : memref<2x2x1x8xf32, #tpu.memory_space<vmem>>, vector<1x2x1x8xf32>
    %986 = vector.shape_cast %985 : vector<1x2x1x8xf32> to vector<2x1x8xf32>
    %c1_480 = arith.constant 1 : index
    %c0_481 = arith.constant 0 : index
    %c0_482 = arith.constant 0 : index
    %c0_483 = arith.constant 0 : index
    %987 = vector.load %arg3[%c1_480, %c0_481, %c0_482, %c0_483] : memref<2x2x1x8xf32, #tpu.memory_space<vmem>>, vector<1x2x1x8xf32>
    %988 = vector.shape_cast %987 : vector<1x2x1x8xf32> to vector<2x1x8xf32>
    %989 = arith.addf %986, %988 : vector<2x1x8xf32>
    %990 = vector.extract_strided_slice %989 {offsets = [0, 0, 0], sizes = [1, 1, 8], strides = [1, 1, 1]} : vector<2x1x8xf32> to vector<1x1x8xf32>
    %991 = vector.shape_cast %990 : vector<1x1x8xf32> to vector<1x8xf32>
    %992 = vector.extract_strided_slice %989 {offsets = [1, 0, 0], sizes = [1, 1, 8], strides = [1, 1, 1]} : vector<2x1x8xf32> to vector<1x1x8xf32>
    %993 = vector.shape_cast %992 : vector<1x1x8xf32> to vector<1x8xf32>
    %994 = arith.addf %991, %993 : vector<1x8xf32>
    %c0_484 = arith.constant 0 : index
    %c0_485 = arith.constant 0 : index
    %c0_486 = arith.constant 0 : index
    %c0_487 = arith.constant 0 : index
    %995 = vector.load %arg4[%c0_484, %c0_485, %c0_486, %c0_487] : memref<1x1x1x8xf32, #tpu.memory_space<vmem>>, vector<1x1x1x8xf32>
    %996 = vector.shape_cast %995 : vector<1x1x1x8xf32> to vector<1x8xf32>
    %997 = vector.shape_cast %994 : vector<1x8xf32> to vector<1x1x1x8xf32>
    tpu.vector_store %arg4[%c0_484, %c0_485, %c0_486, %c0_487], %997 {strides = array<i32>} : memref<1x1x1x8xf32, #tpu.memory_space<vmem>>, vector<1x1x1x8xf32>,
    %c0_488 = arith.constant 0 : index
    %c0_489 = arith.constant 0 : index
    %c0_490 = arith.constant 0 : index
    %c0_491 = arith.constant 0 : index
    %998 = vector.load %arg4[%c0_488, %c0_489, %c0_490, %c0_491] : memref<1x1x1x8xf32, #tpu.memory_space<vmem>>, vector<1x1x1x8xf32>
    %c0_492 = arith.constant 0 : index
    %c0_493 = arith.constant 0 : index
    %c0_494 = arith.constant 0 : index
    %c0_495 = arith.constant 0 : index
    %999 = vector.load %arg5[%c0_492, %c0_493, %c0_494, %c0_495] : memref<1x1x1x8xf32, #tpu.memory_space<vmem>>, vector<1x1x1x8xf32>
    tpu.vector_store %arg5[%c0_492, %c0_493, %c0_494, %c0_495], %998 {strides = array<i32>} : memref<1x1x1x8xf32, #tpu.memory_space<vmem>>, vector<1x1x1x8xf32>,
    return
  }
  func.func @transform_0(%arg0: i32) -> (i32, i32, i32, i32) {
    %c0_i32 = arith.constant 0 : i32
    %c0_i32_0 = arith.constant 0 : i32
    %c0_i32_1 = arith.constant 0 : i32
    %c0_i32_2 = arith.constant 0 : i32
    return %c0_i32, %c0_i32_0, %arg0, %c0_i32_1 : i32, i32, i32, i32
  }
  func.func @transform_1(%arg0: i32) -> (i32, i32, i32, i32) {
    %c0_i32 = arith.constant 0 : i32
    %c0_i32_0 = arith.constant 0 : i32
    %c0_i32_1 = arith.constant 0 : i32
    %c0_i32_2 = arith.constant 0 : i32
    return %c0_i32, %c0_i32_0, %arg0, %c0_i32_1 : i32, i32, i32, i32
  }
  func.func @transform_2(%arg0: i32) -> (i32, i32, i32, i32) {
    %c0_i32 = arith.constant 0 : i32
    %c0_i32_0 = arith.constant 0 : i32
    %c0_i32_1 = arith.constant 0 : i32
    %c0_i32_2 = arith.constant 0 : i32
    return %c0_i32, %c0_i32_0, %arg0, %c0_i32_1 : i32, i32, i32, i32
  }
  func.func @transform_3(%arg0: i32) -> (i32, i32, i32, i32) {
    %c0_i32 = arith.constant 0 : i32
    %c0_i32_0 = arith.constant 0 : i32
    %c0_i32_1 = arith.constant 0 : i32
    %c0_i32_2 = arith.constant 0 : i32
    return %c0_i32, %c0_i32_0, %arg0, %c0_i32_1 : i32, i32, i32, i32
  }
  func.func @transform_4(%arg0: i32) -> (i32, i32, i32, i32) {
    %c0_i32 = arith.constant 0 : i32
    %c0_i32_0 = arith.constant 0 : i32
    %c0_i32_1 = arith.constant 0 : i32
    %c0_i32_2 = arith.constant 0 : i32
    return %c0_i32, %c0_i32_0, %arg0, %c0_i32_1 : i32, i32, i32, i32
  }
}

</mosaic_0001>

<llo_original>
// kernel: tpu_custom_call.1
$region0: #{tpu_custom_call.1}
  #allocation0 [shape = 'u32[]', space=smem, size = 0x4, offset = 0x4, fixed_abs, tag = 'smem constant byte address 0x4 - core index']
  #allocation1 [shape = 'u32[144,128]{1,0:T(1,128)}', space=vmem, size = 0x12000, scoped, tag = 'internal scratch']
  #allocation2 [shape = 'f32[8,8,1,8]{3,2,1,0:T(1,128)}', space=vmem, size = 0x8000, scoped, tag = 'scratch operand']
  %s0 = inlined_call_operand.vmem [shape: f32[16,16,1,8], index: 0, kind: input, shape index: {}]
  %s1 = inlined_call_operand.hbm [shape: f32[4,4,1,8], index: 1, kind: output, shape index: {0}]
  %s2 = inlined_call_operand.hbm [shape: f32[2,2,1,8], index: 2, kind: output, shape index: {1}]
  %s3 = inlined_call_operand.hbm [shape: f32[1,1,1,8], index: 3, kind: output, shape index: {2}]
  %s4 = inlined_call_operand.hbm [shape: f32[1,1,1,8], index: 4, kind: output, shape index: {3}]
  %5 = xla_tuple %s1, %s2, %s3, %s4
  %s6 = sld [smem:[#allocation0]]
  $region38: #{tpu_custom_call.1} parent=0
    _
  %s8 = ssub.s32 1, %s6
  %s9 = scalar_select 0, %s8, %s6
  $region1: #{tpu_custom_call.1} parent=0
    #allocation3 [shape = 'u8[8192]{0}', space=vmem, size = 0x2000, scoped, tag = 'output window, operand 0, single buffered']
    #allocation4 [shape = 's32[1]{0}', space=sflag, size = 0x4, scoped, tag = 'scoped memory for tpu_custom_call.1']
    #allocation5 [shape = 'u8[2048]{0}', space=vmem, size = 0x800, scoped, tag = 'output window, operand 1, single buffered']
    #allocation6 [shape = 's32[1]{0}', space=sflag, size = 0x4, scoped, tag = 'scoped memory for tpu_custom_call.1']
    #allocation7 [shape = 'u8[512]{0}', space=vmem, size = 0x400, scoped, tag = 'output window, operand 2, single buffered']
    #allocation8 [shape = 'u8[512]{0}', space=vmem, size = 0x400, scoped, tag = 'output window, operand 3, single buffered']
    #allocation9 [shape = 's32[1]{0}', space=sflag, size = 0x4, scoped, tag = 'scoped memory for tpu_custom_call.1']
    %10 = vsyncpa [#allocation4], 0
    %11 = vsyncpa [#allocation6], 0
    %12 = vsyncpa [#allocation9], 0
    // Predicated region
    $region2: #{tpu_custom_call.1} parent=1 // pred_check
      _
    $region3: #{tpu_custom_call.1} parent=1 // pred_check_branch
      %14 = sbr.rel (0) target = $region5
    $region4: #{tpu_custom_call.1} parent=1 // pred_region
      _
    $region5: #{tpu_custom_call.1} parent=1 // pred_fallthru
      _
    %v15 = vld [vmem:[%s0] sm:$0x1]
    %v16 = vld [vmem:[%s0 + $0x1] sm:$0x1]
    %v17 = vld [vmem:[%s0 + $0x2] sm:$0x1]
    %v18 = vld [vmem:[%s0 + $0x3] sm:$0x1]
    %v19 = vld [vmem:[%s0 + $0x4] sm:$0x1]
    %v20 = vld [vmem:[%s0 + $0x5] sm:$0x1]
    %v21 = vld [vmem:[%s0 + $0x6] sm:$0x1]
    %v22 = vld [vmem:[%s0 + $0x7] sm:$0x1]
    %v23 = vld [vmem:[%s0 + $0x8] sm:$0x1]
    %v24 = vld [vmem:[%s0 + $0x9] sm:$0x1]
    %v25 = vld [vmem:[%s0 + $0xa] sm:$0x1]
    %v26 = vld [vmem:[%s0 + $0xb] sm:$0x1]
    %v27 = vld [vmem:[%s0 + $0xc] sm:$0x1]
    %v28 = vld [vmem:[%s0 + $0xd] sm:$0x1]
    %v29 = vld [vmem:[%s0 + $0xe] sm:$0x1]
    %v30 = vld [vmem:[%s0 + $0xf] sm:$0x1]
    %s31 = scalar_lea.vmem %s0, 16
    %v32 = vld [vmem:[%s31] sm:$0x1]
    %v33 = vld [vmem:[%s31 + $0x1] sm:$0x1]
    %v34 = vld [vmem:[%s31 + $0x2] sm:$0x1]
    %v35 = vld [vmem:[%s31 + $0x3] sm:$0x1]
    %v36 = vld [vmem:[%s31 + $0x4] sm:$0x1]
    %v37 = vld [vmem:[%s31 + $0x5] sm:$0x1]
    %v38 = vld [vmem:[%s31 + $0x6] sm:$0x1]
    %v39 = vld [vmem:[%s31 + $0x7] sm:$0x1]
    %v40 = vld [vmem:[%s31 + $0x8] sm:$0x1]
    %v41 = vld [vmem:[%s31 + $0x9] sm:$0x1]
    %v42 = vld [vmem:[%s31 + $0xa] sm:$0x1]
    %v43 = vld [vmem:[%s31 + $0xb] sm:$0x1]
    %v44 = vld [vmem:[%s31 + $0xc] sm:$0x1]
    %v45 = vld [vmem:[%s31 + $0xd] sm:$0x1]
    %v46 = vld [vmem:[%s31 + $0xe] sm:$0x1]
    %v47 = vld [vmem:[%s31 + $0xf] sm:$0x1]
    %v48 = vadd.f32 %v15, %v32
    %v49 = vadd.f32 %v16, %v33
    %v50 = vadd.f32 %v17, %v34
    %v51 = vadd.f32 %v18, %v35
    %v52 = vadd.f32 %v19, %v36
    %v53 = vadd.f32 %v20, %v37
    %v54 = vadd.f32 %v21, %v38
    %v55 = vadd.f32 %v22, %v39
    %v56 = vadd.f32 %v23, %v40
    %v57 = vadd.f32 %v24, %v41
    %v58 = vadd.f32 %v25, %v42
    %v59 = vadd.f32 %v26, %v43
    %v60 = vadd.f32 %v27, %v44
    %v61 = vadd.f32 %v28, %v45
    %v62 = vadd.f32 %v29, %v46
    %v63 = vadd.f32 %v30, %v47
    %v64 = vadd.f32 %v48, %v49
    %vm65 = vcmask 57344
    %66 = vst.msk [vmem:[#allocation2] sm:$0x1] %vm65, %v64
    %v67 = vadd.f32 %v49, %v50
    %v68 = vadd.f32 %v67, %v51
    %s69 = scalar_lea.vmem [#allocation2], 1
    %70 = vst.msk [vmem:[%s69] sm:$0x1] %vm65, %v68
    %v71 = vadd.f32 %v51, %v52
    %v72 = vadd.f32 %v71, %v53
    %s73 = scalar_lea.vmem [#allocation2], 2
    %74 = vst.msk [vmem:[%s73] sm:$0x1] %vm65, %v72
    %v75 = vadd.f32 %v53, %v54
    %v76 = vadd.f32 %v75, %v55
    %s77 = scalar_lea.vmem [#allocation2], 3
    %78 = vst.msk [vmem:[%s77] sm:$0x1] %vm65, %v76
    %v79 = vadd.f32 %v55, %v56
    %v80 = vadd.f32 %v79, %v57
    %s81 = scalar_lea.vmem [#allocation2], 4
    %82 = vst.msk [vmem:[%s81] sm:$0x1] %vm65, %v80
    %v83 = vadd.f32 %v57, %v58
    %v84 = vadd.f32 %v83, %v59
    %s85 = scalar_lea.vmem [#allocation2], 5
    %86 = vst.msk [vmem:[%s85] sm:$0x1] %vm65, %v84
    %v87 = vadd.f32 %v59, %v60
    %v88 = vadd.f32 %v87, %v61
    %s89 = scalar_lea.vmem [#allocation2], 6
    %90 = vst.msk [vmem:[%s89] sm:$0x1] %vm65, %v88
    %v91 = vadd.f32 %v61, %v62
    %v92 = vadd.f32 %v91, %v63
    %s93 = scalar_lea.vmem [#allocation2], 7
    %94 = vst.msk [vmem:[%s93] sm:$0x1] %vm65, %v92
    %v95 = vld [vmem:[%s31] sm:$0x1]
    %v96 = vld [vmem:[%s31 + $0x1] sm:$0x1]
    %v97 = vld [vmem:[%s31 + $0x2] sm:$0x1]
    %v98 = vld [vmem:[%s31 + $0x3] sm:$0x1]
    %v99 = vld [vmem:[%s31 + $0x4] sm:$0x1]
    %v100 = vld [vmem:[%s31 + $0x5] sm:$0x1]
    %v101 = vld [vmem:[%s31 + $0x6] sm:$0x1]
    %v102 = vld [vmem:[%s31 + $0x7] sm:$0x1]
    %v103 = vld [vmem:[%s31 + $0x8] sm:$0x1]
    %v104 = vld [vmem:[%s31 + $0x9] sm:$0x1]
    %v105 = vld [vmem:[%s31 + $0xa] sm:$0x1]
    %v106 = vld [vmem:[%s31 + $0xb] sm:$0x1]
    %v107 = vld [vmem:[%s31 + $0xc] sm:$0x1]
    %v108 = vld [vmem:[%s31 + $0xd] sm:$0x1]
    %v109 = vld [vmem:[%s31 + $0xe] sm:$0x1]
    %v110 = vld [vmem:[%s31 + $0xf] sm:$0x1]
    %s111 = scalar_lea.vmem %s0, 32
    %v112 = vld [vmem:[%s111] sm:$0x1]
    %v113 = vld [vmem:[%s111 + $0x1] sm:$0x1]
    %v114 = vld [vmem:[%s111 + $0x2] sm:$0x1]
    %v115 = vld [vmem:[%s111 + $0x3] sm:$0x1]
    %v116 = vld [vmem:[%s111 + $0x4] sm:$0x1]
    %v117 = vld [vmem:[%s111 + $0x5] sm:$0x1]
    %v118 = vld [vmem:[%s111 + $0x6] sm:$0x1]
    %v119 = vld [vmem:[%s111 + $0x7] sm:$0x1]
    %v120 = vld [vmem:[%s111 + $0x8] sm:$0x1]
    %v121 = vld [vmem:[%s111 + $0x9] sm:$0x1]
    %v122 = vld [vmem:[%s111 + $0xa] sm:$0x1]
    %v123 = vld [vmem:[%s111 + $0xb] sm:$0x1]
    %v124 = vld [vmem:[%s111 + $0xc] sm:$0x1]
    %v125 = vld [vmem:[%s111 + $0xd] sm:$0x1]
    %v126 = vld [vmem:[%s111 + $0xe] sm:$0x1]
    %v127 = vld [vmem:[%s111 + $0xf] sm:$0x1]
    %v128 = vadd.f32 %v95, %v112
    %v129 = vadd.f32 %v96, %v113
    %v130 = vadd.f32 %v97, %v114
    %v131 = vadd.f32 %v98, %v115
    %v132 = vadd.f32 %v99, %v116
    %v133 = vadd.f32 %v100, %v117
    %v134 = vadd.f32 %v101, %v118
    %v135 = vadd.f32 %v102, %v119
    %v136 = vadd.f32 %v103, %v120
    %v137 = vadd.f32 %v104, %v121
    %v138 = vadd.f32 %v105, %v122
    %v139 = vadd.f32 %v106, %v123
    %v140 = vadd.f32 %v107, %v124
    %v141 = vadd.f32 %v108, %v125
    %v142 = vadd.f32 %v109, %v126
    %v143 = vadd.f32 %v110, %v127
    %s144 = scalar_lea.vmem %s0, 48
    %v145 = vld [vmem:[%s144] sm:$0x1]
    %v146 = vld [vmem:[%s144 + $0x1] sm:$0x1]
    %v147 = vld [vmem:[%s144 + $0x2] sm:$0x1]
    %v148 = vld [vmem:[%s144 + $0x3] sm:$0x1]
    %v149 = vld [vmem:[%s144 + $0x4] sm:$0x1]
    %v150 = vld [vmem:[%s144 + $0x5] sm:$0x1]
    %v151 = vld [vmem:[%s144 + $0x6] sm:$0x1]
    %v152 = vld [vmem:[%s144 + $0x7] sm:$0x1]
    %v153 = vld [vmem:[%s144 + $0x8] sm:$0x1]
    %v154 = vld [vmem:[%s144 + $0x9] sm:$0x1]
    %v155 = vld [vmem:[%s144 + $0xa] sm:$0x1]
    %v156 = vld [vmem:[%s144 + $0xb] sm:$0x1]
    %v157 = vld [vmem:[%s144 + $0xc] sm:$0x1]
    %v158 = vld [vmem:[%s144 + $0xd] sm:$0x1]
    %v159 = vld [vmem:[%s144 + $0xe] sm:$0x1]
    %v160 = vld [vmem:[%s144 + $0xf] sm:$0x1]
    %v161 = vadd.f32 %v128, %v145
    %v162 = vadd.f32 %v129, %v146
    %v163 = vadd.f32 %v130, %v147
    %v164 = vadd.f32 %v131, %v148
    %v165 = vadd.f32 %v132, %v149
    %v166 = vadd.f32 %v133, %v150
    %v167 = vadd.f32 %v134, %v151
    %v168 = vadd.f32 %v135, %v152
    %v169 = vadd.f32 %v136, %v153
    %v170 = vadd.f32 %v137, %v154
    %v171 = vadd.f32 %v138, %v155
    %v172 = vadd.f32 %v139, %v156
    %v173 = vadd.f32 %v140, %v157
    %v174 = vadd.f32 %v141, %v158
    %v175 = vadd.f32 %v142, %v159
    %v176 = vadd.f32 %v143, %v160
    %v177 = vadd.f32 %v161, %v162
    %s178 = scalar_lea.vmem [#allocation2], 8
    %179 = vst.msk [vmem:[%s178] sm:$0x1] %vm65, %v177
    %v180 = vadd.f32 %v162, %v163
    %v181 = vadd.f32 %v180, %v164
    %s182 = scalar_lea.vmem [#allocation2], 9
    %183 = vst.msk [vmem:[%s182] sm:$0x1] %vm65, %v181
    %v184 = vadd.f32 %v164, %v165
    %v185 = vadd.f32 %v184, %v166
    %s186 = scalar_lea.vmem [#allocation2], 10
    %187 = vst.msk [vmem:[%s186] sm:$0x1] %vm65, %v185
    %v188 = vadd.f32 %v166, %v167
    %v189 = vadd.f32 %v188, %v168
    %s190 = scalar_lea.vmem [#allocation2], 11
    %191 = vst.msk [vmem:[%s190] sm:$0x1] %vm65, %v189
    %v192 = vadd.f32 %v168, %v169
    %v193 = vadd.f32 %v192, %v170
    %s194 = scalar_lea.vmem [#allocation2], 12
    %195 = vst.msk [vmem:[%s194] sm:$0x1] %vm65, %v193
    %v196 = vadd.f32 %v170, %v171
    %v197 = vadd.f32 %v196, %v172
    %s198 = scalar_lea.vmem [#allocation2], 13
    %199 = vst.msk [vmem:[%s198] sm:$0x1] %vm65, %v197
    %v200 = vadd.f32 %v172, %v173
    %v201 = vadd.f32 %v200, %v174
    %s202 = scalar_lea.vmem [#allocation2], 14
    %203 = vst.msk [vmem:[%s202] sm:$0x1] %vm65, %v201
    %v204 = vadd.f32 %v174, %v175
    %v205 = vadd.f32 %v204, %v176
    %s206 = scalar_lea.vmem [#allocation2], 15
    %207 = vst.msk [vmem:[%s206] sm:$0x1] %vm65, %v205
    %v208 = vld [vmem:[%s144] sm:$0x1]
    %v209 = vld [vmem:[%s144 + $0x1] sm:$0x1]
    %v210 = vld [vmem:[%s144 + $0x2] sm:$0x1]
    %v211 = vld [vmem:[%s144 + $0x3] sm:$0x1]
    %v212 = vld [vmem:[%s144 + $0x4] sm:$0x1]
    %v213 = vld [vmem:[%s144 + $0x5] sm:$0x1]
    %v214 = vld [vmem:[%s144 + $0x6] sm:$0x1]
    %v215 = vld [vmem:[%s144 + $0x7] sm:$0x1]
    %v216 = vld [vmem:[%s144 + $0x8] sm:$0x1]
    %v217 = vld [vmem:[%s144 + $0x9] sm:$0x1]
    %v218 = vld [vmem:[%s144 + $0xa] sm:$0x1]
    %v219 = vld [vmem:[%s144 + $0xb] sm:$0x1]
    %v220 = vld [vmem:[%s144 + $0xc] sm:$0x1]
    %v221 = vld [vmem:[%s144 + $0xd] sm:$0x1]
    %v222 = vld [vmem:[%s144 + $0xe] sm:$0x1]
    %v223 = vld [vmem:[%s144 + $0xf] sm:$0x1]
    %s224 = scalar_lea.vmem %s0, 64
    %v225 = vld [vmem:[%s224] sm:$0x1]
    %v226 = vld [vmem:[%s224 + $0x1] sm:$0x1]
    %v227 = vld [vmem:[%s224 + $0x2] sm:$0x1]
    %v228 = vld [vmem:[%s224 + $0x3] sm:$0x1]
    %v229 = vld [vmem:[%s224 + $0x4] sm:$0x1]
    %v230 = vld [vmem:[%s224 + $0x5] sm:$0x1]
    %v231 = vld [vmem:[%s224 + $0x6] sm:$0x1]
    %v232 = vld [vmem:[%s224 + $0x7] sm:$0x1]
    %v233 = vld [vmem:[%s224 + $0x8] sm:$0x1]
    %v234 = vld [vmem:[%s224 + $0x9] sm:$0x1]
    %v235 = vld [vmem:[%s224 + $0xa] sm:$0x1]
    %v236 = vld [vmem:[%s224 + $0xb] sm:$0x1]
    %v237 = vld [vmem:[%s224 + $0xc] sm:$0x1]
    %v238 = vld [vmem:[%s224 + $0xd] sm:$0x1]
    %v239 = vld [vmem:[%s224 + $0xe] sm:$0x1]
    %v240 = vld [vmem:[%s224 + $0xf] sm:$0x1]
    %v241 = vadd.f32 %v208, %v225
    %v242 = vadd.f32 %v209, %v226
    %v243 = vadd.f32 %v210, %v227
    %v244 = vadd.f32 %v211, %v228
    %v245 = vadd.f32 %v212, %v229
    %v246 = vadd.f32 %v213, %v230
    %v247 = vadd.f32 %v214, %v231
    %v248 = vadd.f32 %v215, %v232
    %v249 = vadd.f32 %v216, %v233
    %v250 = vadd.f32 %v217, %v234
    %v251 = vadd.f32 %v218, %v235
    %v252 = vadd.f32 %v219, %v236
    %v253 = vadd.f32 %v220, %v237
    %v254 = vadd.f32 %v221, %v238
    %v255 = vadd.f32 %v222, %v239
    %v256 = vadd.f32 %v223, %v240
    %s257 = scalar_lea.vmem %s0, 80
    %v258 = vld [vmem:[%s257] sm:$0x1]
    %v259 = vld [vmem:[%s257 + $0x1] sm:$0x1]
    %v260 = vld [vmem:[%s257 + $0x2] sm:$0x1]
    %v261 = vld [vmem:[%s257 + $0x3] sm:$0x1]
    %v262 = vld [vmem:[%s257 + $0x4] sm:$0x1]
    %v263 = vld [vmem:[%s257 + $0x5] sm:$0x1]
    %v264 = vld [vmem:[%s257 + $0x6] sm:$0x1]
    %v265 = vld [vmem:[%s257 + $0x7] sm:$0x1]
    %v266 = vld [vmem:[%s257 + $0x8] sm:$0x1]
    %v267 = vld [vmem:[%s257 + $0x9] sm:$0x1]
    %v268 = vld [vmem:[%s257 + $0xa] sm:$0x1]
    %v269 = vld [vmem:[%s257 + $0xb] sm:$0x1]
    %v270 = vld [vmem:[%s257 + $0xc] sm:$0x1]
    %v271 = vld [vmem:[%s257 + $0xd] sm:$0x1]
    %v272 = vld [vmem:[%s257 + $0xe] sm:$0x1]
    %v273 = vld [vmem:[%s257 + $0xf] sm:$0x1]
    %v274 = vadd.f32 %v241, %v258
    %v275 = vadd.f32 %v242, %v259
    %v276 = vadd.f32 %v243, %v260
    %v277 = vadd.f32 %v244, %v261
    %v278 = vadd.f32 %v245, %v262
    %v279 = vadd.f32 %v246, %v263
    %v280 = vadd.f32 %v247, %v264
    %v281 = vadd.f32 %v248, %v265
    %v282 = vadd.f32 %v249, %v266
    %v283 = vadd.f32 %v250, %v267
    %v284 = vadd.f32 %v251, %v268
    %v285 = vadd.f32 %v252, %v269
    %v286 = vadd.f32 %v253, %v270
    %v287 = vadd.f32 %v254, %v271
    %v288 = vadd.f32 %v255, %v272
    %v289 = vadd.f32 %v256, %v273
    %v290 = vadd.f32 %v274, %v275
    %s291 = scalar_lea.vmem [#allocation2], 16
    %292 = vst.msk [vmem:[%s291] sm:$0x1] %vm65, %v290
    %v293 = vadd.f32 %v275, %v276
    %v294 = vadd.f32 %v293, %v277
    %s295 = scalar_lea.vmem [#allocation2], 17
    %296 = vst.msk [vmem:[%s295] sm:$0x1] %vm65, %v294
    %v297 = vadd.f32 %v277, %v278
    %v298 = vadd.f32 %v297, %v279
    %s299 = scalar_lea.vmem [#allocation2], 18
    %300 = vst.msk [vmem:[%s299] sm:$0x1] %vm65, %v298
    %v301 = vadd.f32 %v279, %v280
    %v302 = vadd.f32 %v301, %v281
    %s303 = scalar_lea.vmem [#allocation2], 19
    %304 = vst.msk [vmem:[%s303] sm:$0x1] %vm65, %v302
    %v305 = vadd.f32 %v281, %v282
    %v306 = vadd.f32 %v305, %v283
    %s307 = scalar_lea.vmem [#allocation2], 20
    %308 = vst.msk [vmem:[%s307] sm:$0x1] %vm65, %v306
    %v309 = vadd.f32 %v283, %v284
    %v310 = vadd.f32 %v309, %v285
    %s311 = scalar_lea.vmem [#allocation2], 21
    %312 = vst.msk [vmem:[%s311] sm:$0x1] %vm65, %v310
    %v313 = vadd.f32 %v285, %v286
    %v314 = vadd.f32 %v313, %v287
    %s315 = scalar_lea.vmem [#allocation2], 22
    %316 = vst.msk [vmem:[%s315] sm:$0x1] %vm65, %v314
    %v317 = vadd.f32 %v287, %v288
    %v318 = vadd.f32 %v317, %v289
    %s319 = scalar_lea.vmem [#allocation2], 23
    %320 = vst.msk [vmem:[%s319] sm:$0x1] %vm65, %v318
    %v321 = vld [vmem:[%s257] sm:$0x1]
    %v322 = vld [vmem:[%s257 + $0x1] sm:$0x1]
    %v323 = vld [vmem:[%s257 + $0x2] sm:$0x1]
    %v324 = vld [vmem:[%s257 + $0x3] sm:$0x1]
    %v325 = vld [vmem:[%s257 + $0x4] sm:$0x1]
    %v326 = vld [vmem:[%s257 + $0x5] sm:$0x1]
    %v327 = vld [vmem:[%s257 + $0x6] sm:$0x1]
    %v328 = vld [vmem:[%s257 + $0x7] sm:$0x1]
    %v329 = vld [vmem:[%s257 + $0x8] sm:$0x1]
    %v330 = vld [vmem:[%s257 + $0x9] sm:$0x1]
    %v331 = vld [vmem:[%s257 + $0xa] sm:$0x1]
    %v332 = vld [vmem:[%s257 + $0xb] sm:$0x1]
    %v333 = vld [vmem:[%s257 + $0xc] sm:$0x1]
    %v334 = vld [vmem:[%s257 + $0xd] sm:$0x1]
    %v335 = vld [vmem:[%s257 + $0xe] sm:$0x1]
    %v336 = vld [vmem:[%s257 + $0xf] sm:$0x1]
    %s337 = scalar_lea.vmem %s0, 96
    %v338 = vld [vmem:[%s337] sm:$0x1]
    %v339 = vld [vmem:[%s337 + $0x1] sm:$0x1]
    %v340 = vld [vmem:[%s337 + $0x2] sm:$0x1]
    %v341 = vld [vmem:[%s337 + $0x3] sm:$0x1]
    %v342 = vld [vmem:[%s337 + $0x4] sm:$0x1]
    %v343 = vld [vmem:[%s337 + $0x5] sm:$0x1]
    %v344 = vld [vmem:[%s337 + $0x6] sm:$0x1]
    %v345 = vld [vmem:[%s337 + $0x7] sm:$0x1]
    %v346 = vld [vmem:[%s337 + $0x8] sm:$0x1]
    %v347 = vld [vmem:[%s337 + $0x9] sm:$0x1]
    %v348 = vld [vmem:[%s337 + $0xa] sm:$0x1]
    %v349 = vld [vmem:[%s337 + $0xb] sm:$0x1]
    %v350 = vld [vmem:[%s337 + $0xc] sm:$0x1]
    %v351 = vld [vmem:[%s337 + $0xd] sm:$0x1]
    %v352 = vld [vmem:[%s337 + $0xe] sm:$0x1]
    %v353 = vld [vmem:[%s337 + $0xf] sm:$0x1]
    %v354 = vadd.f32 %v321, %v338
    %v355 = vadd.f32 %v322, %v339
    %v356 = vadd.f32 %v323, %v340
    %v357 = vadd.f32 %v324, %v341
    %v358 = vadd.f32 %v325, %v342
    %v359 = vadd.f32 %v326, %v343
    %v360 = vadd.f32 %v327, %v344
    %v361 = vadd.f32 %v328, %v345
    %v362 = vadd.f32 %v329, %v346
    %v363 = vadd.f32 %v330, %v347
    %v364 = vadd.f32 %v331, %v348
    %v365 = vadd.f32 %v332, %v349
    %v366 = vadd.f32 %v333, %v350
    %v367 = vadd.f32 %v334, %v351
    %v368 = vadd.f32 %v335, %v352
    %v369 = vadd.f32 %v336, %v353
    %s370 = scalar_lea.vmem %s0, 112
    %v371 = vld [vmem:[%s370] sm:$0x1]
    %v372 = vld [vmem:[%s370 + $0x1] sm:$0x1]
    %v373 = vld [vmem:[%s370 + $0x2] sm:$0x1]
    %v374 = vld [vmem:[%s370 + $0x3] sm:$0x1]
    %v375 = vld [vmem:[%s370 + $0x4] sm:$0x1]
    %v376 = vld [vmem:[%s370 + $0x5] sm:$0x1]
    %v377 = vld [vmem:[%s370 + $0x6] sm:$0x1]
    %v378 = vld [vmem:[%s370 + $0x7] sm:$0x1]
    %v379 = vld [vmem:[%s370 + $0x8] sm:$0x1]
    %v380 = vld [vmem:[%s370 + $0x9] sm:$0x1]
    %v381 = vld [vmem:[%s370 + $0xa] sm:$0x1]
    %v382 = vld [vmem:[%s370 + $0xb] sm:$0x1]
    %v383 = vld [vmem:[%s370 + $0xc] sm:$0x1]
    %v384 = vld [vmem:[%s370 + $0xd] sm:$0x1]
    %v385 = vld [vmem:[%s370 + $0xe] sm:$0x1]
    %v386 = vld [vmem:[%s370 + $0xf] sm:$0x1]
    %v387 = vadd.f32 %v354, %v371
    %v388 = vadd.f32 %v355, %v372
    %v389 = vadd.f32 %v356, %v373
    %v390 = vadd.f32 %v357, %v374
    %v391 = vadd.f32 %v358, %v375
    %v392 = vadd.f32 %v359, %v376
    %v393 = vadd.f32 %v360, %v377
    %v394 = vadd.f32 %v361, %v378
    %v395 = vadd.f32 %v362, %v379
    %v396 = vadd.f32 %v363, %v380
    %v397 = vadd.f32 %v364, %v381
    %v398 = vadd.f32 %v365, %v382
    %v399 = vadd.f32 %v366, %v383
    %v400 = vadd.f32 %v367, %v384
    %v401 = vadd.f32 %v368, %v385
    %v402 = vadd.f32 %v369, %v386
    %v403 = vadd.f32 %v387, %v388
    %s404 = scalar_lea.vmem [#allocation2], 24
    %405 = vst.msk [vmem:[%s404] sm:$0x1] %vm65, %v403
    %v406 = vadd.f32 %v388, %v389
    %v407 = vadd.f32 %v406, %v390
    %s408 = scalar_lea.vmem [#allocation2], 25
    %409 = vst.msk [vmem:[%s408] sm:$0x1] %vm65, %v407
    %v410 = vadd.f32 %v390, %v391
    %v411 = vadd.f32 %v410, %v392
    %s412 = scalar_lea.vmem [#allocation2], 26
    %413 = vst.msk [vmem:[%s412] sm:$0x1] %vm65, %v411
    %v414 = vadd.f32 %v392, %v393
    %v415 = vadd.f32 %v414, %v394
    %s416 = scalar_lea.vmem [#allocation2], 27
    %417 = vst.msk [vmem:[%s416] sm:$0x1] %vm65, %v415
    %v418 = vadd.f32 %v394, %v395
    %v419 = vadd.f32 %v418, %v396
    %s420 = scalar_lea.vmem [#allocation2], 28
    %421 = vst.msk [vmem:[%s420] sm:$0x1] %vm65, %v419
    %v422 = vadd.f32 %v396, %v397
    %v423 = vadd.f32 %v422, %v398
    %s424 = scalar_lea.vmem [#allocation2], 29
    %425 = vst.msk [vmem:[%s424] sm:$0x1] %vm65, %v423
    %v426 = vadd.f32 %v398, %v399
    %v427 = vadd.f32 %v426, %v400
    %s428 = scalar_lea.vmem [#allocation2], 30
    %429 = vst.msk [vmem:[%s428] sm:$0x1] %vm65, %v427
    %v430 = vadd.f32 %v400, %v401
    %v431 = vadd.f32 %v430, %v402
    %s432 = scalar_lea.vmem [#allocation2], 31
    %433 = vst.msk [vmem:[%s432] sm:$0x1] %vm65, %v431
    %v434 = vld [vmem:[%s370] sm:$0x1]
    %v435 = vld [vmem:[%s370 + $0x1] sm:$0x1]
    %v436 = vld [vmem:[%s370 + $0x2] sm:$0x1]
    %v437 = vld [vmem:[%s370 + $0x3] sm:$0x1]
    %v438 = vld [vmem:[%s370 + $0x4] sm:$0x1]
    %v439 = vld [vmem:[%s370 + $0x5] sm:$0x1]
    %v440 = vld [vmem:[%s370 + $0x6] sm:$0x1]
    %v441 = vld [vmem:[%s370 + $0x7] sm:$0x1]
    %v442 = vld [vmem:[%s370 + $0x8] sm:$0x1]
    %v443 = vld [vmem:[%s370 + $0x9] sm:$0x1]
    %v444 = vld [vmem:[%s370 + $0xa] sm:$0x1]
    %v445 = vld [vmem:[%s370 + $0xb] sm:$0x1]
    %v446 = vld [vmem:[%s370 + $0xc] sm:$0x1]
    %v447 = vld [vmem:[%s370 + $0xd] sm:$0x1]
    %v448 = vld [vmem:[%s370 + $0xe] sm:$0x1]
    %v449 = vld [vmem:[%s370 + $0xf] sm:$0x1]
    %s450 = scalar_lea.vmem %s0, 128
    %v451 = vld [vmem:[%s450] sm:$0x1]
    %v452 = vld [vmem:[%s450 + $0x1] sm:$0x1]
    %v453 = vld [vmem:[%s450 + $0x2] sm:$0x1]
    %v454 = vld [vmem:[%s450 + $0x3] sm:$0x1]
    %v455 = vld [vmem:[%s450 + $0x4] sm:$0x1]
    %v456 = vld [vmem:[%s450 + $0x5] sm:$0x1]
    %v457 = vld [vmem:[%s450 + $0x6] sm:$0x1]
    %v458 = vld [vmem:[%s450 + $0x7] sm:$0x1]
    %v459 = vld [vmem:[%s450 + $0x8] sm:$0x1]
    %v460 = vld [vmem:[%s450 + $0x9] sm:$0x1]
    %v461 = vld [vmem:[%s450 + $0xa] sm:$0x1]
    %v462 = vld [vmem:[%s450 + $0xb] sm:$0x1]
    %v463 = vld [vmem:[%s450 + $0xc] sm:$0x1]
    %v464 = vld [vmem:[%s450 + $0xd] sm:$0x1]
    %v465 = vld [vmem:[%s450 + $0xe] sm:$0x1]
    %v466 = vld [vmem:[%s450 + $0xf] sm:$0x1]
    %v467 = vadd.f32 %v434, %v451
    %v468 = vadd.f32 %v435, %v452
    %v469 = vadd.f32 %v436, %v453
    %v470 = vadd.f32 %v437, %v454
    %v471 = vadd.f32 %v438, %v455
    %v472 = vadd.f32 %v439, %v456
    %v473 = vadd.f32 %v440, %v457
    %v474 = vadd.f32 %v441, %v458
    %v475 = vadd.f32 %v442, %v459
    %v476 = vadd.f32 %v443, %v460
    %v477 = vadd.f32 %v444, %v461
    %v478 = vadd.f32 %v445, %v462
    %v479 = vadd.f32 %v446, %v463
    %v480 = vadd.f32 %v447, %v464
    %v481 = vadd.f32 %v448, %v465
    %v482 = vadd.f32 %v449, %v466
    %s483 = scalar_lea.vmem %s0, 144
    %v484 = vld [vmem:[%s483] sm:$0x1]
    %v485 = vld [vmem:[%s483 + $0x1] sm:$0x1]
    %v486 = vld [vmem:[%s483 + $0x2] sm:$0x1]
    %v487 = vld [vmem:[%s483 + $0x3] sm:$0x1]
    %v488 = vld [vmem:[%s483 + $0x4] sm:$0x1]
    %v489 = vld [vmem:[%s483 + $0x5] sm:$0x1]
    %v490 = vld [vmem:[%s483 + $0x6] sm:$0x1]
    %v491 = vld [vmem:[%s483 + $0x7] sm:$0x1]
    %v492 = vld [vmem:[%s483 + $0x8] sm:$0x1]
    %v493 = vld [vmem:[%s483 + $0x9] sm:$0x1]
    %v494 = vld [vmem:[%s483 + $0xa] sm:$0x1]
    %v495 = vld [vmem:[%s483 + $0xb] sm:$0x1]
    %v496 = vld [vmem:[%s483 + $0xc] sm:$0x1]
    %v497 = vld [vmem:[%s483 + $0xd] sm:$0x1]
    %v498 = vld [vmem:[%s483 + $0xe] sm:$0x1]
    %v499 = vld [vmem:[%s483 + $0xf] sm:$0x1]
    %v500 = vadd.f32 %v467, %v484
    %v501 = vadd.f32 %v468, %v485
    %v502 = vadd.f32 %v469, %v486
    %v503 = vadd.f32 %v470, %v487
    %v504 = vadd.f32 %v471, %v488
    %v505 = vadd.f32 %v472, %v489
    %v506 = vadd.f32 %v473, %v490
    %v507 = vadd.f32 %v474, %v491
    %v508 = vadd.f32 %v475, %v492
    %v509 = vadd.f32 %v476, %v493
    %v510 = vadd.f32 %v477, %v494
    %v511 = vadd.f32 %v478, %v495
    %v512 = vadd.f32 %v479, %v496
    %v513 = vadd.f32 %v480, %v497
    %v514 = vadd.f32 %v481, %v498
    %v515 = vadd.f32 %v482, %v499
    %v516 = vadd.f32 %v500, %v501
    %s517 = scalar_lea.vmem [#allocation2], 32
    %518 = vst.msk [vmem:[%s517] sm:$0x1] %vm65, %v516
    %v519 = vadd.f32 %v501, %v502
    %v520 = vadd.f32 %v519, %v503
    %s521 = scalar_lea.vmem [#allocation2], 33
    %522 = vst.msk [vmem:[%s521] sm:$0x1] %vm65, %v520
    %v523 = vadd.f32 %v503, %v504
    %v524 = vadd.f32 %v523, %v505
    %s525 = scalar_lea.vmem [#allocation2], 34
    %526 = vst.msk [vmem:[%s525] sm:$0x1] %vm65, %v524
    %v527 = vadd.f32 %v505, %v506
    %v528 = vadd.f32 %v527, %v507
    %s529 = scalar_lea.vmem [#allocation2], 35
    %530 = vst.msk [vmem:[%s529] sm:$0x1] %vm65, %v528
    %v531 = vadd.f32 %v507, %v508
    %v532 = vadd.f32 %v531, %v509
    %s533 = scalar_lea.vmem [#allocation2], 36
    %534 = vst.msk [vmem:[%s533] sm:$0x1] %vm65, %v532
    %v535 = vadd.f32 %v509, %v510
    %v536 = vadd.f32 %v535, %v511
    %s537 = scalar_lea.vmem [#allocation2], 37
    %538 = vst.msk [vmem:[%s537] sm:$0x1] %vm65, %v536
    %v539 = vadd.f32 %v511, %v512
    %v540 = vadd.f32 %v539, %v513
    %s541 = scalar_lea.vmem [#allocation2], 38
    %542 = vst.msk [vmem:[%s541] sm:$0x1] %vm65, %v540
    %v543 = vadd.f32 %v513, %v514
    %v544 = vadd.f32 %v543, %v515
    %s545 = scalar_lea.vmem [#allocation2], 39
    %546 = vst.msk [vmem:[%s545] sm:$0x1] %vm65, %v544
    %v547 = vld [vmem:[%s483] sm:$0x1]
    %v548 = vld [vmem:[%s483 + $0x1] sm:$0x1]
    %v549 = vld [vmem:[%s483 + $0x2] sm:$0x1]
    %v550 = vld [vmem:[%s483 + $0x3] sm:$0x1]
    %v551 = vld [vmem:[%s483 + $0x4] sm:$0x1]
    %v552 = vld [vmem:[%s483 + $0x5] sm:$0x1]
    %v553 = vld [vmem:[%s483 + $0x6] sm:$0x1]
    %v554 = vld [vmem:[%s483 + $0x7] sm:$0x1]
    %v555 = vld [vmem:[%s483 + $0x8] sm:$0x1]
    %v556 = vld [vmem:[%s483 + $0x9] sm:$0x1]
    %v557 = vld [vmem:[%s483 + $0xa] sm:$0x1]
    %v558 = vld [vmem:[%s483 + $0xb] sm:$0x1]
    %v559 = vld [vmem:[%s483 + $0xc] sm:$0x1]
    %v560 = vld [vmem:[%s483 + $0xd] sm:$0x1]
    %v561 = vld [vmem:[%s483 + $0xe] sm:$0x1]
    %v562 = vld [vmem:[%s483 + $0xf] sm:$0x1]
    %s563 = scalar_lea.vmem %s0, 160
    %v564 = vld [vmem:[%s563] sm:$0x1]
    %v565 = vld [vmem:[%s563 + $0x1] sm:$0x1]
    %v566 = vld [vmem:[%s563 + $0x2] sm:$0x1]
    %v567 = vld [vmem:[%s563 + $0x3] sm:$0x1]
    %v568 = vld [vmem:[%s563 + $0x4] sm:$0x1]
    %v569 = vld [vmem:[%s563 + $0x5] sm:$0x1]
    %v570 = vld [vmem:[%s563 + $0x6] sm:$0x1]
    %v571 = vld [vmem:[%s563 + $0x7] sm:$0x1]
    %v572 = vld [vmem:[%s563 + $0x8] sm:$0x1]
    %v573 = vld [vmem:[%s563 + $0x9] sm:$0x1]
    %v574 = vld [vmem:[%s563 + $0xa] sm:$0x1]
    %v575 = vld [vmem:[%s563 + $0xb] sm:$0x1]
    %v576 = vld [vmem:[%s563 + $0xc] sm:$0x1]
    %v577 = vld [vmem:[%s563 + $0xd] sm:$0x1]
    %v578 = vld [vmem:[%s563 + $0xe] sm:$0x1]
    %v579 = vld [vmem:[%s563 + $0xf] sm:$0x1]
    %v580 = vadd.f32 %v547, %v564
    %v581 = vadd.f32 %v548, %v565
    %v582 = vadd.f32 %v549, %v566
    %v583 = vadd.f32 %v550, %v567
    %v584 = vadd.f32 %v551, %v568
    %v585 = vadd.f32 %v552, %v569
    %v586 = vadd.f32 %v553, %v570
    %v587 = vadd.f32 %v554, %v571
    %v588 = vadd.f32 %v555, %v572
    %v589 = vadd.f32 %v556, %v573
    %v590 = vadd.f32 %v557, %v574
    %v591 = vadd.f32 %v558, %v575
    %v592 = vadd.f32 %v559, %v576
    %v593 = vadd.f32 %v560, %v577
    %v594 = vadd.f32 %v561, %v578
    %v595 = vadd.f32 %v562, %v579
    %s596 = scalar_lea.vmem %s0, 176
    %v597 = vld [vmem:[%s596] sm:$0x1]
    %v598 = vld [vmem:[%s596 + $0x1] sm:$0x1]
    %v599 = vld [vmem:[%s596 + $0x2] sm:$0x1]
    %v600 = vld [vmem:[%s596 + $0x3] sm:$0x1]
    %v601 = vld [vmem:[%s596 + $0x4] sm:$0x1]
    %v602 = vld [vmem:[%s596 + $0x5] sm:$0x1]
    %v603 = vld [vmem:[%s596 + $0x6] sm:$0x1]
    %v604 = vld [vmem:[%s596 + $0x7] sm:$0x1]
    %v605 = vld [vmem:[%s596 + $0x8] sm:$0x1]
    %v606 = vld [vmem:[%s596 + $0x9] sm:$0x1]
    %v607 = vld [vmem:[%s596 + $0xa] sm:$0x1]
    %v608 = vld [vmem:[%s596 + $0xb] sm:$0x1]
    %v609 = vld [vmem:[%s596 + $0xc] sm:$0x1]
    %v610 = vld [vmem:[%s596 + $0xd] sm:$0x1]
    %v611 = vld [vmem:[%s596 + $0xe] sm:$0x1]
    %v612 = vld [vmem:[%s596 + $0xf] sm:$0x1]
    %v613 = vadd.f32 %v580, %v597
    %v614 = vadd.f32 %v581, %v598
    %v615 = vadd.f32 %v582, %v599
    %v616 = vadd.f32 %v583, %v600
    %v617 = vadd.f32 %v584, %v601
    %v618 = vadd.f32 %v585, %v602
    %v619 = vadd.f32 %v586, %v603
    %v620 = vadd.f32 %v587, %v604
    %v621 = vadd.f32 %v588, %v605
    %v622 = vadd.f32 %v589, %v606
    %v623 = vadd.f32 %v590, %v607
    %v624 = vadd.f32 %v591, %v608
    %v625 = vadd.f32 %v592, %v609
    %v626 = vadd.f32 %v593, %v610
    %v627 = vadd.f32 %v594, %v611
    %v628 = vadd.f32 %v595, %v612
    %v629 = vadd.f32 %v613, %v614
    %s630 = scalar_lea.vmem [#allocation2], 40
    %631 = vst.msk [vmem:[%s630] sm:$0x1] %vm65, %v629
    %v632 = vadd.f32 %v614, %v615
    %v633 = vadd.f32 %v632, %v616
    %s634 = scalar_lea.vmem [#allocation2], 41
    %635 = vst.msk [vmem:[%s634] sm:$0x1] %vm65, %v633
    %v636 = vadd.f32 %v616, %v617
    %v637 = vadd.f32 %v636, %v618
    %s638 = scalar_lea.vmem [#allocation2], 42
    %639 = vst.msk [vmem:[%s638] sm:$0x1] %vm65, %v637
    %v640 = vadd.f32 %v618, %v619
    %v641 = vadd.f32 %v640, %v620
    %s642 = scalar_lea.vmem [#allocation2], 43
    %643 = vst.msk [vmem:[%s642] sm:$0x1] %vm65, %v641
    %v644 = vadd.f32 %v620, %v621
    %v645 = vadd.f32 %v644, %v622
    %s646 = scalar_lea.vmem [#allocation2], 44
    %647 = vst.msk [vmem:[%s646] sm:$0x1] %vm65, %v645
    %v648 = vadd.f32 %v622, %v623
    %v649 = vadd.f32 %v648, %v624
    %s650 = scalar_lea.vmem [#allocation2], 45
    %651 = vst.msk [vmem:[%s650] sm:$0x1] %vm65, %v649
    %v652 = vadd.f32 %v624, %v625
    %v653 = vadd.f32 %v652, %v626
    %s654 = scalar_lea.vmem [#allocation2], 46
    %655 = vst.msk [vmem:[%s654] sm:$0x1] %vm65, %v653
    %v656 = vadd.f32 %v626, %v627
    %v657 = vadd.f32 %v656, %v628
    %s658 = scalar_lea.vmem [#allocation2], 47
    %659 = vst.msk [vmem:[%s658] sm:$0x1] %vm65, %v657
    %v660 = vld [vmem:[%s596] sm:$0x1]
    %v661 = vld [vmem:[%s596 + $0x1] sm:$0x1]
    %v662 = vld [vmem:[%s596 + $0x2] sm:$0x1]
    %v663 = vld [vmem:[%s596 + $0x3] sm:$0x1]
    %v664 = vld [vmem:[%s596 + $0x4] sm:$0x1]
    %v665 = vld [vmem:[%s596 + $0x5] sm:$0x1]
    %v666 = vld [vmem:[%s596 + $0x6] sm:$0x1]
    %v667 = vld [vmem:[%s596 + $0x7] sm:$0x1]
    %v668 = vld [vmem:[%s596 + $0x8] sm:$0x1]
    %v669 = vld [vmem:[%s596 + $0x9] sm:$0x1]
    %v670 = vld [vmem:[%s596 + $0xa] sm:$0x1]
    %v671 = vld [vmem:[%s596 + $0xb] sm:$0x1]
    %v672 = vld [vmem:[%s596 + $0xc] sm:$0x1]
    %v673 = vld [vmem:[%s596 + $0xd] sm:$0x1]
    %v674 = vld [vmem:[%s596 + $0xe] sm:$0x1]
    %v675 = vld [vmem:[%s596 + $0xf] sm:$0x1]
    %s676 = scalar_lea.vmem %s0, 192
    %v677 = vld [vmem:[%s676] sm:$0x1]
    %v678 = vld [vmem:[%s676 + $0x1] sm:$0x1]
    %v679 = vld [vmem:[%s676 + $0x2] sm:$0x1]
    %v680 = vld [vmem:[%s676 + $0x3] sm:$0x1]
    %v681 = vld [vmem:[%s676 + $0x4] sm:$0x1]
    %v682 = vld [vmem:[%s676 + $0x5] sm:$0x1]
    %v683 = vld [vmem:[%s676 + $0x6] sm:$0x1]
    %v684 = vld [vmem:[%s676 + $0x7] sm:$0x1]
    %v685 = vld [vmem:[%s676 + $0x8] sm:$0x1]
    %v686 = vld [vmem:[%s676 + $0x9] sm:$0x1]
    %v687 = vld [vmem:[%s676 + $0xa] sm:$0x1]
    %v688 = vld [vmem:[%s676 + $0xb] sm:$0x1]
    %v689 = vld [vmem:[%s676 + $0xc] sm:$0x1]
    %v690 = vld [vmem:[%s676 + $0xd] sm:$0x1]
    %v691 = vld [vmem:[%s676 + $0xe] sm:$0x1]
    %v692 = vld [vmem:[%s676 + $0xf] sm:$0x1]
    %v693 = vadd.f32 %v660, %v677
    %v694 = vadd.f32 %v661, %v678
    %v695 = vadd.f32 %v662, %v679
    %v696 = vadd.f32 %v663, %v680
    %v697 = vadd.f32 %v664, %v681
    %v698 = vadd.f32 %v665, %v682
    %v699 = vadd.f32 %v666, %v683
    %v700 = vadd.f32 %v667, %v684
    %v701 = vadd.f32 %v668, %v685
    %v702 = vadd.f32 %v669, %v686
    %v703 = vadd.f32 %v670, %v687
    %v704 = vadd.f32 %v671, %v688
    %v705 = vadd.f32 %v672, %v689
    %v706 = vadd.f32 %v673, %v690
    %v707 = vadd.f32 %v674, %v691
    %v708 = vadd.f32 %v675, %v692
    %s709 = scalar_lea.vmem %s0, 208
    %v710 = vld [vmem:[%s709] sm:$0x1]
    %v711 = vld [vmem:[%s709 + $0x1] sm:$0x1]
    %v712 = vld [vmem:[%s709 + $0x2] sm:$0x1]
    %v713 = vld [vmem:[%s709 + $0x3] sm:$0x1]
    %v714 = vld [vmem:[%s709 + $0x4] sm:$0x1]
    %v715 = vld [vmem:[%s709 + $0x5] sm:$0x1]
    %v716 = vld [vmem:[%s709 + $0x6] sm:$0x1]
    %v717 = vld [vmem:[%s709 + $0x7] sm:$0x1]
    %v718 = vld [vmem:[%s709 + $0x8] sm:$0x1]
    %v719 = vld [vmem:[%s709 + $0x9] sm:$0x1]
    %v720 = vld [vmem:[%s709 + $0xa] sm:$0x1]
    %v721 = vld [vmem:[%s709 + $0xb] sm:$0x1]
    %v722 = vld [vmem:[%s709 + $0xc] sm:$0x1]
    %v723 = vld [vmem:[%s709 + $0xd] sm:$0x1]
    %v724 = vld [vmem:[%s709 + $0xe] sm:$0x1]
    %v725 = vld [vmem:[%s709 + $0xf] sm:$0x1]
    %v726 = vadd.f32 %v693, %v710
    %v727 = vadd.f32 %v694, %v711
    %v728 = vadd.f32 %v695, %v712
    %v729 = vadd.f32 %v696, %v713
    %v730 = vadd.f32 %v697, %v714
    %v731 = vadd.f32 %v698, %v715
    %v732 = vadd.f32 %v699, %v716
    %v733 = vadd.f32 %v700, %v717
    %v734 = vadd.f32 %v701, %v718
    %v735 = vadd.f32 %v702, %v719
    %v736 = vadd.f32 %v703, %v720
    %v737 = vadd.f32 %v704, %v721
    %v738 = vadd.f32 %v705, %v722
    %v739 = vadd.f32 %v706, %v723
    %v740 = vadd.f32 %v707, %v724
    %v741 = vadd.f32 %v708, %v725
    %v742 = vadd.f32 %v726, %v727
    %s743 = scalar_lea.vmem [#allocation2], 48
    %744 = vst.msk [vmem:[%s743] sm:$0x1] %vm65, %v742
    %v745 = vadd.f32 %v727, %v728
    %v746 = vadd.f32 %v745, %v729
    %s747 = scalar_lea.vmem [#allocation2], 49
    %748 = vst.msk [vmem:[%s747] sm:$0x1] %vm65, %v746
    %v749 = vadd.f32 %v729, %v730
    %v750 = vadd.f32 %v749, %v731
    %s751 = scalar_lea.vmem [#allocation2], 50
    %752 = vst.msk [vmem:[%s751] sm:$0x1] %vm65, %v750
    %v753 = vadd.f32 %v731, %v732
    %v754 = vadd.f32 %v753, %v733
    %s755 = scalar_lea.vmem [#allocation2], 51
    %756 = vst.msk [vmem:[%s755] sm:$0x1] %vm65, %v754
    %v757 = vadd.f32 %v733, %v734
    %v758 = vadd.f32 %v757, %v735
    %s759 = scalar_lea.vmem [#allocation2], 52
    %760 = vst.msk [vmem:[%s759] sm:$0x1] %vm65, %v758
    %v761 = vadd.f32 %v735, %v736
    %v762 = vadd.f32 %v761, %v737
    %s763 = scalar_lea.vmem [#allocation2], 53
    %764 = vst.msk [vmem:[%s763] sm:$0x1] %vm65, %v762
    %v765 = vadd.f32 %v737, %v738
    %v766 = vadd.f32 %v765, %v739
    %s767 = scalar_lea.vmem [#allocation2], 54
    %768 = vst.msk [vmem:[%s767] sm:$0x1] %vm65, %v766
    %v769 = vadd.f32 %v739, %v740
    %v770 = vadd.f32 %v769, %v741
    %s771 = scalar_lea.vmem [#allocation2], 55
    %772 = vst.msk [vmem:[%s771] sm:$0x1] %vm65, %v770
    %v773 = vld [vmem:[%s709] sm:$0x1]
    %v774 = vld [vmem:[%s709 + $0x1] sm:$0x1]
    %v775 = vld [vmem:[%s709 + $0x2] sm:$0x1]
    %v776 = vld [vmem:[%s709 + $0x3] sm:$0x1]
    %v777 = vld [vmem:[%s709 + $0x4] sm:$0x1]
    %v778 = vld [vmem:[%s709 + $0x5] sm:$0x1]
    %v779 = vld [vmem:[%s709 + $0x6] sm:$0x1]
    %v780 = vld [vmem:[%s709 + $0x7] sm:$0x1]
    %v781 = vld [vmem:[%s709 + $0x8] sm:$0x1]
    %v782 = vld [vmem:[%s709 + $0x9] sm:$0x1]
    %v783 = vld [vmem:[%s709 + $0xa] sm:$0x1]
    %v784 = vld [vmem:[%s709 + $0xb] sm:$0x1]
    %v785 = vld [vmem:[%s709 + $0xc] sm:$0x1]
    %v786 = vld [vmem:[%s709 + $0xd] sm:$0x1]
    %v787 = vld [vmem:[%s709 + $0xe] sm:$0x1]
    %v788 = vld [vmem:[%s709 + $0xf] sm:$0x1]
    %s789 = scalar_lea.vmem %s0, 224
    %v790 = vld [vmem:[%s789] sm:$0x1]
    %v791 = vld [vmem:[%s789 + $0x1] sm:$0x1]
    %v792 = vld [vmem:[%s789 + $0x2] sm:$0x1]
    %v793 = vld [vmem:[%s789 + $0x3] sm:$0x1]
    %v794 = vld [vmem:[%s789 + $0x4] sm:$0x1]
    %v795 = vld [vmem:[%s789 + $0x5] sm:$0x1]
    %v796 = vld [vmem:[%s789 + $0x6] sm:$0x1]
    %v797 = vld [vmem:[%s789 + $0x7] sm:$0x1]
    %v798 = vld [vmem:[%s789 + $0x8] sm:$0x1]
    %v799 = vld [vmem:[%s789 + $0x9] sm:$0x1]
    %v800 = vld [vmem:[%s789 + $0xa] sm:$0x1]
    %v801 = vld [vmem:[%s789 + $0xb] sm:$0x1]
    %v802 = vld [vmem:[%s789 + $0xc] sm:$0x1]
    %v803 = vld [vmem:[%s789 + $0xd] sm:$0x1]
    %v804 = vld [vmem:[%s789 + $0xe] sm:$0x1]
    %v805 = vld [vmem:[%s789 + $0xf] sm:$0x1]
    %v806 = vadd.f32 %v773, %v790
    %v807 = vadd.f32 %v774, %v791
    %v808 = vadd.f32 %v775, %v792
    %v809 = vadd.f32 %v776, %v793
    %v810 = vadd.f32 %v777, %v794
    %v811 = vadd.f32 %v778, %v795
    %v812 = vadd.f32 %v779, %v796
    %v813 = vadd.f32 %v780, %v797
    %v814 = vadd.f32 %v781, %v798
    %v815 = vadd.f32 %v782, %v799
    %v816 = vadd.f32 %v783, %v800
    %v817 = vadd.f32 %v784, %v801
    %v818 = vadd.f32 %v785, %v802
    %v819 = vadd.f32 %v786, %v803
    %v820 = vadd.f32 %v787, %v804
    %v821 = vadd.f32 %v788, %v805
    %s822 = scalar_lea.vmem %s0, 240
    %v823 = vld [vmem:[%s822] sm:$0x1]
    %v824 = vld [vmem:[%s822 + $0x1] sm:$0x1]
    %v825 = vld [vmem:[%s822 + $0x2] sm:$0x1]
    %v826 = vld [vmem:[%s822 + $0x3] sm:$0x1]
    %v827 = vld [vmem:[%s822 + $0x4] sm:$0x1]
    %v828 = vld [vmem:[%s822 + $0x5] sm:$0x1]
    %v829 = vld [vmem:[%s822 + $0x6] sm:$0x1]
    %v830 = vld [vmem:[%s822 + $0x7] sm:$0x1]
    %v831 = vld [vmem:[%s822 + $0x8] sm:$0x1]
    %v832 = vld [vmem:[%s822 + $0x9] sm:$0x1]
    %v833 = vld [vmem:[%s822 + $0xa] sm:$0x1]
    %v834 = vld [vmem:[%s822 + $0xb] sm:$0x1]
    %v835 = vld [vmem:[%s822 + $0xc] sm:$0x1]
    %v836 = vld [vmem:[%s822 + $0xd] sm:$0x1]
    %v837 = vld [vmem:[%s822 + $0xe] sm:$0x1]
    %v838 = vld [vmem:[%s822 + $0xf] sm:$0x1]
    %v839 = vadd.f32 %v806, %v823
    %v840 = vadd.f32 %v807, %v824
    %v841 = vadd.f32 %v808, %v825
    %v842 = vadd.f32 %v809, %v826
    %v843 = vadd.f32 %v810, %v827
    %v844 = vadd.f32 %v811, %v828
    %v845 = vadd.f32 %v812, %v829
    %v846 = vadd.f32 %v813, %v830
    %v847 = vadd.f32 %v814, %v831
    %v848 = vadd.f32 %v815, %v832
    %v849 = vadd.f32 %v816, %v833
    %v850 = vadd.f32 %v817, %v834
    %v851 = vadd.f32 %v818, %v835
    %v852 = vadd.f32 %v819, %v836
    %v853 = vadd.f32 %v820, %v837
    %v854 = vadd.f32 %v821, %v838
    %v855 = vadd.f32 %v839, %v840
    %s856 = scalar_lea.vmem [#allocation2], 56
    %857 = vst.msk [vmem:[%s856] sm:$0x1] %vm65, %v855
    %v858 = vadd.f32 %v840, %v841
    %v859 = vadd.f32 %v858, %v842
    %s860 = scalar_lea.vmem [#allocation2], 57
    %861 = vst.msk [vmem:[%s860] sm:$0x1] %vm65, %v859
    %v862 = vadd.f32 %v842, %v843
    %v863 = vadd.f32 %v862, %v844
    %s864 = scalar_lea.vmem [#allocation2], 58
    %865 = vst.msk [vmem:[%s864] sm:$0x1] %vm65, %v863
    %v866 = vadd.f32 %v844, %v845
    %v867 = vadd.f32 %v866, %v846
    %s868 = scalar_lea.vmem [#allocation2], 59
    %869 = vst.msk [vmem:[%s868] sm:$0x1] %vm65, %v867
    %v870 = vadd.f32 %v846, %v847
    %v871 = vadd.f32 %v870, %v848
    %s872 = scalar_lea.vmem [#allocation2], 60
    %873 = vst.msk [vmem:[%s872] sm:$0x1] %vm65, %v871
    %v874 = vadd.f32 %v848, %v849
    %v875 = vadd.f32 %v874, %v850
    %s876 = scalar_lea.vmem [#allocation2], 61
    %877 = vst.msk [vmem:[%s876] sm:$0x1] %vm65, %v875
    %v878 = vadd.f32 %v850, %v851
    %v879 = vadd.f32 %v878, %v852
    %s880 = scalar_lea.vmem [#allocation2], 62
    %881 = vst.msk [vmem:[%s880] sm:$0x1] %vm65, %v879
    %v882 = vadd.f32 %v852, %v853
    %v883 = vadd.f32 %v882, %v854
    %s884 = scalar_lea.vmem [#allocation2], 63
    %885 = vst.msk [vmem:[%s884] sm:$0x1] %vm65, %v883
    %v886 = vld [vmem:[#allocation2] sm:$0x1]
    %v887 = vld [vmem:[#allocation2 + $0x1] sm:$0x1]
    %v888 = vld [vmem:[#allocation2 + $0x2] sm:$0x1]
    %v889 = vld [vmem:[#allocation2 + $0x3] sm:$0x1]
    %v890 = vld [vmem:[#allocation2 + $0x4] sm:$0x1]
    %v891 = vld [vmem:[#allocation2 + $0x5] sm:$0x1]
    %v892 = vld [vmem:[#allocation2 + $0x6] sm:$0x1]
    %v893 = vld [vmem:[#allocation2 + $0x7] sm:$0x1]
    %v894 = vld [vmem:[%s178] sm:$0x1]
    %v895 = vld [vmem:[%s178 + $0x1] sm:$0x1]
    %v896 = vld [vmem:[%s178 + $0x2] sm:$0x1]
    %v897 = vld [vmem:[%s178 + $0x3] sm:$0x1]
    %v898 = vld [vmem:[%s178 + $0x4] sm:$0x1]
    %v899 = vld [vmem:[%s178 + $0x5] sm:$0x1]
    %v900 = vld [vmem:[%s178 + $0x6] sm:$0x1]
    %v901 = vld [vmem:[%s178 + $0x7] sm:$0x1]
    %v902 = vmax.f32 %v886, %v894
    %v903 = vmax.f32 %v887, %v895
    %v904 = vmax.f32 %v888, %v896
    %v905 = vmax.f32 %v889, %v897
    %v906 = vmax.f32 %v890, %v898
    %v907 = vmax.f32 %v891, %v899
    %v908 = vmax.f32 %v892, %v900
    %v909 = vmax.f32 %v893, %v901
    %v910 = vmax.f32 %v902, %v903
    %911 = vst.msk [vmem:[#allocation3] sm:$0x1] %vm65, %v910
    %v912 = vmax.f32 %v903, %v904
    %v913 = vmax.f32 %v912, %v905
    %s914 = scalar_lea.vmem [#allocation3], 1
    %915 = vst.msk [vmem:[%s914] sm:$0x1] %vm65, %v913
    %v916 = vmax.f32 %v905, %v906
    %v917 = vmax.f32 %v916, %v907
    %s918 = scalar_lea.vmem [#allocation3], 2
    %919 = vst.msk [vmem:[%s918] sm:$0x1] %vm65, %v917
    %v920 = vmax.f32 %v907, %v908
    %v921 = vmax.f32 %v920, %v909
    %s922 = scalar_lea.vmem [#allocation3], 3
    %923 = vst.msk [vmem:[%s922] sm:$0x1] %vm65, %v921
    %v924 = vld [vmem:[%s178] sm:$0x1]
    %v925 = vld [vmem:[%s178 + $0x1] sm:$0x1]
    %v926 = vld [vmem:[%s178 + $0x2] sm:$0x1]
    %v927 = vld [vmem:[%s178 + $0x3] sm:$0x1]
    %v928 = vld [vmem:[%s178 + $0x4] sm:$0x1]
    %v929 = vld [vmem:[%s178 + $0x5] sm:$0x1]
    %v930 = vld [vmem:[%s178 + $0x6] sm:$0x1]
    %v931 = vld [vmem:[%s178 + $0x7] sm:$0x1]
    %v932 = vld [vmem:[%s291] sm:$0x1]
    %v933 = vld [vmem:[%s291 + $0x1] sm:$0x1]
    %v934 = vld [vmem:[%s291 + $0x2] sm:$0x1]
    %v935 = vld [vmem:[%s291 + $0x3] sm:$0x1]
    %v936 = vld [vmem:[%s291 + $0x4] sm:$0x1]
    %v937 = vld [vmem:[%s291 + $0x5] sm:$0x1]
    %v938 = vld [vmem:[%s291 + $0x6] sm:$0x1]
    %v939 = vld [vmem:[%s291 + $0x7] sm:$0x1]
    %v940 = vmax.f32 %v924, %v932
    %v941 = vmax.f32 %v925, %v933
    %v942 = vmax.f32 %v926, %v934
    %v943 = vmax.f32 %v927, %v935
    %v944 = vmax.f32 %v928, %v936
    %v945 = vmax.f32 %v929, %v937
    %v946 = vmax.f32 %v930, %v938
    %v947 = vmax.f32 %v931, %v939
    %v948 = vld [vmem:[%s404] sm:$0x1]
    %v949 = vld [vmem:[%s404 + $0x1] sm:$0x1]
    %v950 = vld [vmem:[%s404 + $0x2] sm:$0x1]
    %v951 = vld [vmem:[%s404 + $0x3] sm:$0x1]
    %v952 = vld [vmem:[%s404 + $0x4] sm:$0x1]
    %v953 = vld [vmem:[%s404 + $0x5] sm:$0x1]
    %v954 = vld [vmem:[%s404 + $0x6] sm:$0x1]
    %v955 = vld [vmem:[%s404 + $0x7] sm:$0x1]
    %v956 = vmax.f32 %v940, %v948
    %v957 = vmax.f32 %v941, %v949
    %v958 = vmax.f32 %v942, %v950
    %v959 = vmax.f32 %v943, %v951
    %v960 = vmax.f32 %v944, %v952
    %v961 = vmax.f32 %v945, %v953
    %v962 = vmax.f32 %v946, %v954
    %v963 = vmax.f32 %v947, %v955
    %v964 = vmax.f32 %v956, %v957
    %s965 = scalar_lea.vmem [#allocation3], 4
    %966 = vst.msk [vmem:[%s965] sm:$0x1] %vm65, %v964
    %v967 = vmax.f32 %v957, %v958
    %v968 = vmax.f32 %v967, %v959
    %s969 = scalar_lea.vmem [#allocation3], 5
    %970 = vst.msk [vmem:[%s969] sm:$0x1] %vm65, %v968
    %v971 = vmax.f32 %v959, %v960
    %v972 = vmax.f32 %v971, %v961
    %s973 = scalar_lea.vmem [#allocation3], 6
    %974 = vst.msk [vmem:[%s973] sm:$0x1] %vm65, %v972
    %v975 = vmax.f32 %v961, %v962
    %v976 = vmax.f32 %v975, %v963
    %s977 = scalar_lea.vmem [#allocation3], 7
    %978 = vst.msk [vmem:[%s977] sm:$0x1] %vm65, %v976
    %v979 = vld [vmem:[%s404] sm:$0x1]
    %v980 = vld [vmem:[%s404 + $0x1] sm:$0x1]
    %v981 = vld [vmem:[%s404 + $0x2] sm:$0x1]
    %v982 = vld [vmem:[%s404 + $0x3] sm:$0x1]
    %v983 = vld [vmem:[%s404 + $0x4] sm:$0x1]
    %v984 = vld [vmem:[%s404 + $0x5] sm:$0x1]
    %v985 = vld [vmem:[%s404 + $0x6] sm:$0x1]
    %v986 = vld [vmem:[%s404 + $0x7] sm:$0x1]
    %v987 = vld [vmem:[%s517] sm:$0x1]
    %v988 = vld [vmem:[%s517 + $0x1] sm:$0x1]
    %v989 = vld [vmem:[%s517 + $0x2] sm:$0x1]
    %v990 = vld [vmem:[%s517 + $0x3] sm:$0x1]
    %v991 = vld [vmem:[%s517 + $0x4] sm:$0x1]
    %v992 = vld [vmem:[%s517 + $0x5] sm:$0x1]
    %v993 = vld [vmem:[%s517 + $0x6] sm:$0x1]
    %v994 = vld [vmem:[%s517 + $0x7] sm:$0x1]
    %v995 = vmax.f32 %v979, %v987
    %v996 = vmax.f32 %v980, %v988
    %v997 = vmax.f32 %v981, %v989
    %v998 = vmax.f32 %v982, %v990
    %v999 = vmax.f32 %v983, %v991
    %v1000 = vmax.f32 %v984, %v992
    %v1001 = vmax.f32 %v985, %v993
    %v1002 = vmax.f32 %v986, %v994
    %v1003 = vld [vmem:[%s630] sm:$0x1]
    %v1004 = vld [vmem:[%s630 + $0x1] sm:$0x1]
    %v1005 = vld [vmem:[%s630 + $0x2] sm:$0x1]
    %v1006 = vld [vmem:[%s630 + $0x3] sm:$0x1]
    %v1007 = vld [vmem:[%s630 + $0x4] sm:$0x1]
    %v1008 = vld [vmem:[%s630 + $0x5] sm:$0x1]
    %v1009 = vld [vmem:[%s630 + $0x6] sm:$0x1]
    %v1010 = vld [vmem:[%s630 + $0x7] sm:$0x1]
    %v1011 = vmax.f32 %v995, %v1003
    %v1012 = vmax.f32 %v996, %v1004
    %v1013 = vmax.f32 %v997, %v1005
    %v1014 = vmax.f32 %v998, %v1006
    %v1015 = vmax.f32 %v999, %v1007
    %v1016 = vmax.f32 %v1000, %v1008
    %v1017 = vmax.f32 %v1001, %v1009
    %v1018 = vmax.f32 %v1002, %v1010
    %v1019 = vmax.f32 %v1011, %v1012
    %s1020 = scalar_lea.vmem [#allocation3], 8
    %1021 = vst.msk [vmem:[%s1020] sm:$0x1] %vm65, %v1019
    %v1022 = vmax.f32 %v1012, %v1013
    %v1023 = vmax.f32 %v1022, %v1014
    %s1024 = scalar_lea.vmem [#allocation3], 9
    %1025 = vst.msk [vmem:[%s1024] sm:$0x1] %vm65, %v1023
    %v1026 = vmax.f32 %v1014, %v1015
    %v1027 = vmax.f32 %v1026, %v1016
    %s1028 = scalar_lea.vmem [#allocation3], 10
    %1029 = vst.msk [vmem:[%s1028] sm:$0x1] %vm65, %v1027
    %v1030 = vmax.f32 %v1016, %v1017
    %v1031 = vmax.f32 %v1030, %v1018
    %s1032 = scalar_lea.vmem [#allocation3], 11
    %1033 = vst.msk [vmem:[%s1032] sm:$0x1] %vm65, %v1031
    %v1034 = vld [vmem:[%s630] sm:$0x1]
    %v1035 = vld [vmem:[%s630 + $0x1] sm:$0x1]
    %v1036 = vld [vmem:[%s630 + $0x2] sm:$0x1]
    %v1037 = vld [vmem:[%s630 + $0x3] sm:$0x1]
    %v1038 = vld [vmem:[%s630 + $0x4] sm:$0x1]
    %v1039 = vld [vmem:[%s630 + $0x5] sm:$0x1]
    %v1040 = vld [vmem:[%s630 + $0x6] sm:$0x1]
    %v1041 = vld [vmem:[%s630 + $0x7] sm:$0x1]
    %v1042 = vld [vmem:[%s743] sm:$0x1]
    %v1043 = vld [vmem:[%s743 + $0x1] sm:$0x1]
    %v1044 = vld [vmem:[%s743 + $0x2] sm:$0x1]
    %v1045 = vld [vmem:[%s743 + $0x3] sm:$0x1]
    %v1046 = vld [vmem:[%s743 + $0x4] sm:$0x1]
    %v1047 = vld [vmem:[%s743 + $0x5] sm:$0x1]
    %v1048 = vld [vmem:[%s743 + $0x6] sm:$0x1]
    %v1049 = vld [vmem:[%s743 + $0x7] sm:$0x1]
    %v1050 = vmax.f32 %v1034, %v1042
    %v1051 = vmax.f32 %v1035, %v1043
    %v1052 = vmax.f32 %v1036, %v1044
    %v1053 = vmax.f32 %v1037, %v1045
    %v1054 = vmax.f32 %v1038, %v1046
    %v1055 = vmax.f32 %v1039, %v1047
    %v1056 = vmax.f32 %v1040, %v1048
    %v1057 = vmax.f32 %v1041, %v1049
    %v1058 = vld [vmem:[%s856] sm:$0x1]
    %v1059 = vld [vmem:[%s856 + $0x1] sm:$0x1]
    %v1060 = vld [vmem:[%s856 + $0x2] sm:$0x1]
    %v1061 = vld [vmem:[%s856 + $0x3] sm:$0x1]
    %v1062 = vld [vmem:[%s856 + $0x4] sm:$0x1]
    %v1063 = vld [vmem:[%s856 + $0x5] sm:$0x1]
    %v1064 = vld [vmem:[%s856 + $0x6] sm:$0x1]
    %v1065 = vld [vmem:[%s856 + $0x7] sm:$0x1]
    %v1066 = vmax.f32 %v1050, %v1058
    %v1067 = vmax.f32 %v1051, %v1059
    %v1068 = vmax.f32 %v1052, %v1060
    %v1069 = vmax.f32 %v1053, %v1061
    %v1070 = vmax.f32 %v1054, %v1062
    %v1071 = vmax.f32 %v1055, %v1063
    %v1072 = vmax.f32 %v1056, %v1064
    %v1073 = vmax.f32 %v1057, %v1065
    %v1074 = vmax.f32 %v1066, %v1067
    %s1075 = scalar_lea.vmem [#allocation3], 12
    %1076 = vst.msk [vmem:[%s1075] sm:$0x1] %vm65, %v1074
    %v1077 = vmax.f32 %v1067, %v1068
    %v1078 = vmax.f32 %v1077, %v1069
    %s1079 = scalar_lea.vmem [#allocation3], 13
    %1080 = vst.msk [vmem:[%s1079] sm:$0x1] %vm65, %v1078
    %v1081 = vmax.f32 %v1069, %v1070
    %v1082 = vmax.f32 %v1081, %v1071
    %s1083 = scalar_lea.vmem [#allocation3], 14
    %1084 = vst.msk [vmem:[%s1083] sm:$0x1] %vm65, %v1082
    %v1085 = vmax.f32 %v1071, %v1072
    %v1086 = vmax.f32 %v1085, %v1073
    %s1087 = scalar_lea.vmem [#allocation3], 15
    %1088 = vst.msk [vmem:[%s1087] sm:$0x1] %vm65, %v1086
    %v1089 = vld [vmem:[#allocation3] sm:$0x1]
    %v1090 = vld [vmem:[#allocation3 + $0x1] sm:$0x1]
    %v1091 = vld [vmem:[#allocation3 + $0x2] sm:$0x1]
    %v1092 = vld [vmem:[#allocation3 + $0x3] sm:$0x1]
    %v1093 = vld [vmem:[%s965] sm:$0x1]
    %v1094 = vld [vmem:[%s965 + $0x1] sm:$0x1]
    %v1095 = vld [vmem:[%s965 + $0x2] sm:$0x1]
    %v1096 = vld [vmem:[%s965 + $0x3] sm:$0x1]
    %v1097 = vadd.f32 %v1089, %v1093
    %v1098 = vadd.f32 %v1090, %v1094
    %v1099 = vadd.f32 %v1091, %v1095
    %v1100 = vadd.f32 %v1092, %v1096
    %v1101 = vadd.f32 %v1097, %v1098
    %1102 = vst.msk [vmem:[#allocation5] sm:$0x1] %vm65, %v1101
    %v1103 = vadd.f32 %v1098, %v1099
    %v1104 = vadd.f32 %v1103, %v1100
    %s1105 = scalar_lea.vmem [#allocation5], 1
    %1106 = vst.msk [vmem:[%s1105] sm:$0x1] %vm65, %v1104
    %v1107 = vld [vmem:[%s965] sm:$0x1]
    %v1108 = vld [vmem:[%s965 + $0x1] sm:$0x1]
    %v1109 = vld [vmem:[%s965 + $0x2] sm:$0x1]
    %v1110 = vld [vmem:[%s965 + $0x3] sm:$0x1]
    %v1111 = vld [vmem:[%s1020] sm:$0x1]
    %v1112 = vld [vmem:[%s1020 + $0x1] sm:$0x1]
    %v1113 = vld [vmem:[%s1020 + $0x2] sm:$0x1]
    %v1114 = vld [vmem:[%s1020 + $0x3] sm:$0x1]
    %v1115 = vadd.f32 %v1107, %v1111
    %v1116 = vadd.f32 %v1108, %v1112
    %v1117 = vadd.f32 %v1109, %v1113
    %v1118 = vadd.f32 %v1110, %v1114
    %v1119 = vld [vmem:[%s1075] sm:$0x1]
    %v1120 = vld [vmem:[%s1075 + $0x1] sm:$0x1]
    %v1121 = vld [vmem:[%s1075 + $0x2] sm:$0x1]
    %v1122 = vld [vmem:[%s1075 + $0x3] sm:$0x1]
    %v1123 = vadd.f32 %v1115, %v1119
    %v1124 = vadd.f32 %v1116, %v1120
    %v1125 = vadd.f32 %v1117, %v1121
    %v1126 = vadd.f32 %v1118, %v1122
    %v1127 = vadd.f32 %v1123, %v1124
    %s1128 = scalar_lea.vmem [#allocation5], 2
    %1129 = vst.msk [vmem:[%s1128] sm:$0x1] %vm65, %v1127
    %v1130 = vadd.f32 %v1124, %v1125
    %v1131 = vadd.f32 %v1130, %v1126
    %s1132 = scalar_lea.vmem [#allocation5], 3
    %1133 = vst.msk [vmem:[%s1132] sm:$0x1] %vm65, %v1131
    %v1134 = vld [vmem:[#allocation5] sm:$0x1]
    %v1135 = vld [vmem:[#allocation5 + $0x1] sm:$0x1]
    %v1136 = vld [vmem:[%s1128] sm:$0x1]
    %v1137 = vld [vmem:[%s1128 + $0x1] sm:$0x1]
    %v1138 = vadd.f32 %v1134, %v1136
    %v1139 = vadd.f32 %v1135, %v1137
    %v1140 = vadd.f32 %v1138, %v1139
    %1141 = vst.msk [vmem:[#allocation7] sm:$0x1] %vm65, %v1140
    %v1142 = vld [vmem:[#allocation7] sm:$0x1]
    %1143 = vst.msk [vmem:[#allocation8] sm:$0x1] %vm65, %v1142
    // Predicated region
    $region6: #{tpu_custom_call.1} parent=1 // pred_check
      _
    $region7: #{tpu_custom_call.1} parent=1 // pred_check_branch
      %1145 = sbr.rel (0) target = $region9
    $region8: #{tpu_custom_call.1} parent=1 // pred_region
      %s1147 = ssub.s32 256, 256
      %1148 = vsyncadd [#allocation4], %s1147
      %s1149 = sshll.u32 [#allocation3], 4
      %s1150 = int_to_ptr.vmem [resolvable:$true] %s1149
      %1155 = dma.vmem_to_hbm [thread:$0]  %s1150, 256, %s1, [#allocation4], 16, 16, 1
    $region9: #{tpu_custom_call.1} parent=1 // pred_fallthru
      _
    // Predicated region
    $region10: #{tpu_custom_call.1} parent=1 // pred_check
      _
    $region11: #{tpu_custom_call.1} parent=1 // pred_check_branch
      %1157 = sbr.rel (0) target = $region13
    $region12: #{tpu_custom_call.1} parent=1 // pred_region
      %s1159 = ssub.s32 64, 64
      %1160 = vsyncadd [#allocation6], %s1159
      %s1161 = sshll.u32 [#allocation5], 4
      %s1162 = int_to_ptr.vmem [resolvable:$true] %s1161
      %1167 = dma.vmem_to_hbm [thread:$0]  %s1162, 64, %s2, [#allocation6], 16, 16, 1
    $region13: #{tpu_custom_call.1} parent=1 // pred_fallthru
      _
    // Predicated region
    $region14: #{tpu_custom_call.1} parent=1 // pred_check
      _
    $region15: #{tpu_custom_call.1} parent=1 // pred_check_branch
      %1169 = sbr.rel (0) target = $region17
    $region16: #{tpu_custom_call.1} parent=1 // pred_region
      %s1171 = ssub.s32 16, 16
      %1172 = vsyncadd [#allocation6], %s1171
      %s1174 = sshll.u32 [#allocation7], 4
      %s1175 = int_to_ptr.vmem [resolvable:$true] %s1174
      %1177 = dma.vmem_to_hbm [thread:$0]  %s1175, 16, %s3, [#allocation6]
    $region17: #{tpu_custom_call.1} parent=1 // pred_fallthru
      _
    // Predicated region
    $region18: #{tpu_custom_call.1} parent=1 // pred_check
      _
    $region19: #{tpu_custom_call.1} parent=1 // pred_check_branch
      %1179 = sbr.rel (0) target = $region21
    $region20: #{tpu_custom_call.1} parent=1 // pred_region
      %s1181 = ssub.s32 16, 16
      %1182 = vsyncadd [#allocation9], %s1181
      %s1184 = sshll.u32 [#allocation8], 4
      %s1185 = int_to_ptr.vmem [resolvable:$true] %s1184
      %1187 = dma.vmem_to_hbm [thread:$0]  %s1185, 16, %s4, [#allocation9]
    $region21: #{tpu_custom_call.1} parent=1 // pred_fallthru
      _
    // Predicated region
    $region22: #{tpu_custom_call.1} parent=1 // pred_check
      _
    $region23: #{tpu_custom_call.1} parent=1 // pred_check_branch
      %1189 = sbr.rel (0) target = $region25
    $region24: #{tpu_custom_call.1} parent=1 // pred_region
      %1190 = dma.done [#allocation4], 256
    $region25: #{tpu_custom_call.1} parent=1 // pred_fallthru
      _
    // Predicated region
    $region26: #{tpu_custom_call.1} parent=1 // pred_check
      _
    $region27: #{tpu_custom_call.1} parent=1 // pred_check_branch
      %1192 = sbr.rel (0) target = $region29
    $region28: #{tpu_custom_call.1} parent=1 // pred_region
      %1193 = dma.done [#allocation6], 64
    $region29: #{tpu_custom_call.1} parent=1 // pred_fallthru
      _
    // Predicated region
    $region30: #{tpu_custom_call.1} parent=1 // pred_check
      _
    $region31: #{tpu_custom_call.1} parent=1 // pred_check_branch
      %1195 = sbr.rel (0) target = $region33
    $region32: #{tpu_custom_call.1} parent=1 // pred_region
      %1196 = dma.done [#allocation6], 16
    $region33: #{tpu_custom_call.1} parent=1 // pred_fallthru
      _
    // Predicated region
    $region34: #{tpu_custom_call.1} parent=1 // pred_check
      _
    $region35: #{tpu_custom_call.1} parent=1 // pred_check_branch
      %1198 = sbr.rel (0) target = $region37
    $region36: #{tpu_custom_call.1} parent=1 // pred_region
      %1199 = dma.done [#allocation9], 16
    $region37: #{tpu_custom_call.1} parent=1 // pred_fallthru
      _
    %1200 = vsyncpa [#allocation4], 1
    %1201 = vsyncpa [#allocation6], 1
    %1202 = vsyncpa [#allocation9], 1

</llo_original>
